<compile_context>
chip_gen: v7x
topology: tpu7x:2x2x1
jax: 0.10.0
libtpu: 0.0.40
codegen_flags: <defaults>
</compile_context>

<pallas_src>
import jax
import jax.numpy as jnp
import numpy as np
from jax.experimental import pallas as pl
from jax.experimental.pallas import tpu as pltpu

D = 8192          # pnr middle feature dim
H = 512           # fc1 hidden
C = 2             # num_classes
TK = 4096         # K-tile over the (folded) feature axis
TH = 256          # H-tile (fc1 output columns), split across cores on v7x
NK = D // TK      # 2
NH = H // TH      # 2


def _keyframe2state_kernel(m_ref, w1_ref, b1_ref, w2_ref, o_ref, acc_ref):
    k = pl.program_id(1)

    @pl.when(k == 0)
    def _():
        acc_ref[...] = jnp.zeros_like(acc_ref)

    # partial fc1 for this (H-block, K-block): acc += m[:, kTK:(k+1)TK] @ W1f[kTK:(k+1)TK, hTH:(h+1)TH]
    acc_ref[...] += jnp.dot(m_ref[...], w1_ref[...].astype(jnp.float32),
                            preferred_element_type=jnp.float32)

    @pl.when(k == pl.num_programs(1) - 1)
    def _():
        h_act = jnp.maximum(acc_ref[...] + b1_ref[...], 0.0)          # ReLU(fc1) for this H block
        # partial fc2 contribution of this H block (b2 added in the wrapper)
        o_ref[...] = jnp.dot(h_act, w2_ref[...].astype(jnp.float32),
                             preferred_element_type=jnp.float32)


def fold_keyframe2state_params(w1, b1, w2, b2):
    """One-time transform of the frozen head parameters.

    w1: (2*D, H) stored (in, out) = torch weight.T ; b1: (H,); w2: (H, C); b2: (C,).
    Folds torch.cat((m, m), dim=1) into W1 and casts the big matrices to bf16.
    """
    w1_folded = (w1[:D, :] + w1[D:, :]).astype(jnp.bfloat16)          # (D, H)
    return (w1_folded,
            b1.reshape(1, H).astype(jnp.float32),
            w2.astype(jnp.bfloat16),
            b2.astype(jnp.float32))


def keyframe2state_forward(pnr_feat, w1_folded, b1_row, w2_bf, b2):
    """pnr_feat: (B, T, D). Folded params from fold_keyframe2state_params."""
    B, T, d = pnr_feat.shape
    assert d == D

    # torch: pnr_feat = pnr_model(x, middle=True).mean(dim=1)   (no_grad)
    m = jnp.mean(pnr_feat.astype(jnp.float32), axis=1)                # (B, D)

    partials = pl.pallas_call(
        _keyframe2state_kernel,
        out_shape=jax.ShapeDtypeStruct((NH, B, C), jnp.float32),
        grid_spec=pltpu.PrefetchScalarGridSpec(
            num_scalar_prefetch=0,
            grid=(NH, NK),
            in_specs=[
                pl.BlockSpec((B, TK), lambda h, k: (0, k)),           # activations
                pl.BlockSpec((TK, TH), lambda h, k: (k, h)),          # folded W1 (bf16)
                pl.BlockSpec((1, TH), lambda h, k: (0, h)),           # b1 slice
                pl.BlockSpec((TH, C), lambda h, k: (h, 0)),           # W2 slice (bf16)
            ],
            out_specs=pl.BlockSpec((None, B, C), lambda h, k: (h, 0, 0)),
            scratch_shapes=[pltpu.VMEM((B, TH), jnp.float32)],
        ),
        compiler_params=pltpu.CompilerParams(
            dimension_semantics=("parallel", "arbitrary")),
    )(m, w1_folded, b1_row, w2_bf)

    out = jnp.sum(partials, axis=0) + b2[None, :]                     # (B, C)
    # torch: out.unsqueeze(2)
    return out[:, :, None]


def _reference(pnr_feat, w1, b1, w2, b2):
    m = jnp.mean(pnr_feat, axis=1)
    feat = jnp.concatenate([m, m], axis=1)
    h = jnp.maximum(jnp.dot(feat, w1, precision=jax.lax.Precision.HIGHEST) + b1, 0.0)
    out = jnp.dot(h, w2, precision=jax.lax.Precision.HIGHEST) + b2
    return out[:, :, None]


if __name__ == "__main__":
    key = jax.random.PRNGKey(0)
    k_x, k_w1, k_b1, k_w2, k_b2 = jax.random.split(key, 5)

    B, T = 2, 4
    # Backbone middle features (stand-in for pnr_model(x, middle=True)).
    pnr_feat = jax.random.normal(k_x, (B, T, D), dtype=jnp.float32) * 0.1

    # Deterministic synthetic parameters (nn.Linear(8192*2, 512), nn.Linear(512, 2)),
    # stored as (in, out) = torch weight.T.
    w1 = jax.random.normal(k_w1, (2 * D, H), dtype=jnp.float32) * 0.01
    b1 = jax.random.normal(k_b1, (H,), dtype=jnp.float32) * 0.01
    w2 = jax.random.normal(k_w2, (H, C), dtype=jnp.float32) * 0.01
    b2 = jax.random.normal(k_b2, (C,), dtype=jnp.float32) * 0.01

    # One-time fold/cast of the frozen head (checkpoint-load-time transform).
    w1f, b1r, w2bf, b2f = fold_keyframe2state_params(w1, b1, w2, b2)

    out = keyframe2state_forward(pnr_feat, w1f, b1r, w2bf, b2f)
    out = jax.block_until_ready(out)

    ref = jax.block_until_ready(_reference(pnr_feat, w1, b1, w2, b2))
    assert out.shape == (B, C, 1), out.shape
    # bf16 weight streaming introduces a tiny quantization error vs the f32 reference.
    np.testing.assert_allclose(np.asarray(out), np.asarray(ref), rtol=5e-4, atol=5e-4)

    print("KERNEL_OK")
</pallas_src>

<mosaic_0001>
module attributes {stable_mosaic.version = 11 : i64} {
  func.func @_keyframe2state_kernel(%arg0: i32, %arg1: i32, %arg2: memref<2x4096xf32, #tpu.memory_space<vmem>>, %arg3: memref<4096x256xbf16, #tpu.memory_space<vmem>>, %arg4: memref<1x256xf32, #tpu.memory_space<vmem>>, %arg5: memref<256x2xbf16, #tpu.memory_space<vmem>>, %arg6: memref<1x2x2xf32, #tpu.memory_space<vmem>>, %arg7: memref<2x256xf32, #tpu.memory_space<vmem>>) attributes {dimension_semantics = [#tpu.dimension_semantics<parallel>, #tpu.dimension_semantics<arbitrary>], iteration_bounds = array<i64: 2, 2>, scalar_prefetch = 0 : i64, scratch_operands = 1 : i64, tpu.core_type = #tpu.core_type<tc>, window_params = [{transform_indices = @transform_0, window_bounds = array<i64: 2, 4096>}, {transform_indices = @transform_1, window_bounds = array<i64: 4096, 256>}, {transform_indices = @transform_2, window_bounds = array<i64: 1, 256>}, {transform_indices = @transform_3, window_bounds = array<i64: 256, 2>}, {transform_indices = @transform_4, window_bounds = array<i64: 1, 2, 2>}]} {
    %c0_i32 = arith.constant 0 : i32
    %0 = arith.cmpi eq, %arg1, %c0_i32 : i32
    %1 = arith.extui %0 : i1 to i32
    %c0_i32_0 = arith.constant 0 : i32
    %2 = arith.cmpi ne, %1, %c0_i32_0 : i32
    scf.if %2 {
      %cst_9 = arith.constant 0.000000e+00 : f32
      %13 = vector.broadcast %cst_9 : f32 to vector<2x256xf32>
      %c0_10 = arith.constant 0 : index
      %c0_11 = arith.constant 0 : index
      %14 = vector.load %arg7[%c0_10, %c0_11] : memref<2x256xf32, #tpu.memory_space<vmem>>, vector<2x256xf32>
      tpu.vector_store %arg7[%c0_10, %c0_11], %13 {strides = array<i32>} : memref<2x256xf32, #tpu.memory_space<vmem>>, vector<2x256xf32>,
    } else {
    }
    %c0 = arith.constant 0 : index
    %c0_1 = arith.constant 0 : index
    %3 = vector.load %arg7[%c0, %c0_1] : memref<2x256xf32, #tpu.memory_space<vmem>>, vector<2x256xf32>
    %c0_2 = arith.constant 0 : index
    %c0_3 = arith.constant 0 : index
    %4 = vector.load %arg2[%c0_2, %c0_3] : memref<2x4096xf32, #tpu.memory_space<vmem>>, vector<2x4096xf32>
    %c0_4 = arith.constant 0 : index
    %c0_5 = arith.constant 0 : index
    %5 = vector.load %arg3[%c0_4, %c0_5] : memref<4096x256xbf16, #tpu.memory_space<vmem>>, vector<4096x256xbf16>
    %6 = arith.extf %5 : vector<4096x256xbf16> to vector<4096x256xf32>
    %cst = arith.constant dense<0.000000e+00> : vector<2x256xf32>
    %7 = tpu.matmul %4, %6, %cst {dimension_numbers = #tpu.dot_dimension_numbers<[1], [0], [0], [1], [0, 0, 1, 1], [], []>} : vector<2x4096xf32>, vector<4096x256xf32>, vector<2x256xf32> -> vector<2x256xf32>
    %8 = arith.addf %3, %7 : vector<2x256xf32>
    %c0_6 = arith.constant 0 : index
    %c0_7 = arith.constant 0 : index
    %9 = vector.load %arg7[%c0_6, %c0_7] : memref<2x256xf32, #tpu.memory_space<vmem>>, vector<2x256xf32>
    tpu.vector_store %arg7[%c0_6, %c0_7], %8 {strides = array<i32>} : memref<2x256xf32, #tpu.memory_space<vmem>>, vector<2x256xf32>,
    %c1_i32 = arith.constant 1 : i32
    %10 = arith.cmpi eq, %arg1, %c1_i32 : i32
    %11 = arith.extui %10 : i1 to i32
    %c0_i32_8 = arith.constant 0 : i32
    %12 = arith.cmpi ne, %11, %c0_i32_8 : i32
    scf.if %12 {
      %c0_9 = arith.constant 0 : index
      %c0_10 = arith.constant 0 : index
      %13 = vector.load %arg7[%c0_9, %c0_10] : memref<2x256xf32, #tpu.memory_space<vmem>>, vector<2x256xf32>
      %c0_11 = arith.constant 0 : index
      %c0_12 = arith.constant 0 : index
      %14 = vector.load %arg4[%c0_11, %c0_12] : memref<1x256xf32, #tpu.memory_space<vmem>>, vector<1x256xf32>
      %15 = vector.broadcast %14 : vector<1x256xf32> to vector<2x256xf32>
      %16 = arith.addf %13, %15 : vector<2x256xf32>
      %cst_13 = arith.constant 0.000000e+00 : f32
      %17 = vector.broadcast %cst_13 : f32 to vector<2x256xf32>
      %18 = arith.maximumf %16, %17 : vector<2x256xf32>
      %c0_14 = arith.constant 0 : index
      %c0_15 = arith.constant 0 : index
      %19 = vector.load %arg5[%c0_14, %c0_15] : memref<256x2xbf16, #tpu.memory_space<vmem>>, vector<256x2xbf16>
      %20 = arith.extf %19 : vector<256x2xbf16> to vector<256x2xf32>
      %cst_16 = arith.constant dense<0.000000e+00> : vector<2x2xf32>
      %21 = tpu.matmul %18, %20, %cst_16 {dimension_numbers = #tpu.dot_dimension_numbers<[1], [0], [0], [1], [0, 0, 1, 1], [], []>} : vector<2x256xf32>, vector<256x2xf32>, vector<2x2xf32> -> vector<2x2xf32>
      %c0_17 = arith.constant 0 : index
      %c0_18 = arith.constant 0 : index
      %c0_19 = arith.constant 0 : index
      %22 = vector.load %arg6[%c0_17, %c0_18, %c0_19] : memref<1x2x2xf32, #tpu.memory_space<vmem>>, vector<1x2x2xf32>
      %23 = vector.shape_cast %22 : vector<1x2x2xf32> to vector<2x2xf32>
      %24 = vector.shape_cast %21 : vector<2x2xf32> to vector<1x2x2xf32>
      tpu.vector_store %arg6[%c0_17, %c0_18, %c0_19], %24 {strides = array<i32>} : memref<1x2x2xf32, #tpu.memory_space<vmem>>, vector<1x2x2xf32>,
    } else {
    }
    return
  }
  func.func @transform_0(%arg0: i32, %arg1: i32) -> (i32, i32) {
    %c0_i32 = arith.constant 0 : i32
    %c0_i32_0 = arith.constant 0 : i32
    return %c0_i32, %arg1 : i32, i32
  }
  func.func @transform_1(%arg0: i32, %arg1: i32) -> (i32, i32) {
    %c0_i32 = arith.constant 0 : i32
    return %arg1, %arg0 : i32, i32
  }
  func.func @transform_2(%arg0: i32, %arg1: i32) -> (i32, i32) {
    %c0_i32 = arith.constant 0 : i32
    %c0_i32_0 = arith.constant 0 : i32
    return %c0_i32, %arg0 : i32, i32
  }
  func.func @transform_3(%arg0: i32, %arg1: i32) -> (i32, i32) {
    %c0_i32 = arith.constant 0 : i32
    %c0_i32_0 = arith.constant 0 : i32
    return %arg0, %c0_i32 : i32, i32
  }
  func.func @transform_4(%arg0: i32, %arg1: i32) -> (i32, i32, i32) {
    %c0_i32 = arith.constant 0 : i32
    %c0_i32_0 = arith.constant 0 : i32
    %c0_i32_1 = arith.constant 0 : i32
    return %arg0, %c0_i32, %c0_i32_0 : i32, i32, i32
  }
}

</mosaic_0001>

<llo_original>
// kernel: tpu_custom_call.1
$region0: #{tpu_custom_call.1}
  #allocation0 [shape = 'u32[]', space=smem, size = 0x4, offset = 0x4, fixed_abs, tag = 'smem constant byte address 0x4 - core index']
  #allocation1 [shape = 'u32[144,128]{1,0:T(1,128)}', space=vmem, size = 0x12000, scoped, tag = 'internal scratch']
  #allocation2 [shape = 'f32[2,256]{1,0:T(2,128)}', space=vmem, size = 0x800, scoped, tag = 'scratch operand']
  %s0 = inlined_call_operand.hbm [shape: f32[2,8192], index: 0, kind: input, shape index: {}]
  %s1 = inlined_call_operand.hbm [shape: bf16[8192,512], index: 1, kind: input, shape index: {}]
  %s2 = inlined_call_operand.hbm [shape: f32[1,512], index: 2, kind: input, shape index: {}]
  %s3 = inlined_call_operand.vmem [shape: bf16[512,2], index: 3, kind: input, shape index: {}]
  %s4 = inlined_call_operand.hbm [shape: f32[2,2,2], index: 4, kind: output, shape index: {}]
  %s5 = sld [smem:[#allocation0]]
  $region69: #{tpu_custom_call.1} parent=0
    _
  %s7 = ssub.s32 1, %s5
  %s8 = scalar_select 0, %s7, %s5
  $region1: #{tpu_custom_call.1} parent=0
    #allocation3 [shape = 'u8[65536]{0}', space=vmem, size = 0x10000, scoped, tag = 'input window, operand 0']
    #allocation4 [shape = 's32[2]{0}', space=sflag, size = 0x8, scoped, tag = 'scoped memory for tpu_custom_call.1']
    #allocation5 [shape = 's32[2]{0}', space=sflag, size = 0x8, scoped, tag = 'scoped memory for tpu_custom_call.1']
    #allocation6 [shape = 'u8[4194304]{0}', space=vmem, size = 0x400000, scoped, tag = 'input window, operand 1']
    #allocation7 [shape = 's32[2]{0}', space=sflag, size = 0x8, scoped, tag = 'scoped memory for tpu_custom_call.1']
    #allocation8 [shape = 'u8[2048]{0}', space=vmem, size = 0x800, scoped, tag = 'input window, operand 2']
    #allocation9 [shape = 'u8[2048]{0}', space=vmem, size = 0x800, scoped, tag = 'output window, operand 0']
    %9 = vsyncpa [#allocation4], 0
    %s10 = scalar_lea.sflag [#allocation4], 1
    %11 = vsyncpa %s10, 0
    %12 = vsyncpa [#allocation7], 0
    %s13 = scalar_lea.sflag [#allocation7], 1
    %14 = vsyncpa %s13, 0
    %15 = vsyncpa [#allocation5], 0
    %s16 = scalar_lea.sflag [#allocation5], 1
    %17 = vsyncpa %s16, 0
    loop: start=0, step=1, limit=6
    $region2: #{tpu_custom_call.1} parent=1 // loop_pre_header
      _
    $region3: #{tpu_custom_call.1} parent=1 // loop_header
      %s19 = sphi 0, %s23
      %p20 = scmp.ge.s32.totalorder %s19, 6
      %s26 = sphi 0, %s38
      %s27 = sphi 0, %s34
      %s28 = sphi 0, %s26
      %s29 = sphi 0, %s27
      %s30 = sphi 0, %s28
      %s31 = sphi 0, %s29
      %s41 = sphi 0, %s43
      %s44 = sphi 0, %s41
      %s45 = sphi 0, %s44
      %s61 = sphi 0, %s45
      %s69 = sphi 0, %s71
      %s72 = sphi 0, %s69
      %s73 = sphi 0, %s72
      %s89 = sphi 0, %s73
      %s95 = sphi 0, %s97
      %s98 = sphi 0, %s95
      %s99 = sphi 0, %s98
      %s115 = sphi 0, %s99
      %s121 = sphi 0, %s123
      %s124 = sphi 0, %s121
      %s125 = sphi 0, %s124
      %s141 = sphi 0, %s125
      %s147 = sphi 0, %s149
      %s150 = sphi 0, %s147
      %s151 = sphi 0, %s150
      %s167 = sphi 0, %s151
    $region4: #{tpu_custom_call.1} parent=1 // loop_header_branch
      %22 = sbr.rel (%p20) target = $region8
    $region5: #{tpu_custom_call.1} parent=1 // loop_body
      %s24 = ssub.s32 %s19, 1
      %s25 = ssub.s32 %s19, 2
      %s32 = sadd.s32 1, %s27
      %p33 = scmp.ge.s32.totalorder %s32, 2
      %s34 = scalar_select %p33, 0, %s32
      %s35 = sadd.s32 1, %s26
      %s36 = scalar_select %p33, %s35, %s26
      %p37 = scmp.ge.s32.totalorder %s36, 2
      %s38 = scalar_select %p37, 0, %s36
      %s39 = ssub.s32 %s27, %s34
      %p40 = scmp.eq.s32.totalorder %s39, 0
      %s42 = sadd.s32 %s41, 1
      %s43 = scalar_select %p40, %s41, %s42
      %p46 = pneg %p40
      %p47 = scmp.eq.s32.totalorder %s19, 3
      %p48 = por %p46, %p47
      %p49 = scmp.ne.s32.totalorder %s41, %s44
      %p50 = scmp.eq.s32.totalorder %s19, 0
      %p51 = por %p49, %p50
      %p52 = scmp.ne.s32.totalorder %s41, %s44
      %p53 = scmp.eq.s32.totalorder %s24, 3
      %p54 = por %p52, %p53
      %p55 = scmp.ne.s32.totalorder %s44, %s45
      %p56 = scmp.eq.s32.totalorder %s24, 0
      %p57 = por %p55, %p56
      %p58 = scmp.ne.s32.totalorder %s44, %s45
      %p59 = scmp.eq.s32.totalorder %s25, 3
      %p60 = por %p58, %p59
      %p62 = scmp.ne.s32.totalorder %s45, %s61
      %p63 = scmp.eq.s32.totalorder %s25, 0
      %p64 = por %p62, %p63
      %s65 = ssub.s32 %s27, %s34
      %s66 = ssub.s32 %s26, %s38
      %s67 = sor.u32 %s65, %s66
      %p68 = scmp.eq.s32.totalorder %s67, 0
      %s70 = sadd.s32 %s69, 1
      %s71 = scalar_select %p68, %s69, %s70
      %p74 = pneg %p68
      %p75 = scmp.eq.s32.totalorder %s19, 3
      %p76 = por %p74, %p75
      %p77 = scmp.ne.s32.totalorder %s69, %s72
      %p78 = scmp.eq.s32.totalorder %s19, 0
      %p79 = por %p77, %p78
      %p80 = scmp.ne.s32.totalorder %s69, %s72
      %p81 = scmp.eq.s32.totalorder %s24, 3
      %p82 = por %p80, %p81
      %p83 = scmp.ne.s32.totalorder %s72, %s73
      %p84 = scmp.eq.s32.totalorder %s24, 0
      %p85 = por %p83, %p84
      %p86 = scmp.ne.s32.totalorder %s72, %s73
      %p87 = scmp.eq.s32.totalorder %s25, 3
      %p88 = por %p86, %p87
      %p90 = scmp.ne.s32.totalorder %s73, %s89
      %p91 = scmp.eq.s32.totalorder %s25, 0
      %p92 = por %p90, %p91
      %s93 = ssub.s32 %s26, %s38
      %p94 = scmp.eq.s32.totalorder %s93, 0
      %s96 = sadd.s32 %s95, 1
      %s97 = scalar_select %p94, %s95, %s96
      %p100 = pneg %p94
      %p101 = scmp.eq.s32.totalorder %s19, 3
      %p102 = por %p100, %p101
      %p103 = scmp.ne.s32.totalorder %s95, %s98
      %p104 = scmp.eq.s32.totalorder %s19, 0
      %p105 = por %p103, %p104
      %p106 = scmp.ne.s32.totalorder %s95, %s98
      %p107 = scmp.eq.s32.totalorder %s24, 3
      %p108 = por %p106, %p107
      %p109 = scmp.ne.s32.totalorder %s98, %s99
      %p110 = scmp.eq.s32.totalorder %s24, 0
      %p111 = por %p109, %p110
      %p112 = scmp.ne.s32.totalorder %s98, %s99
      %p113 = scmp.eq.s32.totalorder %s25, 3
      %p114 = por %p112, %p113
      %p116 = scmp.ne.s32.totalorder %s99, %s115
      %p117 = scmp.eq.s32.totalorder %s25, 0
      %p118 = por %p116, %p117
      %s119 = ssub.s32 %s26, %s38
      %p120 = scmp.eq.s32.totalorder %s119, 0
      %s122 = sadd.s32 %s121, 1
      %s123 = scalar_select %p120, %s121, %s122
      %p126 = pneg %p120
      %p127 = scmp.eq.s32.totalorder %s19, 3
      %p128 = por %p126, %p127
      %p129 = scmp.ne.s32.totalorder %s121, %s124
      %p130 = scmp.eq.s32.totalorder %s19, 0
      %p131 = por %p129, %p130
      %p132 = scmp.ne.s32.totalorder %s121, %s124
      %p133 = scmp.eq.s32.totalorder %s24, 3
      %p134 = por %p132, %p133
      %p135 = scmp.ne.s32.totalorder %s124, %s125
      %p136 = scmp.eq.s32.totalorder %s24, 0
      %p137 = por %p135, %p136
      %p138 = scmp.ne.s32.totalorder %s124, %s125
      %p139 = scmp.eq.s32.totalorder %s25, 3
      %p140 = por %p138, %p139
      %p142 = scmp.ne.s32.totalorder %s125, %s141
      %p143 = scmp.eq.s32.totalorder %s25, 0
      %p144 = por %p142, %p143
      %s145 = ssub.s32 %s26, %s38
      %p146 = scmp.eq.s32.totalorder %s145, 0
      %s148 = sadd.s32 %s147, 1
      %s149 = scalar_select %p146, %s147, %s148
      %p152 = pneg %p146
      %p153 = scmp.eq.s32.totalorder %s19, 3
      %p154 = por %p152, %p153
      %p155 = scmp.ne.s32.totalorder %s147, %s150
      %p156 = scmp.eq.s32.totalorder %s19, 0
      %p157 = por %p155, %p156
      %p158 = scmp.ne.s32.totalorder %s147, %s150
      %p159 = scmp.eq.s32.totalorder %s24, 3
      %p160 = por %p158, %p159
      %p161 = scmp.ne.s32.totalorder %s150, %s151
      %p162 = scmp.eq.s32.totalorder %s24, 0
      %p163 = por %p161, %p162
      %p164 = scmp.ne.s32.totalorder %s150, %s151
      %p165 = scmp.eq.s32.totalorder %s25, 3
      %p166 = por %p164, %p165
      %p168 = scmp.ne.s32.totalorder %s151, %s167
      %p169 = scmp.eq.s32.totalorder %s25, 0
      %p170 = por %p168, %p169
      %p171 = scmp.le.s32.totalorder 1, %s19
      %p172 = scmp.lt.s32.totalorder %s19, 5
      %p173 = pnand %p171, %p172
      %p174 = pneg %p173
      // Predicated region
      $region9: #{tpu_custom_call.1} parent=5 // pred_check
        _
      $region10: #{tpu_custom_call.1} parent=5 // pred_check_branch
        %176 = sbr.rel (%p173) target = $region12
      $region11: #{tpu_custom_call.1} parent=5 // pred_region
        %s177 = ssub.s32 %s19, 1
      $region12: #{tpu_custom_call.1} parent=5 // pred_fallthru
        _
      %p178 = scmp.lt.s32.totalorder %s19, 4
      // Predicated region
      $region13: #{tpu_custom_call.1} parent=5 // pred_check
        %p179 = pneg %p178
      $region14: #{tpu_custom_call.1} parent=5 // pred_check_branch
        %181 = sbr.rel (%p179) target = $region16
      $region15: #{tpu_custom_call.1} parent=5 // pred_region
        // Predicated region
        $region17: #{tpu_custom_call.1} parent=15 // pred_check
          %p182 = pneg %p51
        $region18: #{tpu_custom_call.1} parent=15 // pred_check_branch
          %184 = sbr.rel (%p182) target = $region20
        $region19: #{tpu_custom_call.1} parent=15 // pred_region
          %s185 = sand.u32 %s41, 1
          %s186 = scalar_lea.sflag [#allocation4], %s185
          %s187 = sand.u32 %s41, 1
          %s188 = smul.addr %s187, 64
          %s189 = scalar_lea.vmem [#allocation3], %s188
          %s190 = smul.u32 32, %s27
          %s192 = ssub.s32 1024, 1024
          %193 = vsyncadd %s186, %s192
          %s194 = smul.addr %s190, 32
          %s195 = scalar_lea.hbm %s0, %s194
          %s197 = sshll.u32 %s189, 4
          %s198 = int_to_ptr.vmem [resolvable:$true] %s197
          %200 = dma.hbm_to_vmem [thread:$0]  %s195, 1024, %s198, %s186
        $region20: #{tpu_custom_call.1} parent=15 // pred_fallthru
          _
        // Predicated region
        $region21: #{tpu_custom_call.1} parent=15 // pred_check
          %p201 = pneg %p79
        $region22: #{tpu_custom_call.1} parent=15 // pred_check_branch
          %203 = sbr.rel (%p201) target = $region24
        $region23: #{tpu_custom_call.1} parent=15 // pred_region
          %s204 = sand.u32 %s19, 1
          %s205 = scalar_lea.sflag [#allocation7], %s204
          %s206 = sand.u32 %s69, 1
          %s207 = smul.addr %s206, 4096
          %s208 = scalar_lea.vmem [#allocation6], %s207
          %s209 = smul.u32 512, %s27
          %s210 = smul.u32 2, %s26
          %s212 = ssub.s32 65536, 65536
          %213 = vsyncadd %s205, %s212
          %s214 = smul.addr %s209, 4
          %s215 = sadd.s32 %s210, %s214
          %s216 = smul.addr %s215, 64
          %s217 = scalar_lea.hbm %s1, %s216
          %s218 = sshll.u32 %s208, 4
          %s219 = int_to_ptr.vmem [resolvable:$true] %s218
          %224 = dma.hbm_to_vmem [thread:$0]  %s217, 65536, %s219, %s205, 256, 128, 8
        $region24: #{tpu_custom_call.1} parent=15 // pred_fallthru
          _
        // Predicated region
        $region25: #{tpu_custom_call.1} parent=15 // pred_check
          %p225 = pneg %p105
        $region26: #{tpu_custom_call.1} parent=15 // pred_check_branch
          %227 = sbr.rel (%p225) target = $region28
        $region27: #{tpu_custom_call.1} parent=15 // pred_region
          %s228 = sand.u32 %s19, 1
          %s229 = scalar_lea.sflag [#allocation7], %s228
          %s230 = sand.u32 %s95, 1
          %s231 = smul.addr %s230, 2
          %s232 = scalar_lea.vmem [#allocation8], %s231
          %s233 = smul.u32 2, %s26
          %s235 = ssub.s32 32, 32
          %236 = vsyncadd %s229, %s235
          %s237 = smul.addr %s233, 16
          %s238 = scalar_lea.hbm %s2, %s237
          %s240 = sshll.u32 %s232, 4
          %s241 = int_to_ptr.vmem [resolvable:$true] %s240
          %243 = dma.hbm_to_vmem [thread:$0]  %s238, 32, %s241, %s229
        $region28: #{tpu_custom_call.1} parent=15 // pred_fallthru
          _
        // Predicated region
        $region29: #{tpu_custom_call.1} parent=15 // pred_check
          %p244 = pneg %p131
        $region30: #{tpu_custom_call.1} parent=15 // pred_check_branch
          %246 = sbr.rel (%p244) target = $region32
        $region31: #{tpu_custom_call.1} parent=15 // pred_region
          %s247 = smul.u32 32, %s26
          %p248 = scmp.lt.s32.totalorder %s247, 63
          %s249 = scalar_select %p248, %s247, 63
          %s250 = smul.addr %s249, 4
          %s251 = scalar_lea.vmem %s3, %s250
          %s252 = smul.u32 32, %s26
        $region32: #{tpu_custom_call.1} parent=15 // pred_fallthru
          _
      $region16: #{tpu_custom_call.1} parent=5 // pred_fallthru
        _
      %p253 = scmp.le.s32.totalorder 1, %s19
      %p254 = scmp.lt.s32.totalorder %s19, 5
      %p255 = pnand %p253, %p254
      %p256 = pneg %p255
      // Predicated region
      $region33: #{tpu_custom_call.1} parent=5 // pred_check
        _
      $region34: #{tpu_custom_call.1} parent=5 // pred_check_branch
        %258 = sbr.rel (%p255) target = $region36
      $region35: #{tpu_custom_call.1} parent=5 // pred_region
        %s259 = ssub.s32 %s19, 1
        %s260 = sand.u32 %s44, 1
        %s261 = scalar_lea.sflag [#allocation4], %s260
        %s262 = sand.u32 %s44, 1
        %s263 = smul.addr %s262, 64
        %s264 = scalar_lea.vmem [#allocation3], %s263
        // Predicated region
        $region37: #{tpu_custom_call.1} parent=35 // pred_check
          %p265 = pneg %p57
        $region38: #{tpu_custom_call.1} parent=35 // pred_check_branch
          %267 = sbr.rel (%p265) target = $region40
        $region39: #{tpu_custom_call.1} parent=35 // pred_region
          %268 = dma.done %s261, 1024
        $region40: #{tpu_custom_call.1} parent=35 // pred_fallthru
          _
        %s269 = sand.u32 %s24, 1
        %s270 = scalar_lea.sflag [#allocation7], %s269
        %s271 = sand.u32 %s72, 1
        %s272 = smul.addr %s271, 4096
        %s273 = scalar_lea.vmem [#allocation6], %s272
        // Predicated region
        $region41: #{tpu_custom_call.1} parent=35 // pred_check
          %p274 = pneg %p85
        $region42: #{tpu_custom_call.1} parent=35 // pred_check_branch
          %276 = sbr.rel (%p274) target = $region44
        $region43: #{tpu_custom_call.1} parent=35 // pred_region
          %277 = dma.done %s270, 65536
        $region44: #{tpu_custom_call.1} parent=35 // pred_fallthru
          _
        %s278 = sand.u32 %s24, 1
        %s279 = scalar_lea.sflag [#allocation7], %s278
        %s280 = sand.u32 %s98, 1
        %s281 = smul.addr %s280, 2
        %s282 = scalar_lea.vmem [#allocation8], %s281
        // Predicated region
        $region45: #{tpu_custom_call.1} parent=35 // pred_check
          %p283 = pneg %p111
        $region46: #{tpu_custom_call.1} parent=35 // pred_check_branch
          %285 = sbr.rel (%p283) target = $region48
        $region47: #{tpu_custom_call.1} parent=35 // pred_region
          %286 = dma.done %s279, 32
        $region48: #{tpu_custom_call.1} parent=35 // pred_fallthru
          _
        %s287 = sand.u32 %s44, 1
        %s288 = scalar_lea.sflag [#allocation4], %s287
        %s289 = sand.u32 %s44, 1
        %s290 = smul.addr %s289, 64
        %s291 = scalar_lea.vmem [#allocation3], %s290
        %p292 = pneg %p57
        %p293 = pneg %p54
        %s294 = sand.u32 %s24, 1
        %s295 = scalar_lea.sflag [#allocation7], %s294
        %s296 = sand.u32 %s72, 1
        %s297 = smul.addr %s296, 4096
        %s298 = scalar_lea.vmem [#allocation6], %s297
        %p299 = pneg %p85
        %p300 = pneg %p82
        %s301 = sand.u32 %s24, 1
        %s302 = scalar_lea.sflag [#allocation7], %s301
        %s303 = sand.u32 %s98, 1
        %s304 = smul.addr %s303, 2
        %s305 = scalar_lea.vmem [#allocation8], %s304
        %p306 = pneg %p111
        %p307 = pneg %p108
        %s308 = smul.u32 32, %s28
        %p309 = scmp.lt.s32.totalorder %s308, 63
        %s310 = scalar_select %p309, %s308, 63
        %s311 = smul.addr %s310, 4
        %s312 = scalar_lea.vmem %s3, %s311
        %p313 = pneg %p137
        %p314 = pneg %p134
        %p315 = pneg %p163
        %p316 = pneg %p160
        %s317 = sand.u32 %s150, 1
        %s318 = scalar_lea.sflag [#allocation5], %s317
        %s319 = sand.u32 %s150, 1
        %s320 = smul.addr %s319, 2
        %s321 = scalar_lea.vmem [#allocation9], %s320
        %s322 = smul.u32 32, %s29
        %s323 = smul.u32 512, %s29
        %s324 = smul.u32 2, %s28
        %s325 = smul.u32 2, %s28
        %s326 = smul.u32 32, %s28
        %p327 = scmp.lt.s32.totalorder %s326, 63
        %s328 = scalar_select %p327, %s326, 63
        %s329 = smul.addr %s328, 4
        %s330 = scalar_lea.vmem %s3, %s329
        %s331 = smul.u32 32, %s28
        %p332 = scmp.eq.s32.totalorder %s29, 0
        // Predicated region
        $region49: #{tpu_custom_call.1} parent=35 // pred_check
          %p333 = pneg %p332
        $region50: #{tpu_custom_call.1} parent=35 // pred_check_branch
          %335 = sbr.rel (%p333) target = $region52
        $region51: #{tpu_custom_call.1} parent=35 // pred_region
          %336 = vst [vmem:[#allocation2] sm:$0xf] 0.0
        $region52: #{tpu_custom_call.1} parent=35 // pred_fallthru
          _
        %v337 = vld [vmem:[#allocation2] sm:$0xf]
        %v338 = vld [vmem:[%s264] sm:$0xff]
        %v339 = vld [vmem:[%s264 + $0x8] sm:$0xff]
        %v340 = vld [vmem:[%s264 + $0x10] sm:$0xff]
        %v341 = vld [vmem:[%s264 + $0x18] sm:$0xff]
        %v342 = vld [vmem:[%s264 + $0x20] sm:$0xff]
        %v343 = vld [vmem:[%s264 + $0x28] sm:$0xff]
        %v344 = vld [vmem:[%s264 + $0x30] sm:$0xff]
        %v345 = vld [vmem:[%s264 + $0x38] sm:$0xff]
        %v346 = vld [vmem:[%s273] sm:$0xff]
        %v347 = vld [vmem:[%s273 + $0x8] sm:$0xff]
        %v348 = vld [vmem:[%s273 + $0x10] sm:$0xff]
        %v349 = vld [vmem:[%s273 + $0x18] sm:$0xff]
        %v350 = vld [vmem:[%s273 + $0x20] sm:$0xff]
        %v351 = vld [vmem:[%s273 + $0x28] sm:$0xff]
        %v352 = vld [vmem:[%s273 + $0x30] sm:$0xff]
        %v353 = vld [vmem:[%s273 + $0x38] sm:$0xff]
        %v354 = vld [vmem:[%s273 + $0x40] sm:$0xff]
        %v355 = vld [vmem:[%s273 + $0x48] sm:$0xff]
        %v356 = vld [vmem:[%s273 + $0x50] sm:$0xff]
        %v357 = vld [vmem:[%s273 + $0x58] sm:$0xff]
        %v358 = vld [vmem:[%s273 + $0x60] sm:$0xff]
        %v359 = vld [vmem:[%s273 + $0x68] sm:$0xff]
        %v360 = vld [vmem:[%s273 + $0x70] sm:$0xff]
        %v361 = vld [vmem:[%s273 + $0x78] sm:$0xff]
        %v362 = vld [vmem:[%s273 + $0x80] sm:$0xff]
        %v363 = vld [vmem:[%s273 + $0x88] sm:$0xff]
        %v364 = vld [vmem:[%s273 + $0x90] sm:$0xff]
        %v365 = vld [vmem:[%s273 + $0x98] sm:$0xff]
        %v366 = vld [vmem:[%s273 + $0xa0] sm:$0xff]
        %v367 = vld [vmem:[%s273 + $0xa8] sm:$0xff]
        %v368 = vld [vmem:[%s273 + $0xb0] sm:$0xff]
        %v369 = vld [vmem:[%s273 + $0xb8] sm:$0xff]
        %v370 = vld [vmem:[%s273 + $0xc0] sm:$0xff]
        %v371 = vld [vmem:[%s273 + $0xc8] sm:$0xff]
        %v372 = vld [vmem:[%s273 + $0xd0] sm:$0xff]
        %v373 = vld [vmem:[%s273 + $0xd8] sm:$0xff]
        %v374 = vld [vmem:[%s273 + $0xe0] sm:$0xff]
        %v375 = vld [vmem:[%s273 + $0xe8] sm:$0xff]
        %v376 = vld [vmem:[%s273 + $0xf0] sm:$0xff]
        %v377 = vld [vmem:[%s273 + $0xf8] sm:$0xff]
        %v378 = vld [vmem:[%s273 + $0x100] sm:$0xff]
        %v379 = vld [vmem:[%s273 + $0x108] sm:$0xff]
        %v380 = vld [vmem:[%s273 + $0x110] sm:$0xff]
        %v381 = vld [vmem:[%s273 + $0x118] sm:$0xff]
        %v382 = vld [vmem:[%s273 + $0x120] sm:$0xff]
        %v383 = vld [vmem:[%s273 + $0x128] sm:$0xff]
        %v384 = vld [vmem:[%s273 + $0x130] sm:$0xff]
        %v385 = vld [vmem:[%s273 + $0x138] sm:$0xff]
        %v386 = vld [vmem:[%s273 + $0x140] sm:$0xff]
        %v387 = vld [vmem:[%s273 + $0x148] sm:$0xff]
        %v388 = vld [vmem:[%s273 + $0x150] sm:$0xff]
        %v389 = vld [vmem:[%s273 + $0x158] sm:$0xff]
        %v390 = vld [vmem:[%s273 + $0x160] sm:$0xff]
        %v391 = vld [vmem:[%s273 + $0x168] sm:$0xff]
        %v392 = vld [vmem:[%s273 + $0x170] sm:$0xff]
        %v393 = vld [vmem:[%s273 + $0x178] sm:$0xff]
        %v394 = vld [vmem:[%s273 + $0x180] sm:$0xff]
        %v395 = vld [vmem:[%s273 + $0x188] sm:$0xff]
        %v396 = vld [vmem:[%s273 + $0x190] sm:$0xff]
        %v397 = vld [vmem:[%s273 + $0x198] sm:$0xff]
        %v398 = vld [vmem:[%s273 + $0x1a0] sm:$0xff]
        %v399 = vld [vmem:[%s273 + $0x1a8] sm:$0xff]
        %v400 = vld [vmem:[%s273 + $0x1b0] sm:$0xff]
        %v401 = vld [vmem:[%s273 + $0x1b8] sm:$0xff]
        %v402 = vld [vmem:[%s273 + $0x1c0] sm:$0xff]
        %v403 = vld [vmem:[%s273 + $0x1c8] sm:$0xff]
        %v404 = vld [vmem:[%s273 + $0x1d0] sm:$0xff]
        %v405 = vld [vmem:[%s273 + $0x1d8] sm:$0xff]
        %v406 = vld [vmem:[%s273 + $0x1e0] sm:$0xff]
        %v407 = vld [vmem:[%s273 + $0x1e8] sm:$0xff]
        %v408 = vld [vmem:[%s273 + $0x1f0] sm:$0xff]
        %v409 = vld [vmem:[%s273 + $0x1f8] sm:$0xff]
        %v410 = vld [vmem:[%s273 + $0x200] sm:$0xff]
        %v411 = vld [vmem:[%s273 + $0x208] sm:$0xff]
        %v412 = vld [vmem:[%s273 + $0x210] sm:$0xff]
        %v413 = vld [vmem:[%s273 + $0x218] sm:$0xff]
        %v414 = vld [vmem:[%s273 + $0x220] sm:$0xff]
        %v415 = vld [vmem:[%s273 + $0x228] sm:$0xff]
        %v416 = vld [vmem:[%s273 + $0x230] sm:$0xff]
        %v417 = vld [vmem:[%s273 + $0x238] sm:$0xff]
        %v418 = vld [vmem:[%s273 + $0x240] sm:$0xff]
        %v419 = vld [vmem:[%s273 + $0x248] sm:$0xff]
        %v420 = vld [vmem:[%s273 + $0x250] sm:$0xff]
        %v421 = vld [vmem:[%s273 + $0x258] sm:$0xff]
        %v422 = vld [vmem:[%s273 + $0x260] sm:$0xff]
        %v423 = vld [vmem:[%s273 + $0x268] sm:$0xff]
        %v424 = vld [vmem:[%s273 + $0x270] sm:$0xff]
        %v425 = vld [vmem:[%s273 + $0x278] sm:$0xff]
        %v426 = vld [vmem:[%s273 + $0x280] sm:$0xff]
        %v427 = vld [vmem:[%s273 + $0x288] sm:$0xff]
        %v428 = vld [vmem:[%s273 + $0x290] sm:$0xff]
        %v429 = vld [vmem:[%s273 + $0x298] sm:$0xff]
        %v430 = vld [vmem:[%s273 + $0x2a0] sm:$0xff]
        %v431 = vld [vmem:[%s273 + $0x2a8] sm:$0xff]
        %v432 = vld [vmem:[%s273 + $0x2b0] sm:$0xff]
        %v433 = vld [vmem:[%s273 + $0x2b8] sm:$0xff]
        %v434 = vld [vmem:[%s273 + $0x2c0] sm:$0xff]
        %v435 = vld [vmem:[%s273 + $0x2c8] sm:$0xff]
        %v436 = vld [vmem:[%s273 + $0x2d0] sm:$0xff]
        %v437 = vld [vmem:[%s273 + $0x2d8] sm:$0xff]
        %v438 = vld [vmem:[%s273 + $0x2e0] sm:$0xff]
        %v439 = vld [vmem:[%s273 + $0x2e8] sm:$0xff]
        %v440 = vld [vmem:[%s273 + $0x2f0] sm:$0xff]
        %v441 = vld [vmem:[%s273 + $0x2f8] sm:$0xff]
        %v442 = vld [vmem:[%s273 + $0x300] sm:$0xff]
        %v443 = vld [vmem:[%s273 + $0x308] sm:$0xff]
        %v444 = vld [vmem:[%s273 + $0x310] sm:$0xff]
        %v445 = vld [vmem:[%s273 + $0x318] sm:$0xff]
        %v446 = vld [vmem:[%s273 + $0x320] sm:$0xff]
        %v447 = vld [vmem:[%s273 + $0x328] sm:$0xff]
        %v448 = vld [vmem:[%s273 + $0x330] sm:$0xff]
        %v449 = vld [vmem:[%s273 + $0x338] sm:$0xff]
        %v450 = vld [vmem:[%s273 + $0x340] sm:$0xff]
        %v451 = vld [vmem:[%s273 + $0x348] sm:$0xff]
        %v452 = vld [vmem:[%s273 + $0x350] sm:$0xff]
        %v453 = vld [vmem:[%s273 + $0x358] sm:$0xff]
        %v454 = vld [vmem:[%s273 + $0x360] sm:$0xff]
        %v455 = vld [vmem:[%s273 + $0x368] sm:$0xff]
        %v456 = vld [vmem:[%s273 + $0x370] sm:$0xff]
        %v457 = vld [vmem:[%s273 + $0x378] sm:$0xff]
        %v458 = vld [vmem:[%s273 + $0x380] sm:$0xff]
        %v459 = vld [vmem:[%s273 + $0x388] sm:$0xff]
        %v460 = vld [vmem:[%s273 + $0x390] sm:$0xff]
        %v461 = vld [vmem:[%s273 + $0x398] sm:$0xff]
        %v462 = vld [vmem:[%s273 + $0x3a0] sm:$0xff]
        %v463 = vld [vmem:[%s273 + $0x3a8] sm:$0xff]
        %v464 = vld [vmem:[%s273 + $0x3b0] sm:$0xff]
        %v465 = vld [vmem:[%s273 + $0x3b8] sm:$0xff]
        %v466 = vld [vmem:[%s273 + $0x3c0] sm:$0xff]
        %v467 = vld [vmem:[%s273 + $0x3c8] sm:$0xff]
        %v468 = vld [vmem:[%s273 + $0x3d0] sm:$0xff]
        %v469 = vld [vmem:[%s273 + $0x3d8] sm:$0xff]
        %v470 = vld [vmem:[%s273 + $0x3e0] sm:$0xff]
        %v471 = vld [vmem:[%s273 + $0x3e8] sm:$0xff]
        %v472 = vld [vmem:[%s273 + $0x3f0] sm:$0xff]
        %v473 = vld [vmem:[%s273 + $0x3f8] sm:$0xff]
        %v474 = vld [vmem:[%s273 + $0x400] sm:$0xff]
        %v475 = vld [vmem:[%s273 + $0x408] sm:$0xff]
        %v476 = vld [vmem:[%s273 + $0x410] sm:$0xff]
        %v477 = vld [vmem:[%s273 + $0x418] sm:$0xff]
        %v478 = vld [vmem:[%s273 + $0x420] sm:$0xff]
        %v479 = vld [vmem:[%s273 + $0x428] sm:$0xff]
        %v480 = vld [vmem:[%s273 + $0x430] sm:$0xff]
        %v481 = vld [vmem:[%s273 + $0x438] sm:$0xff]
        %v482 = vld [vmem:[%s273 + $0x440] sm:$0xff]
        %v483 = vld [vmem:[%s273 + $0x448] sm:$0xff]
        %v484 = vld [vmem:[%s273 + $0x450] sm:$0xff]
        %v485 = vld [vmem:[%s273 + $0x458] sm:$0xff]
        %v486 = vld [vmem:[%s273 + $0x460] sm:$0xff]
        %v487 = vld [vmem:[%s273 + $0x468] sm:$0xff]
        %v488 = vld [vmem:[%s273 + $0x470] sm:$0xff]
        %v489 = vld [vmem:[%s273 + $0x478] sm:$0xff]
        %v490 = vld [vmem:[%s273 + $0x480] sm:$0xff]
        %v491 = vld [vmem:[%s273 + $0x488] sm:$0xff]
        %v492 = vld [vmem:[%s273 + $0x490] sm:$0xff]
        %v493 = vld [vmem:[%s273 + $0x498] sm:$0xff]
        %v494 = vld [vmem:[%s273 + $0x4a0] sm:$0xff]
        %v495 = vld [vmem:[%s273 + $0x4a8] sm:$0xff]
        %v496 = vld [vmem:[%s273 + $0x4b0] sm:$0xff]
        %v497 = vld [vmem:[%s273 + $0x4b8] sm:$0xff]
        %v498 = vld [vmem:[%s273 + $0x4c0] sm:$0xff]
        %v499 = vld [vmem:[%s273 + $0x4c8] sm:$0xff]
        %v500 = vld [vmem:[%s273 + $0x4d0] sm:$0xff]
        %v501 = vld [vmem:[%s273 + $0x4d8] sm:$0xff]
        %v502 = vld [vmem:[%s273 + $0x4e0] sm:$0xff]
        %v503 = vld [vmem:[%s273 + $0x4e8] sm:$0xff]
        %v504 = vld [vmem:[%s273 + $0x4f0] sm:$0xff]
        %v505 = vld [vmem:[%s273 + $0x4f8] sm:$0xff]
        %v506 = vld [vmem:[%s273 + $0x500] sm:$0xff]
        %v507 = vld [vmem:[%s273 + $0x508] sm:$0xff]
        %v508 = vld [vmem:[%s273 + $0x510] sm:$0xff]
        %v509 = vld [vmem:[%s273 + $0x518] sm:$0xff]
        %v510 = vld [vmem:[%s273 + $0x520] sm:$0xff]
        %v511 = vld [vmem:[%s273 + $0x528] sm:$0xff]
        %v512 = vld [vmem:[%s273 + $0x530] sm:$0xff]
        %v513 = vld [vmem:[%s273 + $0x538] sm:$0xff]
        %v514 = vld [vmem:[%s273 + $0x540] sm:$0xff]
        %v515 = vld [vmem:[%s273 + $0x548] sm:$0xff]
        %v516 = vld [vmem:[%s273 + $0x550] sm:$0xff]
        %v517 = vld [vmem:[%s273 + $0x558] sm:$0xff]
        %v518 = vld [vmem:[%s273 + $0x560] sm:$0xff]
        %v519 = vld [vmem:[%s273 + $0x568] sm:$0xff]
        %v520 = vld [vmem:[%s273 + $0x570] sm:$0xff]
        %v521 = vld [vmem:[%s273 + $0x578] sm:$0xff]
        %v522 = vld [vmem:[%s273 + $0x580] sm:$0xff]
        %v523 = vld [vmem:[%s273 + $0x588] sm:$0xff]
        %v524 = vld [vmem:[%s273 + $0x590] sm:$0xff]
        %v525 = vld [vmem:[%s273 + $0x598] sm:$0xff]
        %v526 = vld [vmem:[%s273 + $0x5a0] sm:$0xff]
        %v527 = vld [vmem:[%s273 + $0x5a8] sm:$0xff]
        %v528 = vld [vmem:[%s273 + $0x5b0] sm:$0xff]
        %v529 = vld [vmem:[%s273 + $0x5b8] sm:$0xff]
        %v530 = vld [vmem:[%s273 + $0x5c0] sm:$0xff]
        %v531 = vld [vmem:[%s273 + $0x5c8] sm:$0xff]
        %v532 = vld [vmem:[%s273 + $0x5d0] sm:$0xff]
        %v533 = vld [vmem:[%s273 + $0x5d8] sm:$0xff]
        %v534 = vld [vmem:[%s273 + $0x5e0] sm:$0xff]
        %v535 = vld [vmem:[%s273 + $0x5e8] sm:$0xff]
        %v536 = vld [vmem:[%s273 + $0x5f0] sm:$0xff]
        %v537 = vld [vmem:[%s273 + $0x5f8] sm:$0xff]
        %v538 = vld [vmem:[%s273 + $0x600] sm:$0xff]
        %v539 = vld [vmem:[%s273 + $0x608] sm:$0xff]
        %v540 = vld [vmem:[%s273 + $0x610] sm:$0xff]
        %v541 = vld [vmem:[%s273 + $0x618] sm:$0xff]
        %v542 = vld [vmem:[%s273 + $0x620] sm:$0xff]
        %v543 = vld [vmem:[%s273 + $0x628] sm:$0xff]
        %v544 = vld [vmem:[%s273 + $0x630] sm:$0xff]
        %v545 = vld [vmem:[%s273 + $0x638] sm:$0xff]
        %v546 = vld [vmem:[%s273 + $0x640] sm:$0xff]
        %v547 = vld [vmem:[%s273 + $0x648] sm:$0xff]
        %v548 = vld [vmem:[%s273 + $0x650] sm:$0xff]
        %v549 = vld [vmem:[%s273 + $0x658] sm:$0xff]
        %v550 = vld [vmem:[%s273 + $0x660] sm:$0xff]
        %v551 = vld [vmem:[%s273 + $0x668] sm:$0xff]
        %v552 = vld [vmem:[%s273 + $0x670] sm:$0xff]
        %v553 = vld [vmem:[%s273 + $0x678] sm:$0xff]
        %v554 = vld [vmem:[%s273 + $0x680] sm:$0xff]
        %v555 = vld [vmem:[%s273 + $0x688] sm:$0xff]
        %v556 = vld [vmem:[%s273 + $0x690] sm:$0xff]
        %v557 = vld [vmem:[%s273 + $0x698] sm:$0xff]
        %v558 = vld [vmem:[%s273 + $0x6a0] sm:$0xff]
        %v559 = vld [vmem:[%s273 + $0x6a8] sm:$0xff]
        %v560 = vld [vmem:[%s273 + $0x6b0] sm:$0xff]
        %v561 = vld [vmem:[%s273 + $0x6b8] sm:$0xff]
        %v562 = vld [vmem:[%s273 + $0x6c0] sm:$0xff]
        %v563 = vld [vmem:[%s273 + $0x6c8] sm:$0xff]
        %v564 = vld [vmem:[%s273 + $0x6d0] sm:$0xff]
        %v565 = vld [vmem:[%s273 + $0x6d8] sm:$0xff]
        %v566 = vld [vmem:[%s273 + $0x6e0] sm:$0xff]
        %v567 = vld [vmem:[%s273 + $0x6e8] sm:$0xff]
        %v568 = vld [vmem:[%s273 + $0x6f0] sm:$0xff]
        %v569 = vld [vmem:[%s273 + $0x6f8] sm:$0xff]
        %v570 = vld [vmem:[%s273 + $0x700] sm:$0xff]
        %v571 = vld [vmem:[%s273 + $0x708] sm:$0xff]
        %v572 = vld [vmem:[%s273 + $0x710] sm:$0xff]
        %v573 = vld [vmem:[%s273 + $0x718] sm:$0xff]
        %v574 = vld [vmem:[%s273 + $0x720] sm:$0xff]
        %v575 = vld [vmem:[%s273 + $0x728] sm:$0xff]
        %v576 = vld [vmem:[%s273 + $0x730] sm:$0xff]
        %v577 = vld [vmem:[%s273 + $0x738] sm:$0xff]
        %v578 = vld [vmem:[%s273 + $0x740] sm:$0xff]
        %v579 = vld [vmem:[%s273 + $0x748] sm:$0xff]
        %v580 = vld [vmem:[%s273 + $0x750] sm:$0xff]
        %v581 = vld [vmem:[%s273 + $0x758] sm:$0xff]
        %v582 = vld [vmem:[%s273 + $0x760] sm:$0xff]
        %v583 = vld [vmem:[%s273 + $0x768] sm:$0xff]
        %v584 = vld [vmem:[%s273 + $0x770] sm:$0xff]
        %v585 = vld [vmem:[%s273 + $0x778] sm:$0xff]
        %v586 = vld [vmem:[%s273 + $0x780] sm:$0xff]
        %v587 = vld [vmem:[%s273 + $0x788] sm:$0xff]
        %v588 = vld [vmem:[%s273 + $0x790] sm:$0xff]
        %v589 = vld [vmem:[%s273 + $0x798] sm:$0xff]
        %v590 = vld [vmem:[%s273 + $0x7a0] sm:$0xff]
        %v591 = vld [vmem:[%s273 + $0x7a8] sm:$0xff]
        %v592 = vld [vmem:[%s273 + $0x7b0] sm:$0xff]
        %v593 = vld [vmem:[%s273 + $0x7b8] sm:$0xff]
        %v594 = vld [vmem:[%s273 + $0x7c0] sm:$0xff]
        %v595 = vld [vmem:[%s273 + $0x7c8] sm:$0xff]
        %v596 = vld [vmem:[%s273 + $0x7d0] sm:$0xff]
        %v597 = vld [vmem:[%s273 + $0x7d8] sm:$0xff]
        %v598 = vld [vmem:[%s273 + $0x7e0] sm:$0xff]
        %v599 = vld [vmem:[%s273 + $0x7e8] sm:$0xff]
        %v600 = vld [vmem:[%s273 + $0x7f0] sm:$0xff]
        %v601 = vld [vmem:[%s273 + $0x7f8] sm:$0xff]
        %v602 = vld [vmem:[%s273 + $0x800] sm:$0xff]
        %v603 = vld [vmem:[%s273 + $0x808] sm:$0xff]
        %v604 = vld [vmem:[%s273 + $0x810] sm:$0xff]
        %v605 = vld [vmem:[%s273 + $0x818] sm:$0xff]
        %v606 = vld [vmem:[%s273 + $0x820] sm:$0xff]
        %v607 = vld [vmem:[%s273 + $0x828] sm:$0xff]
        %v608 = vld [vmem:[%s273 + $0x830] sm:$0xff]
        %v609 = vld [vmem:[%s273 + $0x838] sm:$0xff]
        %v610 = vld [vmem:[%s273 + $0x840] sm:$0xff]
        %v611 = vld [vmem:[%s273 + $0x848] sm:$0xff]
        %v612 = vld [vmem:[%s273 + $0x850] sm:$0xff]
        %v613 = vld [vmem:[%s273 + $0x858] sm:$0xff]
        %v614 = vld [vmem:[%s273 + $0x860] sm:$0xff]
        %v615 = vld [vmem:[%s273 + $0x868] sm:$0xff]
        %v616 = vld [vmem:[%s273 + $0x870] sm:$0xff]
        %v617 = vld [vmem:[%s273 + $0x878] sm:$0xff]
        %v618 = vld [vmem:[%s273 + $0x880] sm:$0xff]
        %v619 = vld [vmem:[%s273 + $0x888] sm:$0xff]
        %v620 = vld [vmem:[%s273 + $0x890] sm:$0xff]
        %v621 = vld [vmem:[%s273 + $0x898] sm:$0xff]
        %v622 = vld [vmem:[%s273 + $0x8a0] sm:$0xff]
        %v623 = vld [vmem:[%s273 + $0x8a8] sm:$0xff]
        %v624 = vld [vmem:[%s273 + $0x8b0] sm:$0xff]
        %v625 = vld [vmem:[%s273 + $0x8b8] sm:$0xff]
        %v626 = vld [vmem:[%s273 + $0x8c0] sm:$0xff]
        %v627 = vld [vmem:[%s273 + $0x8c8] sm:$0xff]
        %v628 = vld [vmem:[%s273 + $0x8d0] sm:$0xff]
        %v629 = vld [vmem:[%s273 + $0x8d8] sm:$0xff]
        %v630 = vld [vmem:[%s273 + $0x8e0] sm:$0xff]
        %v631 = vld [vmem:[%s273 + $0x8e8] sm:$0xff]
        %v632 = vld [vmem:[%s273 + $0x8f0] sm:$0xff]
        %v633 = vld [vmem:[%s273 + $0x8f8] sm:$0xff]
        %v634 = vld [vmem:[%s273 + $0x900] sm:$0xff]
        %v635 = vld [vmem:[%s273 + $0x908] sm:$0xff]
        %v636 = vld [vmem:[%s273 + $0x910] sm:$0xff]
        %v637 = vld [vmem:[%s273 + $0x918] sm:$0xff]
        %v638 = vld [vmem:[%s273 + $0x920] sm:$0xff]
        %v639 = vld [vmem:[%s273 + $0x928] sm:$0xff]
        %v640 = vld [vmem:[%s273 + $0x930] sm:$0xff]
        %v641 = vld [vmem:[%s273 + $0x938] sm:$0xff]
        %v642 = vld [vmem:[%s273 + $0x940] sm:$0xff]
        %v643 = vld [vmem:[%s273 + $0x948] sm:$0xff]
        %v644 = vld [vmem:[%s273 + $0x950] sm:$0xff]
        %v645 = vld [vmem:[%s273 + $0x958] sm:$0xff]
        %v646 = vld [vmem:[%s273 + $0x960] sm:$0xff]
        %v647 = vld [vmem:[%s273 + $0x968] sm:$0xff]
        %v648 = vld [vmem:[%s273 + $0x970] sm:$0xff]
        %v649 = vld [vmem:[%s273 + $0x978] sm:$0xff]
        %v650 = vld [vmem:[%s273 + $0x980] sm:$0xff]
        %v651 = vld [vmem:[%s273 + $0x988] sm:$0xff]
        %v652 = vld [vmem:[%s273 + $0x990] sm:$0xff]
        %v653 = vld [vmem:[%s273 + $0x998] sm:$0xff]
        %v654 = vld [vmem:[%s273 + $0x9a0] sm:$0xff]
        %v655 = vld [vmem:[%s273 + $0x9a8] sm:$0xff]
        %v656 = vld [vmem:[%s273 + $0x9b0] sm:$0xff]
        %v657 = vld [vmem:[%s273 + $0x9b8] sm:$0xff]
        %v658 = vld [vmem:[%s273 + $0x9c0] sm:$0xff]
        %v659 = vld [vmem:[%s273 + $0x9c8] sm:$0xff]
        %v660 = vld [vmem:[%s273 + $0x9d0] sm:$0xff]
        %v661 = vld [vmem:[%s273 + $0x9d8] sm:$0xff]
        %v662 = vld [vmem:[%s273 + $0x9e0] sm:$0xff]
        %v663 = vld [vmem:[%s273 + $0x9e8] sm:$0xff]
        %v664 = vld [vmem:[%s273 + $0x9f0] sm:$0xff]
        %v665 = vld [vmem:[%s273 + $0x9f8] sm:$0xff]
        %v666 = vld [vmem:[%s273 + $0xa00] sm:$0xff]
        %v667 = vld [vmem:[%s273 + $0xa08] sm:$0xff]
        %v668 = vld [vmem:[%s273 + $0xa10] sm:$0xff]
        %v669 = vld [vmem:[%s273 + $0xa18] sm:$0xff]
        %v670 = vld [vmem:[%s273 + $0xa20] sm:$0xff]
        %v671 = vld [vmem:[%s273 + $0xa28] sm:$0xff]
        %v672 = vld [vmem:[%s273 + $0xa30] sm:$0xff]
        %v673 = vld [vmem:[%s273 + $0xa38] sm:$0xff]
        %v674 = vld [vmem:[%s273 + $0xa40] sm:$0xff]
        %v675 = vld [vmem:[%s273 + $0xa48] sm:$0xff]
        %v676 = vld [vmem:[%s273 + $0xa50] sm:$0xff]
        %v677 = vld [vmem:[%s273 + $0xa58] sm:$0xff]
        %v678 = vld [vmem:[%s273 + $0xa60] sm:$0xff]
        %v679 = vld [vmem:[%s273 + $0xa68] sm:$0xff]
        %v680 = vld [vmem:[%s273 + $0xa70] sm:$0xff]
        %v681 = vld [vmem:[%s273 + $0xa78] sm:$0xff]
        %v682 = vld [vmem:[%s273 + $0xa80] sm:$0xff]
        %v683 = vld [vmem:[%s273 + $0xa88] sm:$0xff]
        %v684 = vld [vmem:[%s273 + $0xa90] sm:$0xff]
        %v685 = vld [vmem:[%s273 + $0xa98] sm:$0xff]
        %v686 = vld [vmem:[%s273 + $0xaa0] sm:$0xff]
        %v687 = vld [vmem:[%s273 + $0xaa8] sm:$0xff]
        %v688 = vld [vmem:[%s273 + $0xab0] sm:$0xff]
        %v689 = vld [vmem:[%s273 + $0xab8] sm:$0xff]
        %v690 = vld [vmem:[%s273 + $0xac0] sm:$0xff]
        %v691 = vld [vmem:[%s273 + $0xac8] sm:$0xff]
        %v692 = vld [vmem:[%s273 + $0xad0] sm:$0xff]
        %v693 = vld [vmem:[%s273 + $0xad8] sm:$0xff]
        %v694 = vld [vmem:[%s273 + $0xae0] sm:$0xff]
        %v695 = vld [vmem:[%s273 + $0xae8] sm:$0xff]
        %v696 = vld [vmem:[%s273 + $0xaf0] sm:$0xff]
        %v697 = vld [vmem:[%s273 + $0xaf8] sm:$0xff]
        %v698 = vld [vmem:[%s273 + $0xb00] sm:$0xff]
        %v699 = vld [vmem:[%s273 + $0xb08] sm:$0xff]
        %v700 = vld [vmem:[%s273 + $0xb10] sm:$0xff]
        %v701 = vld [vmem:[%s273 + $0xb18] sm:$0xff]
        %v702 = vld [vmem:[%s273 + $0xb20] sm:$0xff]
        %v703 = vld [vmem:[%s273 + $0xb28] sm:$0xff]
        %v704 = vld [vmem:[%s273 + $0xb30] sm:$0xff]
        %v705 = vld [vmem:[%s273 + $0xb38] sm:$0xff]
        %v706 = vld [vmem:[%s273 + $0xb40] sm:$0xff]
        %v707 = vld [vmem:[%s273 + $0xb48] sm:$0xff]
        %v708 = vld [vmem:[%s273 + $0xb50] sm:$0xff]
        %v709 = vld [vmem:[%s273 + $0xb58] sm:$0xff]
        %v710 = vld [vmem:[%s273 + $0xb60] sm:$0xff]
        %v711 = vld [vmem:[%s273 + $0xb68] sm:$0xff]
        %v712 = vld [vmem:[%s273 + $0xb70] sm:$0xff]
        %v713 = vld [vmem:[%s273 + $0xb78] sm:$0xff]
        %v714 = vld [vmem:[%s273 + $0xb80] sm:$0xff]
        %v715 = vld [vmem:[%s273 + $0xb88] sm:$0xff]
        %v716 = vld [vmem:[%s273 + $0xb90] sm:$0xff]
        %v717 = vld [vmem:[%s273 + $0xb98] sm:$0xff]
        %v718 = vld [vmem:[%s273 + $0xba0] sm:$0xff]
        %v719 = vld [vmem:[%s273 + $0xba8] sm:$0xff]
        %v720 = vld [vmem:[%s273 + $0xbb0] sm:$0xff]
        %v721 = vld [vmem:[%s273 + $0xbb8] sm:$0xff]
        %v722 = vld [vmem:[%s273 + $0xbc0] sm:$0xff]
        %v723 = vld [vmem:[%s273 + $0xbc8] sm:$0xff]
        %v724 = vld [vmem:[%s273 + $0xbd0] sm:$0xff]
        %v725 = vld [vmem:[%s273 + $0xbd8] sm:$0xff]
        %v726 = vld [vmem:[%s273 + $0xbe0] sm:$0xff]
        %v727 = vld [vmem:[%s273 + $0xbe8] sm:$0xff]
        %v728 = vld [vmem:[%s273 + $0xbf0] sm:$0xff]
        %v729 = vld [vmem:[%s273 + $0xbf8] sm:$0xff]
        %v730 = vld [vmem:[%s273 + $0xc00] sm:$0xff]
        %v731 = vld [vmem:[%s273 + $0xc08] sm:$0xff]
        %v732 = vld [vmem:[%s273 + $0xc10] sm:$0xff]
        %v733 = vld [vmem:[%s273 + $0xc18] sm:$0xff]
        %v734 = vld [vmem:[%s273 + $0xc20] sm:$0xff]
        %v735 = vld [vmem:[%s273 + $0xc28] sm:$0xff]
        %v736 = vld [vmem:[%s273 + $0xc30] sm:$0xff]
        %v737 = vld [vmem:[%s273 + $0xc38] sm:$0xff]
        %v738 = vld [vmem:[%s273 + $0xc40] sm:$0xff]
        %v739 = vld [vmem:[%s273 + $0xc48] sm:$0xff]
        %v740 = vld [vmem:[%s273 + $0xc50] sm:$0xff]
        %v741 = vld [vmem:[%s273 + $0xc58] sm:$0xff]
        %v742 = vld [vmem:[%s273 + $0xc60] sm:$0xff]
        %v743 = vld [vmem:[%s273 + $0xc68] sm:$0xff]
        %v744 = vld [vmem:[%s273 + $0xc70] sm:$0xff]
        %v745 = vld [vmem:[%s273 + $0xc78] sm:$0xff]
        %v746 = vld [vmem:[%s273 + $0xc80] sm:$0xff]
        %v747 = vld [vmem:[%s273 + $0xc88] sm:$0xff]
        %v748 = vld [vmem:[%s273 + $0xc90] sm:$0xff]
        %v749 = vld [vmem:[%s273 + $0xc98] sm:$0xff]
        %v750 = vld [vmem:[%s273 + $0xca0] sm:$0xff]
        %v751 = vld [vmem:[%s273 + $0xca8] sm:$0xff]
        %v752 = vld [vmem:[%s273 + $0xcb0] sm:$0xff]
        %v753 = vld [vmem:[%s273 + $0xcb8] sm:$0xff]
        %v754 = vld [vmem:[%s273 + $0xcc0] sm:$0xff]
        %v755 = vld [vmem:[%s273 + $0xcc8] sm:$0xff]
        %v756 = vld [vmem:[%s273 + $0xcd0] sm:$0xff]
        %v757 = vld [vmem:[%s273 + $0xcd8] sm:$0xff]
        %v758 = vld [vmem:[%s273 + $0xce0] sm:$0xff]
        %v759 = vld [vmem:[%s273 + $0xce8] sm:$0xff]
        %v760 = vld [vmem:[%s273 + $0xcf0] sm:$0xff]
        %v761 = vld [vmem:[%s273 + $0xcf8] sm:$0xff]
        %v762 = vld [vmem:[%s273 + $0xd00] sm:$0xff]
        %v763 = vld [vmem:[%s273 + $0xd08] sm:$0xff]
        %v764 = vld [vmem:[%s273 + $0xd10] sm:$0xff]
        %v765 = vld [vmem:[%s273 + $0xd18] sm:$0xff]
        %v766 = vld [vmem:[%s273 + $0xd20] sm:$0xff]
        %v767 = vld [vmem:[%s273 + $0xd28] sm:$0xff]
        %v768 = vld [vmem:[%s273 + $0xd30] sm:$0xff]
        %v769 = vld [vmem:[%s273 + $0xd38] sm:$0xff]
        %v770 = vld [vmem:[%s273 + $0xd40] sm:$0xff]
        %v771 = vld [vmem:[%s273 + $0xd48] sm:$0xff]
        %v772 = vld [vmem:[%s273 + $0xd50] sm:$0xff]
        %v773 = vld [vmem:[%s273 + $0xd58] sm:$0xff]
        %v774 = vld [vmem:[%s273 + $0xd60] sm:$0xff]
        %v775 = vld [vmem:[%s273 + $0xd68] sm:$0xff]
        %v776 = vld [vmem:[%s273 + $0xd70] sm:$0xff]
        %v777 = vld [vmem:[%s273 + $0xd78] sm:$0xff]
        %v778 = vld [vmem:[%s273 + $0xd80] sm:$0xff]
        %v779 = vld [vmem:[%s273 + $0xd88] sm:$0xff]
        %v780 = vld [vmem:[%s273 + $0xd90] sm:$0xff]
        %v781 = vld [vmem:[%s273 + $0xd98] sm:$0xff]
        %v782 = vld [vmem:[%s273 + $0xda0] sm:$0xff]
        %v783 = vld [vmem:[%s273 + $0xda8] sm:$0xff]
        %v784 = vld [vmem:[%s273 + $0xdb0] sm:$0xff]
        %v785 = vld [vmem:[%s273 + $0xdb8] sm:$0xff]
        %v786 = vld [vmem:[%s273 + $0xdc0] sm:$0xff]
        %v787 = vld [vmem:[%s273 + $0xdc8] sm:$0xff]
        %v788 = vld [vmem:[%s273 + $0xdd0] sm:$0xff]
        %v789 = vld [vmem:[%s273 + $0xdd8] sm:$0xff]
        %v790 = vld [vmem:[%s273 + $0xde0] sm:$0xff]
        %v791 = vld [vmem:[%s273 + $0xde8] sm:$0xff]
        %v792 = vld [vmem:[%s273 + $0xdf0] sm:$0xff]
        %v793 = vld [vmem:[%s273 + $0xdf8] sm:$0xff]
        %v794 = vld [vmem:[%s273 + $0xe00] sm:$0xff]
        %v795 = vld [vmem:[%s273 + $0xe08] sm:$0xff]
        %v796 = vld [vmem:[%s273 + $0xe10] sm:$0xff]
        %v797 = vld [vmem:[%s273 + $0xe18] sm:$0xff]
        %v798 = vld [vmem:[%s273 + $0xe20] sm:$0xff]
        %v799 = vld [vmem:[%s273 + $0xe28] sm:$0xff]
        %v800 = vld [vmem:[%s273 + $0xe30] sm:$0xff]
        %v801 = vld [vmem:[%s273 + $0xe38] sm:$0xff]
        %v802 = vld [vmem:[%s273 + $0xe40] sm:$0xff]
        %v803 = vld [vmem:[%s273 + $0xe48] sm:$0xff]
        %v804 = vld [vmem:[%s273 + $0xe50] sm:$0xff]
        %v805 = vld [vmem:[%s273 + $0xe58] sm:$0xff]
        %v806 = vld [vmem:[%s273 + $0xe60] sm:$0xff]
        %v807 = vld [vmem:[%s273 + $0xe68] sm:$0xff]
        %v808 = vld [vmem:[%s273 + $0xe70] sm:$0xff]
        %v809 = vld [vmem:[%s273 + $0xe78] sm:$0xff]
        %v810 = vld [vmem:[%s273 + $0xe80] sm:$0xff]
        %v811 = vld [vmem:[%s273 + $0xe88] sm:$0xff]
        %v812 = vld [vmem:[%s273 + $0xe90] sm:$0xff]
        %v813 = vld [vmem:[%s273 + $0xe98] sm:$0xff]
        %v814 = vld [vmem:[%s273 + $0xea0] sm:$0xff]
        %v815 = vld [vmem:[%s273 + $0xea8] sm:$0xff]
        %v816 = vld [vmem:[%s273 + $0xeb0] sm:$0xff]
        %v817 = vld [vmem:[%s273 + $0xeb8] sm:$0xff]
        %v818 = vld [vmem:[%s273 + $0xec0] sm:$0xff]
        %v819 = vld [vmem:[%s273 + $0xec8] sm:$0xff]
        %v820 = vld [vmem:[%s273 + $0xed0] sm:$0xff]
        %v821 = vld [vmem:[%s273 + $0xed8] sm:$0xff]
        %v822 = vld [vmem:[%s273 + $0xee0] sm:$0xff]
        %v823 = vld [vmem:[%s273 + $0xee8] sm:$0xff]
        %v824 = vld [vmem:[%s273 + $0xef0] sm:$0xff]
        %v825 = vld [vmem:[%s273 + $0xef8] sm:$0xff]
        %v826 = vld [vmem:[%s273 + $0xf00] sm:$0xff]
        %v827 = vld [vmem:[%s273 + $0xf08] sm:$0xff]
        %v828 = vld [vmem:[%s273 + $0xf10] sm:$0xff]
        %v829 = vld [vmem:[%s273 + $0xf18] sm:$0xff]
        %v830 = vld [vmem:[%s273 + $0xf20] sm:$0xff]
        %v831 = vld [vmem:[%s273 + $0xf28] sm:$0xff]
        %v832 = vld [vmem:[%s273 + $0xf30] sm:$0xff]
        %v833 = vld [vmem:[%s273 + $0xf38] sm:$0xff]
        %v834 = vld [vmem:[%s273 + $0xf40] sm:$0xff]
        %v835 = vld [vmem:[%s273 + $0xf48] sm:$0xff]
        %v836 = vld [vmem:[%s273 + $0xf50] sm:$0xff]
        %v837 = vld [vmem:[%s273 + $0xf58] sm:$0xff]
        %v838 = vld [vmem:[%s273 + $0xf60] sm:$0xff]
        %v839 = vld [vmem:[%s273 + $0xf68] sm:$0xff]
        %v840 = vld [vmem:[%s273 + $0xf70] sm:$0xff]
        %v841 = vld [vmem:[%s273 + $0xf78] sm:$0xff]
        %v842 = vld [vmem:[%s273 + $0xf80] sm:$0xff]
        %v843 = vld [vmem:[%s273 + $0xf88] sm:$0xff]
        %v844 = vld [vmem:[%s273 + $0xf90] sm:$0xff]
        %v845 = vld [vmem:[%s273 + $0xf98] sm:$0xff]
        %v846 = vld [vmem:[%s273 + $0xfa0] sm:$0xff]
        %v847 = vld [vmem:[%s273 + $0xfa8] sm:$0xff]
        %v848 = vld [vmem:[%s273 + $0xfb0] sm:$0xff]
        %v849 = vld [vmem:[%s273 + $0xfb8] sm:$0xff]
        %v850 = vld [vmem:[%s273 + $0xfc0] sm:$0xff]
        %v851 = vld [vmem:[%s273 + $0xfc8] sm:$0xff]
        %v852 = vld [vmem:[%s273 + $0xfd0] sm:$0xff]
        %v853 = vld [vmem:[%s273 + $0xfd8] sm:$0xff]
        %v854 = vld [vmem:[%s273 + $0xfe0] sm:$0xff]
        %v855 = vld [vmem:[%s273 + $0xfe8] sm:$0xff]
        %v856 = vld [vmem:[%s273 + $0xff0] sm:$0xff]
        %v857 = vld [vmem:[%s273 + $0xff8] sm:$0xff]
        %v858 = vunpack.c.l.bf16 %v346
        %v859 = vunpack.c.h.bf16 %v346
        %v860 = vunpack.c.l.bf16 %v347
        %v861 = vunpack.c.h.bf16 %v347
        %v862 = vunpack.c.l.bf16 %v348
        %v863 = vunpack.c.h.bf16 %v348
        %v864 = vunpack.c.l.bf16 %v349
        %v865 = vunpack.c.h.bf16 %v349
        %v866 = vunpack.c.l.bf16 %v350
        %v867 = vunpack.c.h.bf16 %v350
        %v868 = vunpack.c.l.bf16 %v351
        %v869 = vunpack.c.h.bf16 %v351
        %v870 = vunpack.c.l.bf16 %v352
        %v871 = vunpack.c.h.bf16 %v352
        %v872 = vunpack.c.l.bf16 %v353
        %v873 = vunpack.c.h.bf16 %v353
        %v874 = vunpack.c.l.bf16 %v354
        %v875 = vunpack.c.h.bf16 %v354
        %v876 = vunpack.c.l.bf16 %v355
        %v877 = vunpack.c.h.bf16 %v355
        %v878 = vunpack.c.l.bf16 %v356
        %v879 = vunpack.c.h.bf16 %v356
        %v880 = vunpack.c.l.bf16 %v357
        %v881 = vunpack.c.h.bf16 %v357
        %v882 = vunpack.c.l.bf16 %v358
        %v883 = vunpack.c.h.bf16 %v358
        %v884 = vunpack.c.l.bf16 %v359
        %v885 = vunpack.c.h.bf16 %v359
        %v886 = vunpack.c.l.bf16 %v360
        %v887 = vunpack.c.h.bf16 %v360
        %v888 = vunpack.c.l.bf16 %v361
        %v889 = vunpack.c.h.bf16 %v361
        %v890 = vunpack.c.l.bf16 %v362
        %v891 = vunpack.c.h.bf16 %v362
        %v892 = vunpack.c.l.bf16 %v363
        %v893 = vunpack.c.h.bf16 %v363
        %v894 = vunpack.c.l.bf16 %v364
        %v895 = vunpack.c.h.bf16 %v364
        %v896 = vunpack.c.l.bf16 %v365
        %v897 = vunpack.c.h.bf16 %v365
        %v898 = vunpack.c.l.bf16 %v366
        %v899 = vunpack.c.h.bf16 %v366
        %v900 = vunpack.c.l.bf16 %v367
        %v901 = vunpack.c.h.bf16 %v367
        %v902 = vunpack.c.l.bf16 %v368
        %v903 = vunpack.c.h.bf16 %v368
        %v904 = vunpack.c.l.bf16 %v369
        %v905 = vunpack.c.h.bf16 %v369
        %v906 = vunpack.c.l.bf16 %v370
        %v907 = vunpack.c.h.bf16 %v370
        %v908 = vunpack.c.l.bf16 %v371
        %v909 = vunpack.c.h.bf16 %v371
        %v910 = vunpack.c.l.bf16 %v372
        %v911 = vunpack.c.h.bf16 %v372
        %v912 = vunpack.c.l.bf16 %v373
        %v913 = vunpack.c.h.bf16 %v373
        %v914 = vunpack.c.l.bf16 %v374
        %v915 = vunpack.c.h.bf16 %v374
        %v916 = vunpack.c.l.bf16 %v375
        %v917 = vunpack.c.h.bf16 %v375
        %v918 = vunpack.c.l.bf16 %v376
        %v919 = vunpack.c.h.bf16 %v376
        %v920 = vunpack.c.l.bf16 %v377
        %v921 = vunpack.c.h.bf16 %v377
        %v922 = vunpack.c.l.bf16 %v378
        %v923 = vunpack.c.h.bf16 %v378
        %v924 = vunpack.c.l.bf16 %v379
        %v925 = vunpack.c.h.bf16 %v379
        %v926 = vunpack.c.l.bf16 %v380
        %v927 = vunpack.c.h.bf16 %v380
        %v928 = vunpack.c.l.bf16 %v381
        %v929 = vunpack.c.h.bf16 %v381
        %v930 = vunpack.c.l.bf16 %v382
        %v931 = vunpack.c.h.bf16 %v382
        %v932 = vunpack.c.l.bf16 %v383
        %v933 = vunpack.c.h.bf16 %v383
        %v934 = vunpack.c.l.bf16 %v384
        %v935 = vunpack.c.h.bf16 %v384
        %v936 = vunpack.c.l.bf16 %v385
        %v937 = vunpack.c.h.bf16 %v385
        %v938 = vunpack.c.l.bf16 %v386
        %v939 = vunpack.c.h.bf16 %v386
        %v940 = vunpack.c.l.bf16 %v387
        %v941 = vunpack.c.h.bf16 %v387
        %v942 = vunpack.c.l.bf16 %v388
        %v943 = vunpack.c.h.bf16 %v388
        %v944 = vunpack.c.l.bf16 %v389
        %v945 = vunpack.c.h.bf16 %v389
        %v946 = vunpack.c.l.bf16 %v390
        %v947 = vunpack.c.h.bf16 %v390
        %v948 = vunpack.c.l.bf16 %v391
        %v949 = vunpack.c.h.bf16 %v391
        %v950 = vunpack.c.l.bf16 %v392
        %v951 = vunpack.c.h.bf16 %v392
        %v952 = vunpack.c.l.bf16 %v393
        %v953 = vunpack.c.h.bf16 %v393
        %v954 = vunpack.c.l.bf16 %v394
        %v955 = vunpack.c.h.bf16 %v394
        %v956 = vunpack.c.l.bf16 %v395
        %v957 = vunpack.c.h.bf16 %v395
        %v958 = vunpack.c.l.bf16 %v396
        %v959 = vunpack.c.h.bf16 %v396
        %v960 = vunpack.c.l.bf16 %v397
        %v961 = vunpack.c.h.bf16 %v397
        %v962 = vunpack.c.l.bf16 %v398
        %v963 = vunpack.c.h.bf16 %v398
        %v964 = vunpack.c.l.bf16 %v399
        %v965 = vunpack.c.h.bf16 %v399
        %v966 = vunpack.c.l.bf16 %v400
        %v967 = vunpack.c.h.bf16 %v400
        %v968 = vunpack.c.l.bf16 %v401
        %v969 = vunpack.c.h.bf16 %v401
        %v970 = vunpack.c.l.bf16 %v402
        %v971 = vunpack.c.h.bf16 %v402
        %v972 = vunpack.c.l.bf16 %v403
        %v973 = vunpack.c.h.bf16 %v403
        %v974 = vunpack.c.l.bf16 %v404
        %v975 = vunpack.c.h.bf16 %v404
        %v976 = vunpack.c.l.bf16 %v405
        %v977 = vunpack.c.h.bf16 %v405
        %v978 = vunpack.c.l.bf16 %v406
        %v979 = vunpack.c.h.bf16 %v406
        %v980 = vunpack.c.l.bf16 %v407
        %v981 = vunpack.c.h.bf16 %v407
        %v982 = vunpack.c.l.bf16 %v408
        %v983 = vunpack.c.h.bf16 %v408
        %v984 = vunpack.c.l.bf16 %v409
        %v985 = vunpack.c.h.bf16 %v409
        %v986 = vunpack.c.l.bf16 %v410
        %v987 = vunpack.c.h.bf16 %v410
        %v988 = vunpack.c.l.bf16 %v411
        %v989 = vunpack.c.h.bf16 %v411
        %v990 = vunpack.c.l.bf16 %v412
        %v991 = vunpack.c.h.bf16 %v412
        %v992 = vunpack.c.l.bf16 %v413
        %v993 = vunpack.c.h.bf16 %v413
        %v994 = vunpack.c.l.bf16 %v414
        %v995 = vunpack.c.h.bf16 %v414
        %v996 = vunpack.c.l.bf16 %v415
        %v997 = vunpack.c.h.bf16 %v415
        %v998 = vunpack.c.l.bf16 %v416
        %v999 = vunpack.c.h.bf16 %v416
        %v1000 = vunpack.c.l.bf16 %v417
        %v1001 = vunpack.c.h.bf16 %v417
        %v1002 = vunpack.c.l.bf16 %v418
        %v1003 = vunpack.c.h.bf16 %v418
        %v1004 = vunpack.c.l.bf16 %v419
        %v1005 = vunpack.c.h.bf16 %v419
        %v1006 = vunpack.c.l.bf16 %v420
        %v1007 = vunpack.c.h.bf16 %v420
        %v1008 = vunpack.c.l.bf16 %v421
        %v1009 = vunpack.c.h.bf16 %v421
        %v1010 = vunpack.c.l.bf16 %v422
        %v1011 = vunpack.c.h.bf16 %v422
        %v1012 = vunpack.c.l.bf16 %v423
        %v1013 = vunpack.c.h.bf16 %v423
        %v1014 = vunpack.c.l.bf16 %v424
        %v1015 = vunpack.c.h.bf16 %v424
        %v1016 = vunpack.c.l.bf16 %v425
        %v1017 = vunpack.c.h.bf16 %v425
        %v1018 = vunpack.c.l.bf16 %v426
        %v1019 = vunpack.c.h.bf16 %v426
        %v1020 = vunpack.c.l.bf16 %v427
        %v1021 = vunpack.c.h.bf16 %v427
        %v1022 = vunpack.c.l.bf16 %v428
        %v1023 = vunpack.c.h.bf16 %v428
        %v1024 = vunpack.c.l.bf16 %v429
        %v1025 = vunpack.c.h.bf16 %v429
        %v1026 = vunpack.c.l.bf16 %v430
        %v1027 = vunpack.c.h.bf16 %v430
        %v1028 = vunpack.c.l.bf16 %v431
        %v1029 = vunpack.c.h.bf16 %v431
        %v1030 = vunpack.c.l.bf16 %v432
        %v1031 = vunpack.c.h.bf16 %v432
        %v1032 = vunpack.c.l.bf16 %v433
        %v1033 = vunpack.c.h.bf16 %v433
        %v1034 = vunpack.c.l.bf16 %v434
        %v1035 = vunpack.c.h.bf16 %v434
        %v1036 = vunpack.c.l.bf16 %v435
        %v1037 = vunpack.c.h.bf16 %v435
        %v1038 = vunpack.c.l.bf16 %v436
        %v1039 = vunpack.c.h.bf16 %v436
        %v1040 = vunpack.c.l.bf16 %v437
        %v1041 = vunpack.c.h.bf16 %v437
        %v1042 = vunpack.c.l.bf16 %v438
        %v1043 = vunpack.c.h.bf16 %v438
        %v1044 = vunpack.c.l.bf16 %v439
        %v1045 = vunpack.c.h.bf16 %v439
        %v1046 = vunpack.c.l.bf16 %v440
        %v1047 = vunpack.c.h.bf16 %v440
        %v1048 = vunpack.c.l.bf16 %v441
        %v1049 = vunpack.c.h.bf16 %v441
        %v1050 = vunpack.c.l.bf16 %v442
        %v1051 = vunpack.c.h.bf16 %v442
        %v1052 = vunpack.c.l.bf16 %v443
        %v1053 = vunpack.c.h.bf16 %v443
        %v1054 = vunpack.c.l.bf16 %v444
        %v1055 = vunpack.c.h.bf16 %v444
        %v1056 = vunpack.c.l.bf16 %v445
        %v1057 = vunpack.c.h.bf16 %v445
        %v1058 = vunpack.c.l.bf16 %v446
        %v1059 = vunpack.c.h.bf16 %v446
        %v1060 = vunpack.c.l.bf16 %v447
        %v1061 = vunpack.c.h.bf16 %v447
        %v1062 = vunpack.c.l.bf16 %v448
        %v1063 = vunpack.c.h.bf16 %v448
        %v1064 = vunpack.c.l.bf16 %v449
        %v1065 = vunpack.c.h.bf16 %v449
        %v1066 = vunpack.c.l.bf16 %v450
        %v1067 = vunpack.c.h.bf16 %v450
        %v1068 = vunpack.c.l.bf16 %v451
        %v1069 = vunpack.c.h.bf16 %v451
        %v1070 = vunpack.c.l.bf16 %v452
        %v1071 = vunpack.c.h.bf16 %v452
        %v1072 = vunpack.c.l.bf16 %v453
        %v1073 = vunpack.c.h.bf16 %v453
        %v1074 = vunpack.c.l.bf16 %v454
        %v1075 = vunpack.c.h.bf16 %v454
        %v1076 = vunpack.c.l.bf16 %v455
        %v1077 = vunpack.c.h.bf16 %v455
        %v1078 = vunpack.c.l.bf16 %v456
        %v1079 = vunpack.c.h.bf16 %v456
        %v1080 = vunpack.c.l.bf16 %v457
        %v1081 = vunpack.c.h.bf16 %v457
        %v1082 = vunpack.c.l.bf16 %v458
        %v1083 = vunpack.c.h.bf16 %v458
        %v1084 = vunpack.c.l.bf16 %v459
        %v1085 = vunpack.c.h.bf16 %v459
        %v1086 = vunpack.c.l.bf16 %v460
        %v1087 = vunpack.c.h.bf16 %v460
        %v1088 = vunpack.c.l.bf16 %v461
        %v1089 = vunpack.c.h.bf16 %v461
        %v1090 = vunpack.c.l.bf16 %v462
        %v1091 = vunpack.c.h.bf16 %v462
        %v1092 = vunpack.c.l.bf16 %v463
        %v1093 = vunpack.c.h.bf16 %v463
        %v1094 = vunpack.c.l.bf16 %v464
        %v1095 = vunpack.c.h.bf16 %v464
        %v1096 = vunpack.c.l.bf16 %v465
        %v1097 = vunpack.c.h.bf16 %v465
        %v1098 = vunpack.c.l.bf16 %v466
        %v1099 = vunpack.c.h.bf16 %v466
        %v1100 = vunpack.c.l.bf16 %v467
        %v1101 = vunpack.c.h.bf16 %v467
        %v1102 = vunpack.c.l.bf16 %v468
        %v1103 = vunpack.c.h.bf16 %v468
        %v1104 = vunpack.c.l.bf16 %v469
        %v1105 = vunpack.c.h.bf16 %v469
        %v1106 = vunpack.c.l.bf16 %v470
        %v1107 = vunpack.c.h.bf16 %v470
        %v1108 = vunpack.c.l.bf16 %v471
        %v1109 = vunpack.c.h.bf16 %v471
        %v1110 = vunpack.c.l.bf16 %v472
        %v1111 = vunpack.c.h.bf16 %v472
        %v1112 = vunpack.c.l.bf16 %v473
        %v1113 = vunpack.c.h.bf16 %v473
        %v1114 = vunpack.c.l.bf16 %v474
        %v1115 = vunpack.c.h.bf16 %v474
        %v1116 = vunpack.c.l.bf16 %v475
        %v1117 = vunpack.c.h.bf16 %v475
        %v1118 = vunpack.c.l.bf16 %v476
        %v1119 = vunpack.c.h.bf16 %v476
        %v1120 = vunpack.c.l.bf16 %v477
        %v1121 = vunpack.c.h.bf16 %v477
        %v1122 = vunpack.c.l.bf16 %v478
        %v1123 = vunpack.c.h.bf16 %v478
        %v1124 = vunpack.c.l.bf16 %v479
        %v1125 = vunpack.c.h.bf16 %v479
        %v1126 = vunpack.c.l.bf16 %v480
        %v1127 = vunpack.c.h.bf16 %v480
        %v1128 = vunpack.c.l.bf16 %v481
        %v1129 = vunpack.c.h.bf16 %v481
        %v1130 = vunpack.c.l.bf16 %v482
        %v1131 = vunpack.c.h.bf16 %v482
        %v1132 = vunpack.c.l.bf16 %v483
        %v1133 = vunpack.c.h.bf16 %v483
        %v1134 = vunpack.c.l.bf16 %v484
        %v1135 = vunpack.c.h.bf16 %v484
        %v1136 = vunpack.c.l.bf16 %v485
        %v1137 = vunpack.c.h.bf16 %v485
        %v1138 = vunpack.c.l.bf16 %v486
        %v1139 = vunpack.c.h.bf16 %v486
        %v1140 = vunpack.c.l.bf16 %v487
        %v1141 = vunpack.c.h.bf16 %v487
        %v1142 = vunpack.c.l.bf16 %v488
        %v1143 = vunpack.c.h.bf16 %v488
        %v1144 = vunpack.c.l.bf16 %v489
        %v1145 = vunpack.c.h.bf16 %v489
        %v1146 = vunpack.c.l.bf16 %v490
        %v1147 = vunpack.c.h.bf16 %v490
        %v1148 = vunpack.c.l.bf16 %v491
        %v1149 = vunpack.c.h.bf16 %v491
        %v1150 = vunpack.c.l.bf16 %v492
        %v1151 = vunpack.c.h.bf16 %v492
        %v1152 = vunpack.c.l.bf16 %v493
        %v1153 = vunpack.c.h.bf16 %v493
        %v1154 = vunpack.c.l.bf16 %v494
        %v1155 = vunpack.c.h.bf16 %v494
        %v1156 = vunpack.c.l.bf16 %v495
        %v1157 = vunpack.c.h.bf16 %v495
        %v1158 = vunpack.c.l.bf16 %v496
        %v1159 = vunpack.c.h.bf16 %v496
        %v1160 = vunpack.c.l.bf16 %v497
        %v1161 = vunpack.c.h.bf16 %v497
        %v1162 = vunpack.c.l.bf16 %v498
        %v1163 = vunpack.c.h.bf16 %v498
        %v1164 = vunpack.c.l.bf16 %v499
        %v1165 = vunpack.c.h.bf16 %v499
        %v1166 = vunpack.c.l.bf16 %v500
        %v1167 = vunpack.c.h.bf16 %v500
        %v1168 = vunpack.c.l.bf16 %v501
        %v1169 = vunpack.c.h.bf16 %v501
        %v1170 = vunpack.c.l.bf16 %v502
        %v1171 = vunpack.c.h.bf16 %v502
        %v1172 = vunpack.c.l.bf16 %v503
        %v1173 = vunpack.c.h.bf16 %v503
        %v1174 = vunpack.c.l.bf16 %v504
        %v1175 = vunpack.c.h.bf16 %v504
        %v1176 = vunpack.c.l.bf16 %v505
        %v1177 = vunpack.c.h.bf16 %v505
        %v1178 = vunpack.c.l.bf16 %v506
        %v1179 = vunpack.c.h.bf16 %v506
        %v1180 = vunpack.c.l.bf16 %v507
        %v1181 = vunpack.c.h.bf16 %v507
        %v1182 = vunpack.c.l.bf16 %v508
        %v1183 = vunpack.c.h.bf16 %v508
        %v1184 = vunpack.c.l.bf16 %v509
        %v1185 = vunpack.c.h.bf16 %v509
        %v1186 = vunpack.c.l.bf16 %v510
        %v1187 = vunpack.c.h.bf16 %v510
        %v1188 = vunpack.c.l.bf16 %v511
        %v1189 = vunpack.c.h.bf16 %v511
        %v1190 = vunpack.c.l.bf16 %v512
        %v1191 = vunpack.c.h.bf16 %v512
        %v1192 = vunpack.c.l.bf16 %v513
        %v1193 = vunpack.c.h.bf16 %v513
        %v1194 = vunpack.c.l.bf16 %v514
        %v1195 = vunpack.c.h.bf16 %v514
        %v1196 = vunpack.c.l.bf16 %v515
        %v1197 = vunpack.c.h.bf16 %v515
        %v1198 = vunpack.c.l.bf16 %v516
        %v1199 = vunpack.c.h.bf16 %v516
        %v1200 = vunpack.c.l.bf16 %v517
        %v1201 = vunpack.c.h.bf16 %v517
        %v1202 = vunpack.c.l.bf16 %v518
        %v1203 = vunpack.c.h.bf16 %v518
        %v1204 = vunpack.c.l.bf16 %v519
        %v1205 = vunpack.c.h.bf16 %v519
        %v1206 = vunpack.c.l.bf16 %v520
        %v1207 = vunpack.c.h.bf16 %v520
        %v1208 = vunpack.c.l.bf16 %v521
        %v1209 = vunpack.c.h.bf16 %v521
        %v1210 = vunpack.c.l.bf16 %v522
        %v1211 = vunpack.c.h.bf16 %v522
        %v1212 = vunpack.c.l.bf16 %v523
        %v1213 = vunpack.c.h.bf16 %v523
        %v1214 = vunpack.c.l.bf16 %v524
        %v1215 = vunpack.c.h.bf16 %v524
        %v1216 = vunpack.c.l.bf16 %v525
        %v1217 = vunpack.c.h.bf16 %v525
        %v1218 = vunpack.c.l.bf16 %v526
        %v1219 = vunpack.c.h.bf16 %v526
        %v1220 = vunpack.c.l.bf16 %v527
        %v1221 = vunpack.c.h.bf16 %v527
        %v1222 = vunpack.c.l.bf16 %v528
        %v1223 = vunpack.c.h.bf16 %v528
        %v1224 = vunpack.c.l.bf16 %v529
        %v1225 = vunpack.c.h.bf16 %v529
        %v1226 = vunpack.c.l.bf16 %v530
        %v1227 = vunpack.c.h.bf16 %v530
        %v1228 = vunpack.c.l.bf16 %v531
        %v1229 = vunpack.c.h.bf16 %v531
        %v1230 = vunpack.c.l.bf16 %v532
        %v1231 = vunpack.c.h.bf16 %v532
        %v1232 = vunpack.c.l.bf16 %v533
        %v1233 = vunpack.c.h.bf16 %v533
        %v1234 = vunpack.c.l.bf16 %v534
        %v1235 = vunpack.c.h.bf16 %v534
        %v1236 = vunpack.c.l.bf16 %v535
        %v1237 = vunpack.c.h.bf16 %v535
        %v1238 = vunpack.c.l.bf16 %v536
        %v1239 = vunpack.c.h.bf16 %v536
        %v1240 = vunpack.c.l.bf16 %v537
        %v1241 = vunpack.c.h.bf16 %v537
        %v1242 = vunpack.c.l.bf16 %v538
        %v1243 = vunpack.c.h.bf16 %v538
        %v1244 = vunpack.c.l.bf16 %v539
        %v1245 = vunpack.c.h.bf16 %v539
        %v1246 = vunpack.c.l.bf16 %v540
        %v1247 = vunpack.c.h.bf16 %v540
        %v1248 = vunpack.c.l.bf16 %v541
        %v1249 = vunpack.c.h.bf16 %v541
        %v1250 = vunpack.c.l.bf16 %v542
        %v1251 = vunpack.c.h.bf16 %v542
        %v1252 = vunpack.c.l.bf16 %v543
        %v1253 = vunpack.c.h.bf16 %v543
        %v1254 = vunpack.c.l.bf16 %v544
        %v1255 = vunpack.c.h.bf16 %v544
        %v1256 = vunpack.c.l.bf16 %v545
        %v1257 = vunpack.c.h.bf16 %v545
        %v1258 = vunpack.c.l.bf16 %v546
        %v1259 = vunpack.c.h.bf16 %v546
        %v1260 = vunpack.c.l.bf16 %v547
        %v1261 = vunpack.c.h.bf16 %v547
        %v1262 = vunpack.c.l.bf16 %v548
        %v1263 = vunpack.c.h.bf16 %v548
        %v1264 = vunpack.c.l.bf16 %v549
        %v1265 = vunpack.c.h.bf16 %v549
        %v1266 = vunpack.c.l.bf16 %v550
        %v1267 = vunpack.c.h.bf16 %v550
        %v1268 = vunpack.c.l.bf16 %v551
        %v1269 = vunpack.c.h.bf16 %v551
        %v1270 = vunpack.c.l.bf16 %v552
        %v1271 = vunpack.c.h.bf16 %v552
        %v1272 = vunpack.c.l.bf16 %v553
        %v1273 = vunpack.c.h.bf16 %v553
        %v1274 = vunpack.c.l.bf16 %v554
        %v1275 = vunpack.c.h.bf16 %v554
        %v1276 = vunpack.c.l.bf16 %v555
        %v1277 = vunpack.c.h.bf16 %v555
        %v1278 = vunpack.c.l.bf16 %v556
        %v1279 = vunpack.c.h.bf16 %v556
        %v1280 = vunpack.c.l.bf16 %v557
        %v1281 = vunpack.c.h.bf16 %v557
        %v1282 = vunpack.c.l.bf16 %v558
        %v1283 = vunpack.c.h.bf16 %v558
        %v1284 = vunpack.c.l.bf16 %v559
        %v1285 = vunpack.c.h.bf16 %v559
        %v1286 = vunpack.c.l.bf16 %v560
        %v1287 = vunpack.c.h.bf16 %v560
        %v1288 = vunpack.c.l.bf16 %v561
        %v1289 = vunpack.c.h.bf16 %v561
        %v1290 = vunpack.c.l.bf16 %v562
        %v1291 = vunpack.c.h.bf16 %v562
        %v1292 = vunpack.c.l.bf16 %v563
        %v1293 = vunpack.c.h.bf16 %v563
        %v1294 = vunpack.c.l.bf16 %v564
        %v1295 = vunpack.c.h.bf16 %v564
        %v1296 = vunpack.c.l.bf16 %v565
        %v1297 = vunpack.c.h.bf16 %v565
        %v1298 = vunpack.c.l.bf16 %v566
        %v1299 = vunpack.c.h.bf16 %v566
        %v1300 = vunpack.c.l.bf16 %v567
        %v1301 = vunpack.c.h.bf16 %v567
        %v1302 = vunpack.c.l.bf16 %v568
        %v1303 = vunpack.c.h.bf16 %v568
        %v1304 = vunpack.c.l.bf16 %v569
        %v1305 = vunpack.c.h.bf16 %v569
        %v1306 = vunpack.c.l.bf16 %v570
        %v1307 = vunpack.c.h.bf16 %v570
        %v1308 = vunpack.c.l.bf16 %v571
        %v1309 = vunpack.c.h.bf16 %v571
        %v1310 = vunpack.c.l.bf16 %v572
        %v1311 = vunpack.c.h.bf16 %v572
        %v1312 = vunpack.c.l.bf16 %v573
        %v1313 = vunpack.c.h.bf16 %v573
        %v1314 = vunpack.c.l.bf16 %v574
        %v1315 = vunpack.c.h.bf16 %v574
        %v1316 = vunpack.c.l.bf16 %v575
        %v1317 = vunpack.c.h.bf16 %v575
        %v1318 = vunpack.c.l.bf16 %v576
        %v1319 = vunpack.c.h.bf16 %v576
        %v1320 = vunpack.c.l.bf16 %v577
        %v1321 = vunpack.c.h.bf16 %v577
        %v1322 = vunpack.c.l.bf16 %v578
        %v1323 = vunpack.c.h.bf16 %v578
        %v1324 = vunpack.c.l.bf16 %v579
        %v1325 = vunpack.c.h.bf16 %v579
        %v1326 = vunpack.c.l.bf16 %v580
        %v1327 = vunpack.c.h.bf16 %v580
        %v1328 = vunpack.c.l.bf16 %v581
        %v1329 = vunpack.c.h.bf16 %v581
        %v1330 = vunpack.c.l.bf16 %v582
        %v1331 = vunpack.c.h.bf16 %v582
        %v1332 = vunpack.c.l.bf16 %v583
        %v1333 = vunpack.c.h.bf16 %v583
        %v1334 = vunpack.c.l.bf16 %v584
        %v1335 = vunpack.c.h.bf16 %v584
        %v1336 = vunpack.c.l.bf16 %v585
        %v1337 = vunpack.c.h.bf16 %v585
        %v1338 = vunpack.c.l.bf16 %v586
        %v1339 = vunpack.c.h.bf16 %v586
        %v1340 = vunpack.c.l.bf16 %v587
        %v1341 = vunpack.c.h.bf16 %v587
        %v1342 = vunpack.c.l.bf16 %v588
        %v1343 = vunpack.c.h.bf16 %v588
        %v1344 = vunpack.c.l.bf16 %v589
        %v1345 = vunpack.c.h.bf16 %v589
        %v1346 = vunpack.c.l.bf16 %v590
        %v1347 = vunpack.c.h.bf16 %v590
        %v1348 = vunpack.c.l.bf16 %v591
        %v1349 = vunpack.c.h.bf16 %v591
        %v1350 = vunpack.c.l.bf16 %v592
        %v1351 = vunpack.c.h.bf16 %v592
        %v1352 = vunpack.c.l.bf16 %v593
        %v1353 = vunpack.c.h.bf16 %v593
        %v1354 = vunpack.c.l.bf16 %v594
        %v1355 = vunpack.c.h.bf16 %v594
        %v1356 = vunpack.c.l.bf16 %v595
        %v1357 = vunpack.c.h.bf16 %v595
        %v1358 = vunpack.c.l.bf16 %v596
        %v1359 = vunpack.c.h.bf16 %v596
        %v1360 = vunpack.c.l.bf16 %v597
        %v1361 = vunpack.c.h.bf16 %v597
        %v1362 = vunpack.c.l.bf16 %v598
        %v1363 = vunpack.c.h.bf16 %v598
        %v1364 = vunpack.c.l.bf16 %v599
        %v1365 = vunpack.c.h.bf16 %v599
        %v1366 = vunpack.c.l.bf16 %v600
        %v1367 = vunpack.c.h.bf16 %v600
        %v1368 = vunpack.c.l.bf16 %v601
        %v1369 = vunpack.c.h.bf16 %v601
        %v1370 = vunpack.c.l.bf16 %v602
        %v1371 = vunpack.c.h.bf16 %v602
        %v1372 = vunpack.c.l.bf16 %v603
        %v1373 = vunpack.c.h.bf16 %v603
        %v1374 = vunpack.c.l.bf16 %v604
        %v1375 = vunpack.c.h.bf16 %v604
        %v1376 = vunpack.c.l.bf16 %v605
        %v1377 = vunpack.c.h.bf16 %v605
        %v1378 = vunpack.c.l.bf16 %v606
        %v1379 = vunpack.c.h.bf16 %v606
        %v1380 = vunpack.c.l.bf16 %v607
        %v1381 = vunpack.c.h.bf16 %v607
        %v1382 = vunpack.c.l.bf16 %v608
        %v1383 = vunpack.c.h.bf16 %v608
        %v1384 = vunpack.c.l.bf16 %v609
        %v1385 = vunpack.c.h.bf16 %v609
        %v1386 = vunpack.c.l.bf16 %v610
        %v1387 = vunpack.c.h.bf16 %v610
        %v1388 = vunpack.c.l.bf16 %v611
        %v1389 = vunpack.c.h.bf16 %v611
        %v1390 = vunpack.c.l.bf16 %v612
        %v1391 = vunpack.c.h.bf16 %v612
        %v1392 = vunpack.c.l.bf16 %v613
        %v1393 = vunpack.c.h.bf16 %v613
        %v1394 = vunpack.c.l.bf16 %v614
        %v1395 = vunpack.c.h.bf16 %v614
        %v1396 = vunpack.c.l.bf16 %v615
        %v1397 = vunpack.c.h.bf16 %v615
        %v1398 = vunpack.c.l.bf16 %v616
        %v1399 = vunpack.c.h.bf16 %v616
        %v1400 = vunpack.c.l.bf16 %v617
        %v1401 = vunpack.c.h.bf16 %v617
        %v1402 = vunpack.c.l.bf16 %v618
        %v1403 = vunpack.c.h.bf16 %v618
        %v1404 = vunpack.c.l.bf16 %v619
        %v1405 = vunpack.c.h.bf16 %v619
        %v1406 = vunpack.c.l.bf16 %v620
        %v1407 = vunpack.c.h.bf16 %v620
        %v1408 = vunpack.c.l.bf16 %v621
        %v1409 = vunpack.c.h.bf16 %v621
        %v1410 = vunpack.c.l.bf16 %v622
        %v1411 = vunpack.c.h.bf16 %v622
        %v1412 = vunpack.c.l.bf16 %v623
        %v1413 = vunpack.c.h.bf16 %v623
        %v1414 = vunpack.c.l.bf16 %v624
        %v1415 = vunpack.c.h.bf16 %v624
        %v1416 = vunpack.c.l.bf16 %v625
        %v1417 = vunpack.c.h.bf16 %v625
        %v1418 = vunpack.c.l.bf16 %v626
        %v1419 = vunpack.c.h.bf16 %v626
        %v1420 = vunpack.c.l.bf16 %v627
        %v1421 = vunpack.c.h.bf16 %v627
        %v1422 = vunpack.c.l.bf16 %v628
        %v1423 = vunpack.c.h.bf16 %v628
        %v1424 = vunpack.c.l.bf16 %v629
        %v1425 = vunpack.c.h.bf16 %v629
        %v1426 = vunpack.c.l.bf16 %v630
        %v1427 = vunpack.c.h.bf16 %v630
        %v1428 = vunpack.c.l.bf16 %v631
        %v1429 = vunpack.c.h.bf16 %v631
        %v1430 = vunpack.c.l.bf16 %v632
        %v1431 = vunpack.c.h.bf16 %v632
        %v1432 = vunpack.c.l.bf16 %v633
        %v1433 = vunpack.c.h.bf16 %v633
        %v1434 = vunpack.c.l.bf16 %v634
        %v1435 = vunpack.c.h.bf16 %v634
        %v1436 = vunpack.c.l.bf16 %v635
        %v1437 = vunpack.c.h.bf16 %v635
        %v1438 = vunpack.c.l.bf16 %v636
        %v1439 = vunpack.c.h.bf16 %v636
        %v1440 = vunpack.c.l.bf16 %v637
        %v1441 = vunpack.c.h.bf16 %v637
        %v1442 = vunpack.c.l.bf16 %v638
        %v1443 = vunpack.c.h.bf16 %v638
        %v1444 = vunpack.c.l.bf16 %v639
        %v1445 = vunpack.c.h.bf16 %v639
        %v1446 = vunpack.c.l.bf16 %v640
        %v1447 = vunpack.c.h.bf16 %v640
        %v1448 = vunpack.c.l.bf16 %v641
        %v1449 = vunpack.c.h.bf16 %v641
        %v1450 = vunpack.c.l.bf16 %v642
        %v1451 = vunpack.c.h.bf16 %v642
        %v1452 = vunpack.c.l.bf16 %v643
        %v1453 = vunpack.c.h.bf16 %v643
        %v1454 = vunpack.c.l.bf16 %v644
        %v1455 = vunpack.c.h.bf16 %v644
        %v1456 = vunpack.c.l.bf16 %v645
        %v1457 = vunpack.c.h.bf16 %v645
        %v1458 = vunpack.c.l.bf16 %v646
        %v1459 = vunpack.c.h.bf16 %v646
        %v1460 = vunpack.c.l.bf16 %v647
        %v1461 = vunpack.c.h.bf16 %v647
        %v1462 = vunpack.c.l.bf16 %v648
        %v1463 = vunpack.c.h.bf16 %v648
        %v1464 = vunpack.c.l.bf16 %v649
        %v1465 = vunpack.c.h.bf16 %v649
        %v1466 = vunpack.c.l.bf16 %v650
        %v1467 = vunpack.c.h.bf16 %v650
        %v1468 = vunpack.c.l.bf16 %v651
        %v1469 = vunpack.c.h.bf16 %v651
        %v1470 = vunpack.c.l.bf16 %v652
        %v1471 = vunpack.c.h.bf16 %v652
        %v1472 = vunpack.c.l.bf16 %v653
        %v1473 = vunpack.c.h.bf16 %v653
        %v1474 = vunpack.c.l.bf16 %v654
        %v1475 = vunpack.c.h.bf16 %v654
        %v1476 = vunpack.c.l.bf16 %v655
        %v1477 = vunpack.c.h.bf16 %v655
        %v1478 = vunpack.c.l.bf16 %v656
        %v1479 = vunpack.c.h.bf16 %v656
        %v1480 = vunpack.c.l.bf16 %v657
        %v1481 = vunpack.c.h.bf16 %v657
        %v1482 = vunpack.c.l.bf16 %v658
        %v1483 = vunpack.c.h.bf16 %v658
        %v1484 = vunpack.c.l.bf16 %v659
        %v1485 = vunpack.c.h.bf16 %v659
        %v1486 = vunpack.c.l.bf16 %v660
        %v1487 = vunpack.c.h.bf16 %v660
        %v1488 = vunpack.c.l.bf16 %v661
        %v1489 = vunpack.c.h.bf16 %v661
        %v1490 = vunpack.c.l.bf16 %v662
        %v1491 = vunpack.c.h.bf16 %v662
        %v1492 = vunpack.c.l.bf16 %v663
        %v1493 = vunpack.c.h.bf16 %v663
        %v1494 = vunpack.c.l.bf16 %v664
        %v1495 = vunpack.c.h.bf16 %v664
        %v1496 = vunpack.c.l.bf16 %v665
        %v1497 = vunpack.c.h.bf16 %v665
        %v1498 = vunpack.c.l.bf16 %v666
        %v1499 = vunpack.c.h.bf16 %v666
        %v1500 = vunpack.c.l.bf16 %v667
        %v1501 = vunpack.c.h.bf16 %v667
        %v1502 = vunpack.c.l.bf16 %v668
        %v1503 = vunpack.c.h.bf16 %v668
        %v1504 = vunpack.c.l.bf16 %v669
        %v1505 = vunpack.c.h.bf16 %v669
        %v1506 = vunpack.c.l.bf16 %v670
        %v1507 = vunpack.c.h.bf16 %v670
        %v1508 = vunpack.c.l.bf16 %v671
        %v1509 = vunpack.c.h.bf16 %v671
        %v1510 = vunpack.c.l.bf16 %v672
        %v1511 = vunpack.c.h.bf16 %v672
        %v1512 = vunpack.c.l.bf16 %v673
        %v1513 = vunpack.c.h.bf16 %v673
        %v1514 = vunpack.c.l.bf16 %v674
        %v1515 = vunpack.c.h.bf16 %v674
        %v1516 = vunpack.c.l.bf16 %v675
        %v1517 = vunpack.c.h.bf16 %v675
        %v1518 = vunpack.c.l.bf16 %v676
        %v1519 = vunpack.c.h.bf16 %v676
        %v1520 = vunpack.c.l.bf16 %v677
        %v1521 = vunpack.c.h.bf16 %v677
        %v1522 = vunpack.c.l.bf16 %v678
        %v1523 = vunpack.c.h.bf16 %v678
        %v1524 = vunpack.c.l.bf16 %v679
        %v1525 = vunpack.c.h.bf16 %v679
        %v1526 = vunpack.c.l.bf16 %v680
        %v1527 = vunpack.c.h.bf16 %v680
        %v1528 = vunpack.c.l.bf16 %v681
        %v1529 = vunpack.c.h.bf16 %v681
        %v1530 = vunpack.c.l.bf16 %v682
        %v1531 = vunpack.c.h.bf16 %v682
        %v1532 = vunpack.c.l.bf16 %v683
        %v1533 = vunpack.c.h.bf16 %v683
        %v1534 = vunpack.c.l.bf16 %v684
        %v1535 = vunpack.c.h.bf16 %v684
        %v1536 = vunpack.c.l.bf16 %v685
        %v1537 = vunpack.c.h.bf16 %v685
        %v1538 = vunpack.c.l.bf16 %v686
        %v1539 = vunpack.c.h.bf16 %v686
        %v1540 = vunpack.c.l.bf16 %v687
        %v1541 = vunpack.c.h.bf16 %v687
        %v1542 = vunpack.c.l.bf16 %v688
        %v1543 = vunpack.c.h.bf16 %v688
        %v1544 = vunpack.c.l.bf16 %v689
        %v1545 = vunpack.c.h.bf16 %v689
        %v1546 = vunpack.c.l.bf16 %v690
        %v1547 = vunpack.c.h.bf16 %v690
        %v1548 = vunpack.c.l.bf16 %v691
        %v1549 = vunpack.c.h.bf16 %v691
        %v1550 = vunpack.c.l.bf16 %v692
        %v1551 = vunpack.c.h.bf16 %v692
        %v1552 = vunpack.c.l.bf16 %v693
        %v1553 = vunpack.c.h.bf16 %v693
        %v1554 = vunpack.c.l.bf16 %v694
        %v1555 = vunpack.c.h.bf16 %v694
        %v1556 = vunpack.c.l.bf16 %v695
        %v1557 = vunpack.c.h.bf16 %v695
        %v1558 = vunpack.c.l.bf16 %v696
        %v1559 = vunpack.c.h.bf16 %v696
        %v1560 = vunpack.c.l.bf16 %v697
        %v1561 = vunpack.c.h.bf16 %v697
        %v1562 = vunpack.c.l.bf16 %v698
        %v1563 = vunpack.c.h.bf16 %v698
        %v1564 = vunpack.c.l.bf16 %v699
        %v1565 = vunpack.c.h.bf16 %v699
        %v1566 = vunpack.c.l.bf16 %v700
        %v1567 = vunpack.c.h.bf16 %v700
        %v1568 = vunpack.c.l.bf16 %v701
        %v1569 = vunpack.c.h.bf16 %v701
        %v1570 = vunpack.c.l.bf16 %v702
        %v1571 = vunpack.c.h.bf16 %v702
        %v1572 = vunpack.c.l.bf16 %v703
        %v1573 = vunpack.c.h.bf16 %v703
        %v1574 = vunpack.c.l.bf16 %v704
        %v1575 = vunpack.c.h.bf16 %v704
        %v1576 = vunpack.c.l.bf16 %v705
        %v1577 = vunpack.c.h.bf16 %v705
        %v1578 = vunpack.c.l.bf16 %v706
        %v1579 = vunpack.c.h.bf16 %v706
        %v1580 = vunpack.c.l.bf16 %v707
        %v1581 = vunpack.c.h.bf16 %v707
        %v1582 = vunpack.c.l.bf16 %v708
        %v1583 = vunpack.c.h.bf16 %v708
        %v1584 = vunpack.c.l.bf16 %v709
        %v1585 = vunpack.c.h.bf16 %v709
        %v1586 = vunpack.c.l.bf16 %v710
        %v1587 = vunpack.c.h.bf16 %v710
        %v1588 = vunpack.c.l.bf16 %v711
        %v1589 = vunpack.c.h.bf16 %v711
        %v1590 = vunpack.c.l.bf16 %v712
        %v1591 = vunpack.c.h.bf16 %v712
        %v1592 = vunpack.c.l.bf16 %v713
        %v1593 = vunpack.c.h.bf16 %v713
        %v1594 = vunpack.c.l.bf16 %v714
        %v1595 = vunpack.c.h.bf16 %v714
        %v1596 = vunpack.c.l.bf16 %v715
        %v1597 = vunpack.c.h.bf16 %v715
        %v1598 = vunpack.c.l.bf16 %v716
        %v1599 = vunpack.c.h.bf16 %v716
        %v1600 = vunpack.c.l.bf16 %v717
        %v1601 = vunpack.c.h.bf16 %v717
        %v1602 = vunpack.c.l.bf16 %v718
        %v1603 = vunpack.c.h.bf16 %v718
        %v1604 = vunpack.c.l.bf16 %v719
        %v1605 = vunpack.c.h.bf16 %v719
        %v1606 = vunpack.c.l.bf16 %v720
        %v1607 = vunpack.c.h.bf16 %v720
        %v1608 = vunpack.c.l.bf16 %v721
        %v1609 = vunpack.c.h.bf16 %v721
        %v1610 = vunpack.c.l.bf16 %v722
        %v1611 = vunpack.c.h.bf16 %v722
        %v1612 = vunpack.c.l.bf16 %v723
        %v1613 = vunpack.c.h.bf16 %v723
        %v1614 = vunpack.c.l.bf16 %v724
        %v1615 = vunpack.c.h.bf16 %v724
        %v1616 = vunpack.c.l.bf16 %v725
        %v1617 = vunpack.c.h.bf16 %v725
        %v1618 = vunpack.c.l.bf16 %v726
        %v1619 = vunpack.c.h.bf16 %v726
        %v1620 = vunpack.c.l.bf16 %v727
        %v1621 = vunpack.c.h.bf16 %v727
        %v1622 = vunpack.c.l.bf16 %v728
        %v1623 = vunpack.c.h.bf16 %v728
        %v1624 = vunpack.c.l.bf16 %v729
        %v1625 = vunpack.c.h.bf16 %v729
        %v1626 = vunpack.c.l.bf16 %v730
        %v1627 = vunpack.c.h.bf16 %v730
        %v1628 = vunpack.c.l.bf16 %v731
        %v1629 = vunpack.c.h.bf16 %v731
        %v1630 = vunpack.c.l.bf16 %v732
        %v1631 = vunpack.c.h.bf16 %v732
        %v1632 = vunpack.c.l.bf16 %v733
        %v1633 = vunpack.c.h.bf16 %v733
        %v1634 = vunpack.c.l.bf16 %v734
        %v1635 = vunpack.c.h.bf16 %v734
        %v1636 = vunpack.c.l.bf16 %v735
        %v1637 = vunpack.c.h.bf16 %v735
        %v1638 = vunpack.c.l.bf16 %v736
        %v1639 = vunpack.c.h.bf16 %v736
        %v1640 = vunpack.c.l.bf16 %v737
        %v1641 = vunpack.c.h.bf16 %v737
        %v1642 = vunpack.c.l.bf16 %v738
        %v1643 = vunpack.c.h.bf16 %v738
        %v1644 = vunpack.c.l.bf16 %v739
        %v1645 = vunpack.c.h.bf16 %v739
        %v1646 = vunpack.c.l.bf16 %v740
        %v1647 = vunpack.c.h.bf16 %v740
        %v1648 = vunpack.c.l.bf16 %v741
        %v1649 = vunpack.c.h.bf16 %v741
        %v1650 = vunpack.c.l.bf16 %v742
        %v1651 = vunpack.c.h.bf16 %v742
        %v1652 = vunpack.c.l.bf16 %v743
        %v1653 = vunpack.c.h.bf16 %v743
        %v1654 = vunpack.c.l.bf16 %v744
        %v1655 = vunpack.c.h.bf16 %v744
        %v1656 = vunpack.c.l.bf16 %v745
        %v1657 = vunpack.c.h.bf16 %v745
        %v1658 = vunpack.c.l.bf16 %v746
        %v1659 = vunpack.c.h.bf16 %v746
        %v1660 = vunpack.c.l.bf16 %v747
        %v1661 = vunpack.c.h.bf16 %v747
        %v1662 = vunpack.c.l.bf16 %v748
        %v1663 = vunpack.c.h.bf16 %v748
        %v1664 = vunpack.c.l.bf16 %v749
        %v1665 = vunpack.c.h.bf16 %v749
        %v1666 = vunpack.c.l.bf16 %v750
        %v1667 = vunpack.c.h.bf16 %v750
        %v1668 = vunpack.c.l.bf16 %v751
        %v1669 = vunpack.c.h.bf16 %v751
        %v1670 = vunpack.c.l.bf16 %v752
        %v1671 = vunpack.c.h.bf16 %v752
        %v1672 = vunpack.c.l.bf16 %v753
        %v1673 = vunpack.c.h.bf16 %v753
        %v1674 = vunpack.c.l.bf16 %v754
        %v1675 = vunpack.c.h.bf16 %v754
        %v1676 = vunpack.c.l.bf16 %v755
        %v1677 = vunpack.c.h.bf16 %v755
        %v1678 = vunpack.c.l.bf16 %v756
        %v1679 = vunpack.c.h.bf16 %v756
        %v1680 = vunpack.c.l.bf16 %v757
        %v1681 = vunpack.c.h.bf16 %v757
        %v1682 = vunpack.c.l.bf16 %v758
        %v1683 = vunpack.c.h.bf16 %v758
        %v1684 = vunpack.c.l.bf16 %v759
        %v1685 = vunpack.c.h.bf16 %v759
        %v1686 = vunpack.c.l.bf16 %v760
        %v1687 = vunpack.c.h.bf16 %v760
        %v1688 = vunpack.c.l.bf16 %v761
        %v1689 = vunpack.c.h.bf16 %v761
        %v1690 = vunpack.c.l.bf16 %v762
        %v1691 = vunpack.c.h.bf16 %v762
        %v1692 = vunpack.c.l.bf16 %v763
        %v1693 = vunpack.c.h.bf16 %v763
        %v1694 = vunpack.c.l.bf16 %v764
        %v1695 = vunpack.c.h.bf16 %v764
        %v1696 = vunpack.c.l.bf16 %v765
        %v1697 = vunpack.c.h.bf16 %v765
        %v1698 = vunpack.c.l.bf16 %v766
        %v1699 = vunpack.c.h.bf16 %v766
        %v1700 = vunpack.c.l.bf16 %v767
        %v1701 = vunpack.c.h.bf16 %v767
        %v1702 = vunpack.c.l.bf16 %v768
        %v1703 = vunpack.c.h.bf16 %v768
        %v1704 = vunpack.c.l.bf16 %v769
        %v1705 = vunpack.c.h.bf16 %v769
        %v1706 = vunpack.c.l.bf16 %v770
        %v1707 = vunpack.c.h.bf16 %v770
        %v1708 = vunpack.c.l.bf16 %v771
        %v1709 = vunpack.c.h.bf16 %v771
        %v1710 = vunpack.c.l.bf16 %v772
        %v1711 = vunpack.c.h.bf16 %v772
        %v1712 = vunpack.c.l.bf16 %v773
        %v1713 = vunpack.c.h.bf16 %v773
        %v1714 = vunpack.c.l.bf16 %v774
        %v1715 = vunpack.c.h.bf16 %v774
        %v1716 = vunpack.c.l.bf16 %v775
        %v1717 = vunpack.c.h.bf16 %v775
        %v1718 = vunpack.c.l.bf16 %v776
        %v1719 = vunpack.c.h.bf16 %v776
        %v1720 = vunpack.c.l.bf16 %v777
        %v1721 = vunpack.c.h.bf16 %v777
        %v1722 = vunpack.c.l.bf16 %v778
        %v1723 = vunpack.c.h.bf16 %v778
        %v1724 = vunpack.c.l.bf16 %v779
        %v1725 = vunpack.c.h.bf16 %v779
        %v1726 = vunpack.c.l.bf16 %v780
        %v1727 = vunpack.c.h.bf16 %v780
        %v1728 = vunpack.c.l.bf16 %v781
        %v1729 = vunpack.c.h.bf16 %v781
        %v1730 = vunpack.c.l.bf16 %v782
        %v1731 = vunpack.c.h.bf16 %v782
        %v1732 = vunpack.c.l.bf16 %v783
        %v1733 = vunpack.c.h.bf16 %v783
        %v1734 = vunpack.c.l.bf16 %v784
        %v1735 = vunpack.c.h.bf16 %v784
        %v1736 = vunpack.c.l.bf16 %v785
        %v1737 = vunpack.c.h.bf16 %v785
        %v1738 = vunpack.c.l.bf16 %v786
        %v1739 = vunpack.c.h.bf16 %v786
        %v1740 = vunpack.c.l.bf16 %v787
        %v1741 = vunpack.c.h.bf16 %v787
        %v1742 = vunpack.c.l.bf16 %v788
        %v1743 = vunpack.c.h.bf16 %v788
        %v1744 = vunpack.c.l.bf16 %v789
        %v1745 = vunpack.c.h.bf16 %v789
        %v1746 = vunpack.c.l.bf16 %v790
        %v1747 = vunpack.c.h.bf16 %v790
        %v1748 = vunpack.c.l.bf16 %v791
        %v1749 = vunpack.c.h.bf16 %v791
        %v1750 = vunpack.c.l.bf16 %v792
        %v1751 = vunpack.c.h.bf16 %v792
        %v1752 = vunpack.c.l.bf16 %v793
        %v1753 = vunpack.c.h.bf16 %v793
        %v1754 = vunpack.c.l.bf16 %v794
        %v1755 = vunpack.c.h.bf16 %v794
        %v1756 = vunpack.c.l.bf16 %v795
        %v1757 = vunpack.c.h.bf16 %v795
        %v1758 = vunpack.c.l.bf16 %v796
        %v1759 = vunpack.c.h.bf16 %v796
        %v1760 = vunpack.c.l.bf16 %v797
        %v1761 = vunpack.c.h.bf16 %v797
        %v1762 = vunpack.c.l.bf16 %v798
        %v1763 = vunpack.c.h.bf16 %v798
        %v1764 = vunpack.c.l.bf16 %v799
        %v1765 = vunpack.c.h.bf16 %v799
        %v1766 = vunpack.c.l.bf16 %v800
        %v1767 = vunpack.c.h.bf16 %v800
        %v1768 = vunpack.c.l.bf16 %v801
        %v1769 = vunpack.c.h.bf16 %v801
        %v1770 = vunpack.c.l.bf16 %v802
        %v1771 = vunpack.c.h.bf16 %v802
        %v1772 = vunpack.c.l.bf16 %v803
        %v1773 = vunpack.c.h.bf16 %v803
        %v1774 = vunpack.c.l.bf16 %v804
        %v1775 = vunpack.c.h.bf16 %v804
        %v1776 = vunpack.c.l.bf16 %v805
        %v1777 = vunpack.c.h.bf16 %v805
        %v1778 = vunpack.c.l.bf16 %v806
        %v1779 = vunpack.c.h.bf16 %v806
        %v1780 = vunpack.c.l.bf16 %v807
        %v1781 = vunpack.c.h.bf16 %v807
        %v1782 = vunpack.c.l.bf16 %v808
        %v1783 = vunpack.c.h.bf16 %v808
        %v1784 = vunpack.c.l.bf16 %v809
        %v1785 = vunpack.c.h.bf16 %v809
        %v1786 = vunpack.c.l.bf16 %v810
        %v1787 = vunpack.c.h.bf16 %v810
        %v1788 = vunpack.c.l.bf16 %v811
        %v1789 = vunpack.c.h.bf16 %v811
        %v1790 = vunpack.c.l.bf16 %v812
        %v1791 = vunpack.c.h.bf16 %v812
        %v1792 = vunpack.c.l.bf16 %v813
        %v1793 = vunpack.c.h.bf16 %v813
        %v1794 = vunpack.c.l.bf16 %v814
        %v1795 = vunpack.c.h.bf16 %v814
        %v1796 = vunpack.c.l.bf16 %v815
        %v1797 = vunpack.c.h.bf16 %v815
        %v1798 = vunpack.c.l.bf16 %v816
        %v1799 = vunpack.c.h.bf16 %v816
        %v1800 = vunpack.c.l.bf16 %v817
        %v1801 = vunpack.c.h.bf16 %v817
        %v1802 = vunpack.c.l.bf16 %v818
        %v1803 = vunpack.c.h.bf16 %v818
        %v1804 = vunpack.c.l.bf16 %v819
        %v1805 = vunpack.c.h.bf16 %v819
        %v1806 = vunpack.c.l.bf16 %v820
        %v1807 = vunpack.c.h.bf16 %v820
        %v1808 = vunpack.c.l.bf16 %v821
        %v1809 = vunpack.c.h.bf16 %v821
        %v1810 = vunpack.c.l.bf16 %v822
        %v1811 = vunpack.c.h.bf16 %v822
        %v1812 = vunpack.c.l.bf16 %v823
        %v1813 = vunpack.c.h.bf16 %v823
        %v1814 = vunpack.c.l.bf16 %v824
        %v1815 = vunpack.c.h.bf16 %v824
        %v1816 = vunpack.c.l.bf16 %v825
        %v1817 = vunpack.c.h.bf16 %v825
        %v1818 = vunpack.c.l.bf16 %v826
        %v1819 = vunpack.c.h.bf16 %v826
        %v1820 = vunpack.c.l.bf16 %v827
        %v1821 = vunpack.c.h.bf16 %v827
        %v1822 = vunpack.c.l.bf16 %v828
        %v1823 = vunpack.c.h.bf16 %v828
        %v1824 = vunpack.c.l.bf16 %v829
        %v1825 = vunpack.c.h.bf16 %v829
        %v1826 = vunpack.c.l.bf16 %v830
        %v1827 = vunpack.c.h.bf16 %v830
        %v1828 = vunpack.c.l.bf16 %v831
        %v1829 = vunpack.c.h.bf16 %v831
        %v1830 = vunpack.c.l.bf16 %v832
        %v1831 = vunpack.c.h.bf16 %v832
        %v1832 = vunpack.c.l.bf16 %v833
        %v1833 = vunpack.c.h.bf16 %v833
        %v1834 = vunpack.c.l.bf16 %v834
        %v1835 = vunpack.c.h.bf16 %v834
        %v1836 = vunpack.c.l.bf16 %v835
        %v1837 = vunpack.c.h.bf16 %v835
        %v1838 = vunpack.c.l.bf16 %v836
        %v1839 = vunpack.c.h.bf16 %v836
        %v1840 = vunpack.c.l.bf16 %v837
        %v1841 = vunpack.c.h.bf16 %v837
        %v1842 = vunpack.c.l.bf16 %v838
        %v1843 = vunpack.c.h.bf16 %v838
        %v1844 = vunpack.c.l.bf16 %v839
        %v1845 = vunpack.c.h.bf16 %v839
        %v1846 = vunpack.c.l.bf16 %v840
        %v1847 = vunpack.c.h.bf16 %v840
        %v1848 = vunpack.c.l.bf16 %v841
        %v1849 = vunpack.c.h.bf16 %v841
        %v1850 = vunpack.c.l.bf16 %v842
        %v1851 = vunpack.c.h.bf16 %v842
        %v1852 = vunpack.c.l.bf16 %v843
        %v1853 = vunpack.c.h.bf16 %v843
        %v1854 = vunpack.c.l.bf16 %v844
        %v1855 = vunpack.c.h.bf16 %v844
        %v1856 = vunpack.c.l.bf16 %v845
        %v1857 = vunpack.c.h.bf16 %v845
        %v1858 = vunpack.c.l.bf16 %v846
        %v1859 = vunpack.c.h.bf16 %v846
        %v1860 = vunpack.c.l.bf16 %v847
        %v1861 = vunpack.c.h.bf16 %v847
        %v1862 = vunpack.c.l.bf16 %v848
        %v1863 = vunpack.c.h.bf16 %v848
        %v1864 = vunpack.c.l.bf16 %v849
        %v1865 = vunpack.c.h.bf16 %v849
        %v1866 = vunpack.c.l.bf16 %v850
        %v1867 = vunpack.c.h.bf16 %v850
        %v1868 = vunpack.c.l.bf16 %v851
        %v1869 = vunpack.c.h.bf16 %v851
        %v1870 = vunpack.c.l.bf16 %v852
        %v1871 = vunpack.c.h.bf16 %v852
        %v1872 = vunpack.c.l.bf16 %v853
        %v1873 = vunpack.c.h.bf16 %v853
        %v1874 = vunpack.c.l.bf16 %v854
        %v1875 = vunpack.c.h.bf16 %v854
        %v1876 = vunpack.c.l.bf16 %v855
        %v1877 = vunpack.c.h.bf16 %v855
        %v1878 = vunpack.c.l.bf16 %v856
        %v1879 = vunpack.c.h.bf16 %v856
        %v1880 = vunpack.c.l.bf16 %v857
        %v1881 = vunpack.c.h.bf16 %v857
        %v1890 = vcombine.high %v338, %v338
        %v1892 = vunpack.c.l.s4 1983009808
        %v1893 = vunpack.c.0.s8 %v1892
        %v1894 = vlaneseq
        %v1895 = vshrl.u32 %v1894, 7
        %v1896 = vsub.s32 %v1893, %v1895
        %v1897 = vrot.slane %v338, %v1896
        %v1899 = vunpack.c.l.s4 1983009808
        %v1900 = vunpack.c.0.s8 %v1899
        %v1901 = vlaneseq
        %v1902 = vshrl.u32 %v1901, 7
        %v1903 = vsub.s32 %v1900, %v1902
        %v1904 = vrot.slane %v1890, %v1903
        %v1905 = vcombine.high %v1897, %v1897
        %v1906 = vcombine.high %v1904, %v1904
        %v1907 = vcombine.high %v339, %v339
        %v1909 = vunpack.c.l.s4 1983009808
        %v1910 = vunpack.c.0.s8 %v1909
        %v1911 = vlaneseq
        %v1912 = vshrl.u32 %v1911, 7
        %v1913 = vsub.s32 %v1910, %v1912
        %v1914 = vrot.slane %v339, %v1913
        %v1916 = vunpack.c.l.s4 1983009808
        %v1917 = vunpack.c.0.s8 %v1916
        %v1918 = vlaneseq
        %v1919 = vshrl.u32 %v1918, 7
        %v1920 = vsub.s32 %v1917, %v1919
        %v1921 = vrot.slane %v1907, %v1920
        %v1922 = vcombine.high %v1914, %v1914
        %v1923 = vcombine.high %v1921, %v1921
        %v1924 = vcombine.high %v340, %v340
        %v1926 = vunpack.c.l.s4 1983009808
        %v1927 = vunpack.c.0.s8 %v1926
        %v1928 = vlaneseq
        %v1929 = vshrl.u32 %v1928, 7
        %v1930 = vsub.s32 %v1927, %v1929
        %v1931 = vrot.slane %v340, %v1930
        %v1933 = vunpack.c.l.s4 1983009808
        %v1934 = vunpack.c.0.s8 %v1933
        %v1935 = vlaneseq
        %v1936 = vshrl.u32 %v1935, 7
        %v1937 = vsub.s32 %v1934, %v1936
        %v1938 = vrot.slane %v1924, %v1937
        %v1939 = vcombine.high %v1931, %v1931
        %v1940 = vcombine.high %v1938, %v1938
        %v1941 = vcombine.high %v341, %v341
        %v1943 = vunpack.c.l.s4 1983009808
        %v1944 = vunpack.c.0.s8 %v1943
        %v1945 = vlaneseq
        %v1946 = vshrl.u32 %v1945, 7
        %v1947 = vsub.s32 %v1944, %v1946
        %v1948 = vrot.slane %v341, %v1947
        %v1950 = vunpack.c.l.s4 1983009808
        %v1951 = vunpack.c.0.s8 %v1950
        %v1952 = vlaneseq
        %v1953 = vshrl.u32 %v1952, 7
        %v1954 = vsub.s32 %v1951, %v1953
        %v1955 = vrot.slane %v1941, %v1954
        %v1956 = vcombine.high %v1948, %v1948
        %v1957 = vcombine.high %v1955, %v1955
        %v1958 = vcombine.high %v342, %v342
        %v1960 = vunpack.c.l.s4 1983009808
        %v1961 = vunpack.c.0.s8 %v1960
        %v1962 = vlaneseq
        %v1963 = vshrl.u32 %v1962, 7
        %v1964 = vsub.s32 %v1961, %v1963
        %v1965 = vrot.slane %v342, %v1964
        %v1967 = vunpack.c.l.s4 1983009808
        %v1968 = vunpack.c.0.s8 %v1967
        %v1969 = vlaneseq
        %v1970 = vshrl.u32 %v1969, 7
        %v1971 = vsub.s32 %v1968, %v1970
        %v1972 = vrot.slane %v1958, %v1971
        %v1973 = vcombine.high %v1965, %v1965
        %v1974 = vcombine.high %v1972, %v1972
        %v1975 = vcombine.high %v343, %v343
        %v1977 = vunpack.c.l.s4 1983009808
        %v1978 = vunpack.c.0.s8 %v1977
        %v1979 = vlaneseq
        %v1980 = vshrl.u32 %v1979, 7
        %v1981 = vsub.s32 %v1978, %v1980
        %v1982 = vrot.slane %v343, %v1981
        %v1984 = vunpack.c.l.s4 1983009808
        %v1985 = vunpack.c.0.s8 %v1984
        %v1986 = vlaneseq
        %v1987 = vshrl.u32 %v1986, 7
        %v1988 = vsub.s32 %v1985, %v1987
        %v1989 = vrot.slane %v1975, %v1988
        %v1990 = vcombine.high %v1982, %v1982
        %v1991 = vcombine.high %v1989, %v1989
        %v1992 = vcombine.high %v344, %v344
        %v1994 = vunpack.c.l.s4 1983009808
        %v1995 = vunpack.c.0.s8 %v1994
        %v1996 = vlaneseq
        %v1997 = vshrl.u32 %v1996, 7
        %v1998 = vsub.s32 %v1995, %v1997
        %v1999 = vrot.slane %v344, %v1998
        %v2001 = vunpack.c.l.s4 1983009808
        %v2002 = vunpack.c.0.s8 %v2001
        %v2003 = vlaneseq
        %v2004 = vshrl.u32 %v2003, 7
        %v2005 = vsub.s32 %v2002, %v2004
        %v2006 = vrot.slane %v1992, %v2005
        %v2007 = vcombine.high %v1999, %v1999
        %v2008 = vcombine.high %v2006, %v2006
        %v2009 = vcombine.high %v345, %v345
        %v2011 = vunpack.c.l.s4 1983009808
        %v2012 = vunpack.c.0.s8 %v2011
        %v2013 = vlaneseq
        %v2014 = vshrl.u32 %v2013, 7
        %v2015 = vsub.s32 %v2012, %v2014
        %v2016 = vrot.slane %v345, %v2015
        %v2018 = vunpack.c.l.s4 1983009808
        %v2019 = vunpack.c.0.s8 %v2018
        %v2020 = vlaneseq
        %v2021 = vshrl.u32 %v2020, 7
        %v2022 = vsub.s32 %v2019, %v2021
        %v2023 = vrot.slane %v2009, %v2022
        %v2024 = vcombine.high %v2016, %v2016
        %v2025 = vcombine.high %v2023, %v2023
        %2058 = vmatprep.subr.mxu0 %v859
        %2059 = vmatpush1.msra.mxu0 %v858
        %2060 = vmatprep.subr.mxu0 %v861
        %2061 = vmatpush1.msra.mxu0 %v860
        %2062 = vmatprep.subr.mxu0 %v863
        %2063 = vmatpush1.msra.mxu0 %v862
        %2064 = vmatprep.subr.mxu0 %v865
        %2065 = vmatpush1.msra.mxu0 %v864
        %2066 = vmatprep.subr.mxu0 %v867
        %2067 = vmatpush1.msra.mxu0 %v866
        %2068 = vmatprep.subr.mxu0 %v869
        %2069 = vmatpush1.msra.mxu0 %v868
        %2070 = vmatprep.subr.mxu0 %v871
        %2071 = vmatpush1.msra.mxu0 %v870
        %2072 = vmatprep.subr.mxu0 %v873
        %2073 = vmatpush1.msra.mxu0 %v872
        %2074 = vmatprep.subr.mxu0 %v875
        %2075 = vmatpush1.msra.mxu0 %v874
        %2076 = vmatprep.subr.mxu0 %v877
        %2077 = vmatpush1.msra.mxu0 %v876
        %2078 = vmatprep.subr.mxu0 %v879
        %2079 = vmatpush1.msra.mxu0 %v878
        %2080 = vmatprep.subr.mxu0 %v881
        %2081 = vmatpush1.msra.mxu0 %v880
        %2082 = vmatprep.subr.mxu0 %v883
        %2083 = vmatpush1.msra.mxu0 %v882
        %2084 = vmatprep.subr.mxu0 %v885
        %2085 = vmatpush1.msra.mxu0 %v884
        %2086 = vmatprep.subr.mxu0 %v887
        %2087 = vmatpush1.msra.mxu0 %v886
        %2088 = vmatprep.subr.mxu0 %v889
        %2089 = vmatpush1.msra.mxu0 %v888
        %2090 = vmatprep.subr.mxu0 %v891
        %2091 = vmatpush1.msra.mxu0 %v890
        %2092 = vmatprep.subr.mxu0 %v893
        %2093 = vmatpush1.msra.mxu0 %v892
        %2094 = vmatprep.subr.mxu0 %v895
        %2095 = vmatpush1.msra.mxu0 %v894
        %2096 = vmatprep.subr.mxu0 %v897
        %2097 = vmatpush1.msra.mxu0 %v896
        %2098 = vmatprep.subr.mxu0 %v899
        %2099 = vmatpush1.msra.mxu0 %v898
        %2100 = vmatprep.subr.mxu0 %v901
        %2101 = vmatpush1.msra.mxu0 %v900
        %2102 = vmatprep.subr.mxu0 %v903
        %2103 = vmatpush1.msra.mxu0 %v902
        %2104 = vmatprep.subr.mxu0 %v905
        %2105 = vmatpush1.msra.mxu0 %v904
        %2106 = vmatprep.subr.mxu0 %v907
        %2107 = vmatpush1.msra.mxu0 %v906
        %2108 = vmatprep.subr.mxu0 %v909
        %2109 = vmatpush1.msra.mxu0 %v908
        %2110 = vmatprep.subr.mxu0 %v911
        %2111 = vmatpush1.msra.mxu0 %v910
        %2112 = vmatprep.subr.mxu0 %v913
        %2113 = vmatpush1.msra.mxu0 %v912
        %2114 = vmatprep.subr.mxu0 %v915
        %2115 = vmatpush1.msra.mxu0 %v914
        %2116 = vmatprep.subr.mxu0 %v917
        %2117 = vmatpush1.msra.mxu0 %v916
        %2118 = vmatprep.subr.mxu0 %v919
        %2119 = vmatpush1.msra.mxu0 %v918
        %2120 = vmatprep.subr.mxu0 %v921
        %2121 = vmatpush1.msra.mxu0 %v920
        %2122 = vmatprep.mubr.f32.mxu0 %v1905
        %2123 = vmatmul.mubr.f32.gmra.mrb[0].mxu0 %v1897
        %v2124 = vpop.f32.mrb[0].mxu0
        %v2125 = vadd.f32 0.0, %v2124
        %v2126 = vpop.f32.mrb[0].mxu0
        %v2127 = vadd.f32 0.0, %v2126
        %2128 = vdwg.mxu0
        %2129 = vmatprep.subr.mxu0 %v923
        %2130 = vmatpush1.msra.mxu0 %v922
        %2131 = vmatprep.subr.mxu0 %v925
        %2132 = vmatpush1.msra.mxu0 %v924
        %2133 = vmatprep.subr.mxu0 %v927
        %2134 = vmatpush1.msra.mxu0 %v926
        %2135 = vmatprep.subr.mxu0 %v929
        %2136 = vmatpush1.msra.mxu0 %v928
        %2137 = vmatprep.subr.mxu0 %v931
        %2138 = vmatpush1.msra.mxu0 %v930
        %2139 = vmatprep.subr.mxu0 %v933
        %2140 = vmatpush1.msra.mxu0 %v932
        %2141 = vmatprep.subr.mxu0 %v935
        %2142 = vmatpush1.msra.mxu0 %v934
        %2143 = vmatprep.subr.mxu0 %v937
        %2144 = vmatpush1.msra.mxu0 %v936
        %2145 = vmatprep.subr.mxu0 %v939
        %2146 = vmatpush1.msra.mxu0 %v938
        %2147 = vmatprep.subr.mxu0 %v941
        %2148 = vmatpush1.msra.mxu0 %v940
        %2149 = vmatprep.subr.mxu0 %v943
        %2150 = vmatpush1.msra.mxu0 %v942
        %2151 = vmatprep.subr.mxu0 %v945
        %2152 = vmatpush1.msra.mxu0 %v944
        %2153 = vmatprep.subr.mxu0 %v947
        %2154 = vmatpush1.msra.mxu0 %v946
        %2155 = vmatprep.subr.mxu0 %v949
        %2156 = vmatpush1.msra.mxu0 %v948
        %2157 = vmatprep.subr.mxu0 %v951
        %2158 = vmatpush1.msra.mxu0 %v950
        %2159 = vmatprep.subr.mxu0 %v953
        %2160 = vmatpush1.msra.mxu0 %v952
        %2161 = vmatprep.subr.mxu0 %v955
        %2162 = vmatpush1.msra.mxu0 %v954
        %2163 = vmatprep.subr.mxu0 %v957
        %2164 = vmatpush1.msra.mxu0 %v956
        %2165 = vmatprep.subr.mxu0 %v959
        %2166 = vmatpush1.msra.mxu0 %v958
        %2167 = vmatprep.subr.mxu0 %v961
        %2168 = vmatpush1.msra.mxu0 %v960
        %2169 = vmatprep.subr.mxu0 %v963
        %2170 = vmatpush1.msra.mxu0 %v962
        %2171 = vmatprep.subr.mxu0 %v965
        %2172 = vmatpush1.msra.mxu0 %v964
        %2173 = vmatprep.subr.mxu0 %v967
        %2174 = vmatpush1.msra.mxu0 %v966
        %2175 = vmatprep.subr.mxu0 %v969
        %2176 = vmatpush1.msra.mxu0 %v968
        %2177 = vmatprep.subr.mxu0 %v971
        %2178 = vmatpush1.msra.mxu0 %v970
        %2179 = vmatprep.subr.mxu0 %v973
        %2180 = vmatpush1.msra.mxu0 %v972
        %2181 = vmatprep.subr.mxu0 %v975
        %2182 = vmatpush1.msra.mxu0 %v974
        %2183 = vmatprep.subr.mxu0 %v977
        %2184 = vmatpush1.msra.mxu0 %v976
        %2185 = vmatprep.subr.mxu0 %v979
        %2186 = vmatpush1.msra.mxu0 %v978
        %2187 = vmatprep.subr.mxu0 %v981
        %2188 = vmatpush1.msra.mxu0 %v980
        %2189 = vmatprep.subr.mxu0 %v983
        %2190 = vmatpush1.msra.mxu0 %v982
        %2191 = vmatprep.subr.mxu0 %v985
        %2192 = vmatpush1.msra.mxu0 %v984
        %2193 = vmatprep.mubr.f32.mxu0 %v1906
        %2194 = vmatmul.mubr.f32.gmra.mrb[0].mxu0 %v1904
        %v2195 = vpop.f32.mrb[0].mxu0
        %v2196 = vadd.f32 %v2125, %v2195
        %v2197 = vpop.f32.mrb[0].mxu0
        %v2198 = vadd.f32 %v2127, %v2197
        %2199 = vdwg.mxu0
        %2200 = vmatprep.subr.mxu0 %v987
        %2201 = vmatpush1.msra.mxu0 %v986
        %2202 = vmatprep.subr.mxu0 %v989
        %2203 = vmatpush1.msra.mxu0 %v988
        %2204 = vmatprep.subr.mxu0 %v991
        %2205 = vmatpush1.msra.mxu0 %v990
        %2206 = vmatprep.subr.mxu0 %v993
        %2207 = vmatpush1.msra.mxu0 %v992
        %2208 = vmatprep.subr.mxu0 %v995
        %2209 = vmatpush1.msra.mxu0 %v994
        %2210 = vmatprep.subr.mxu0 %v997
        %2211 = vmatpush1.msra.mxu0 %v996
        %2212 = vmatprep.subr.mxu0 %v999
        %2213 = vmatpush1.msra.mxu0 %v998
        %2214 = vmatprep.subr.mxu0 %v1001
        %2215 = vmatpush1.msra.mxu0 %v1000
        %2216 = vmatprep.subr.mxu0 %v1003
        %2217 = vmatpush1.msra.mxu0 %v1002
        %2218 = vmatprep.subr.mxu0 %v1005
        %2219 = vmatpush1.msra.mxu0 %v1004
        %2220 = vmatprep.subr.mxu0 %v1007
        %2221 = vmatpush1.msra.mxu0 %v1006
        %2222 = vmatprep.subr.mxu0 %v1009
        %2223 = vmatpush1.msra.mxu0 %v1008
        %2224 = vmatprep.subr.mxu0 %v1011
        %2225 = vmatpush1.msra.mxu0 %v1010
        %2226 = vmatprep.subr.mxu0 %v1013
        %2227 = vmatpush1.msra.mxu0 %v1012
        %2228 = vmatprep.subr.mxu0 %v1015
        %2229 = vmatpush1.msra.mxu0 %v1014
        %2230 = vmatprep.subr.mxu0 %v1017
        %2231 = vmatpush1.msra.mxu0 %v1016
        %2232 = vmatprep.subr.mxu0 %v1019
        %2233 = vmatpush1.msra.mxu0 %v1018
        %2234 = vmatprep.subr.mxu0 %v1021
        %2235 = vmatpush1.msra.mxu0 %v1020
        %2236 = vmatprep.subr.mxu0 %v1023
        %2237 = vmatpush1.msra.mxu0 %v1022
        %2238 = vmatprep.subr.mxu0 %v1025
        %2239 = vmatpush1.msra.mxu0 %v1024
        %2240 = vmatprep.subr.mxu0 %v1027
        %2241 = vmatpush1.msra.mxu0 %v1026
        %2242 = vmatprep.subr.mxu0 %v1029
        %2243 = vmatpush1.msra.mxu0 %v1028
        %2244 = vmatprep.subr.mxu0 %v1031
        %2245 = vmatpush1.msra.mxu0 %v1030
        %2246 = vmatprep.subr.mxu0 %v1033
        %2247 = vmatpush1.msra.mxu0 %v1032
        %2248 = vmatprep.subr.mxu0 %v1035
        %2249 = vmatpush1.msra.mxu0 %v1034
        %2250 = vmatprep.subr.mxu0 %v1037
        %2251 = vmatpush1.msra.mxu0 %v1036
        %2252 = vmatprep.subr.mxu0 %v1039
        %2253 = vmatpush1.msra.mxu0 %v1038
        %2254 = vmatprep.subr.mxu0 %v1041
        %2255 = vmatpush1.msra.mxu0 %v1040
        %2256 = vmatprep.subr.mxu0 %v1043
        %2257 = vmatpush1.msra.mxu0 %v1042
        %2258 = vmatprep.subr.mxu0 %v1045
        %2259 = vmatpush1.msra.mxu0 %v1044
        %2260 = vmatprep.subr.mxu0 %v1047
        %2261 = vmatpush1.msra.mxu0 %v1046
        %2262 = vmatprep.subr.mxu0 %v1049
        %2263 = vmatpush1.msra.mxu0 %v1048
        %2264 = vmatprep.mubr.f32.mxu0 %v1922
        %2265 = vmatmul.mubr.f32.gmra.mrb[0].mxu0 %v1914
        %v2266 = vpop.f32.mrb[0].mxu0
        %v2267 = vadd.f32 %v2196, %v2266
        %v2268 = vpop.f32.mrb[0].mxu0
        %v2269 = vadd.f32 %v2198, %v2268
        %2270 = vdwg.mxu0
        %2271 = vmatprep.subr.mxu0 %v1051
        %2272 = vmatpush1.msra.mxu0 %v1050
        %2273 = vmatprep.subr.mxu0 %v1053
        %2274 = vmatpush1.msra.mxu0 %v1052
        %2275 = vmatprep.subr.mxu0 %v1055
        %2276 = vmatpush1.msra.mxu0 %v1054
        %2277 = vmatprep.subr.mxu0 %v1057
        %2278 = vmatpush1.msra.mxu0 %v1056
        %2279 = vmatprep.subr.mxu0 %v1059
        %2280 = vmatpush1.msra.mxu0 %v1058
        %2281 = vmatprep.subr.mxu0 %v1061
        %2282 = vmatpush1.msra.mxu0 %v1060
        %2283 = vmatprep.subr.mxu0 %v1063
        %2284 = vmatpush1.msra.mxu0 %v1062
        %2285 = vmatprep.subr.mxu0 %v1065
        %2286 = vmatpush1.msra.mxu0 %v1064
        %2287 = vmatprep.subr.mxu0 %v1067
        %2288 = vmatpush1.msra.mxu0 %v1066
        %2289 = vmatprep.subr.mxu0 %v1069
        %2290 = vmatpush1.msra.mxu0 %v1068
        %2291 = vmatprep.subr.mxu0 %v1071
        %2292 = vmatpush1.msra.mxu0 %v1070
        %2293 = vmatprep.subr.mxu0 %v1073
        %2294 = vmatpush1.msra.mxu0 %v1072
        %2295 = vmatprep.subr.mxu0 %v1075
        %2296 = vmatpush1.msra.mxu0 %v1074
        %2297 = vmatprep.subr.mxu0 %v1077
        %2298 = vmatpush1.msra.mxu0 %v1076
        %2299 = vmatprep.subr.mxu0 %v1079
        %2300 = vmatpush1.msra.mxu0 %v1078
        %2301 = vmatprep.subr.mxu0 %v1081
        %2302 = vmatpush1.msra.mxu0 %v1080
        %2303 = vmatprep.subr.mxu0 %v1083
        %2304 = vmatpush1.msra.mxu0 %v1082
        %2305 = vmatprep.subr.mxu0 %v1085
        %2306 = vmatpush1.msra.mxu0 %v1084
        %2307 = vmatprep.subr.mxu0 %v1087
        %2308 = vmatpush1.msra.mxu0 %v1086
        %2309 = vmatprep.subr.mxu0 %v1089
        %2310 = vmatpush1.msra.mxu0 %v1088
        %2311 = vmatprep.subr.mxu0 %v1091
        %2312 = vmatpush1.msra.mxu0 %v1090
        %2313 = vmatprep.subr.mxu0 %v1093
        %2314 = vmatpush1.msra.mxu0 %v1092
        %2315 = vmatprep.subr.mxu0 %v1095
        %2316 = vmatpush1.msra.mxu0 %v1094
        %2317 = vmatprep.subr.mxu0 %v1097
        %2318 = vmatpush1.msra.mxu0 %v1096
        %2319 = vmatprep.subr.mxu0 %v1099
        %2320 = vmatpush1.msra.mxu0 %v1098
        %2321 = vmatprep.subr.mxu0 %v1101
        %2322 = vmatpush1.msra.mxu0 %v1100
        %2323 = vmatprep.subr.mxu0 %v1103
        %2324 = vmatpush1.msra.mxu0 %v1102
        %2325 = vmatprep.subr.mxu0 %v1105
        %2326 = vmatpush1.msra.mxu0 %v1104
        %2327 = vmatprep.subr.mxu0 %v1107
        %2328 = vmatpush1.msra.mxu0 %v1106
        %2329 = vmatprep.subr.mxu0 %v1109
        %2330 = vmatpush1.msra.mxu0 %v1108
        %2331 = vmatprep.subr.mxu0 %v1111
        %2332 = vmatpush1.msra.mxu0 %v1110
        %2333 = vmatprep.subr.mxu0 %v1113
        %2334 = vmatpush1.msra.mxu0 %v1112
        %2335 = vmatprep.mubr.f32.mxu0 %v1923
        %2336 = vmatmul.mubr.f32.gmra.mrb[0].mxu0 %v1921
        %v2337 = vpop.f32.mrb[0].mxu0
        %v2338 = vadd.f32 %v2267, %v2337
        %v2339 = vpop.f32.mrb[0].mxu0
        %v2340 = vadd.f32 %v2269, %v2339
        %2341 = vdwg.mxu0
        %2342 = vmatprep.subr.mxu0 %v1115
        %2343 = vmatpush1.msra.mxu0 %v1114
        %2344 = vmatprep.subr.mxu0 %v1117
        %2345 = vmatpush1.msra.mxu0 %v1116
        %2346 = vmatprep.subr.mxu0 %v1119
        %2347 = vmatpush1.msra.mxu0 %v1118
        %2348 = vmatprep.subr.mxu0 %v1121
        %2349 = vmatpush1.msra.mxu0 %v1120
        %2350 = vmatprep.subr.mxu0 %v1123
        %2351 = vmatpush1.msra.mxu0 %v1122
        %2352 = vmatprep.subr.mxu0 %v1125
        %2353 = vmatpush1.msra.mxu0 %v1124
        %2354 = vmatprep.subr.mxu0 %v1127
        %2355 = vmatpush1.msra.mxu0 %v1126
        %2356 = vmatprep.subr.mxu0 %v1129
        %2357 = vmatpush1.msra.mxu0 %v1128
        %2358 = vmatprep.subr.mxu0 %v1131
        %2359 = vmatpush1.msra.mxu0 %v1130
        %2360 = vmatprep.subr.mxu0 %v1133
        %2361 = vmatpush1.msra.mxu0 %v1132
        %2362 = vmatprep.subr.mxu0 %v1135
        %2363 = vmatpush1.msra.mxu0 %v1134
        %2364 = vmatprep.subr.mxu0 %v1137
        %2365 = vmatpush1.msra.mxu0 %v1136
        %2366 = vmatprep.subr.mxu0 %v1139
        %2367 = vmatpush1.msra.mxu0 %v1138
        %2368 = vmatprep.subr.mxu0 %v1141
        %2369 = vmatpush1.msra.mxu0 %v1140
        %2370 = vmatprep.subr.mxu0 %v1143
        %2371 = vmatpush1.msra.mxu0 %v1142
        %2372 = vmatprep.subr.mxu0 %v1145
        %2373 = vmatpush1.msra.mxu0 %v1144
        %2374 = vmatprep.subr.mxu0 %v1147
        %2375 = vmatpush1.msra.mxu0 %v1146
        %2376 = vmatprep.subr.mxu0 %v1149
        %2377 = vmatpush1.msra.mxu0 %v1148
        %2378 = vmatprep.subr.mxu0 %v1151
        %2379 = vmatpush1.msra.mxu0 %v1150
        %2380 = vmatprep.subr.mxu0 %v1153
        %2381 = vmatpush1.msra.mxu0 %v1152
        %2382 = vmatprep.subr.mxu0 %v1155
        %2383 = vmatpush1.msra.mxu0 %v1154
        %2384 = vmatprep.subr.mxu0 %v1157
        %2385 = vmatpush1.msra.mxu0 %v1156
        %2386 = vmatprep.subr.mxu0 %v1159
        %2387 = vmatpush1.msra.mxu0 %v1158
        %2388 = vmatprep.subr.mxu0 %v1161
        %2389 = vmatpush1.msra.mxu0 %v1160
        %2390 = vmatprep.subr.mxu0 %v1163
        %2391 = vmatpush1.msra.mxu0 %v1162
        %2392 = vmatprep.subr.mxu0 %v1165
        %2393 = vmatpush1.msra.mxu0 %v1164
        %2394 = vmatprep.subr.mxu0 %v1167
        %2395 = vmatpush1.msra.mxu0 %v1166
        %2396 = vmatprep.subr.mxu0 %v1169
        %2397 = vmatpush1.msra.mxu0 %v1168
        %2398 = vmatprep.subr.mxu0 %v1171
        %2399 = vmatpush1.msra.mxu0 %v1170
        %2400 = vmatprep.subr.mxu0 %v1173
        %2401 = vmatpush1.msra.mxu0 %v1172
        %2402 = vmatprep.subr.mxu0 %v1175
        %2403 = vmatpush1.msra.mxu0 %v1174
        %2404 = vmatprep.subr.mxu0 %v1177
        %2405 = vmatpush1.msra.mxu0 %v1176
        %2406 = vmatprep.mubr.f32.mxu0 %v1939
        %2407 = vmatmul.mubr.f32.gmra.mrb[0].mxu0 %v1931
        %v2408 = vpop.f32.mrb[0].mxu0
        %v2409 = vadd.f32 %v2338, %v2408
        %v2410 = vpop.f32.mrb[0].mxu0
        %v2411 = vadd.f32 %v2340, %v2410
        %2412 = vdwg.mxu0
        %2413 = vmatprep.subr.mxu0 %v1179
        %2414 = vmatpush1.msra.mxu0 %v1178
        %2415 = vmatprep.subr.mxu0 %v1181
        %2416 = vmatpush1.msra.mxu0 %v1180
        %2417 = vmatprep.subr.mxu0 %v1183
        %2418 = vmatpush1.msra.mxu0 %v1182
        %2419 = vmatprep.subr.mxu0 %v1185
        %2420 = vmatpush1.msra.mxu0 %v1184
        %2421 = vmatprep.subr.mxu0 %v1187
        %2422 = vmatpush1.msra.mxu0 %v1186
        %2423 = vmatprep.subr.mxu0 %v1189
        %2424 = vmatpush1.msra.mxu0 %v1188
        %2425 = vmatprep.subr.mxu0 %v1191
        %2426 = vmatpush1.msra.mxu0 %v1190
        %2427 = vmatprep.subr.mxu0 %v1193
        %2428 = vmatpush1.msra.mxu0 %v1192
        %2429 = vmatprep.subr.mxu0 %v1195
        %2430 = vmatpush1.msra.mxu0 %v1194
        %2431 = vmatprep.subr.mxu0 %v1197
        %2432 = vmatpush1.msra.mxu0 %v1196
        %2433 = vmatprep.subr.mxu0 %v1199
        %2434 = vmatpush1.msra.mxu0 %v1198
        %2435 = vmatprep.subr.mxu0 %v1201
        %2436 = vmatpush1.msra.mxu0 %v1200
        %2437 = vmatprep.subr.mxu0 %v1203
        %2438 = vmatpush1.msra.mxu0 %v1202
        %2439 = vmatprep.subr.mxu0 %v1205
        %2440 = vmatpush1.msra.mxu0 %v1204
        %2441 = vmatprep.subr.mxu0 %v1207
        %2442 = vmatpush1.msra.mxu0 %v1206
        %2443 = vmatprep.subr.mxu0 %v1209
        %2444 = vmatpush1.msra.mxu0 %v1208
        %2445 = vmatprep.subr.mxu0 %v1211
        %2446 = vmatpush1.msra.mxu0 %v1210
        %2447 = vmatprep.subr.mxu0 %v1213
        %2448 = vmatpush1.msra.mxu0 %v1212
        %2449 = vmatprep.subr.mxu0 %v1215
        %2450 = vmatpush1.msra.mxu0 %v1214
        %2451 = vmatprep.subr.mxu0 %v1217
        %2452 = vmatpush1.msra.mxu0 %v1216
        %2453 = vmatprep.subr.mxu0 %v1219
        %2454 = vmatpush1.msra.mxu0 %v1218
        %2455 = vmatprep.subr.mxu0 %v1221
        %2456 = vmatpush1.msra.mxu0 %v1220
        %2457 = vmatprep.subr.mxu0 %v1223
        %2458 = vmatpush1.msra.mxu0 %v1222
        %2459 = vmatprep.subr.mxu0 %v1225
        %2460 = vmatpush1.msra.mxu0 %v1224
        %2461 = vmatprep.subr.mxu0 %v1227
        %2462 = vmatpush1.msra.mxu0 %v1226
        %2463 = vmatprep.subr.mxu0 %v1229
        %2464 = vmatpush1.msra.mxu0 %v1228
        %2465 = vmatprep.subr.mxu0 %v1231
        %2466 = vmatpush1.msra.mxu0 %v1230
        %2467 = vmatprep.subr.mxu0 %v1233
        %2468 = vmatpush1.msra.mxu0 %v1232
        %2469 = vmatprep.subr.mxu0 %v1235
        %2470 = vmatpush1.msra.mxu0 %v1234
        %2471 = vmatprep.subr.mxu0 %v1237
        %2472 = vmatpush1.msra.mxu0 %v1236
        %2473 = vmatprep.subr.mxu0 %v1239
        %2474 = vmatpush1.msra.mxu0 %v1238
        %2475 = vmatprep.subr.mxu0 %v1241
        %2476 = vmatpush1.msra.mxu0 %v1240
        %2477 = vmatprep.mubr.f32.mxu0 %v1940
        %2478 = vmatmul.mubr.f32.gmra.mrb[0].mxu0 %v1938
        %v2479 = vpop.f32.mrb[0].mxu0
        %v2480 = vadd.f32 %v2409, %v2479
        %v2481 = vpop.f32.mrb[0].mxu0
        %v2482 = vadd.f32 %v2411, %v2481
        %2483 = vdwg.mxu0
        %2484 = vmatprep.subr.mxu0 %v1243
        %2485 = vmatpush1.msra.mxu0 %v1242
        %2486 = vmatprep.subr.mxu0 %v1245
        %2487 = vmatpush1.msra.mxu0 %v1244
        %2488 = vmatprep.subr.mxu0 %v1247
        %2489 = vmatpush1.msra.mxu0 %v1246
        %2490 = vmatprep.subr.mxu0 %v1249
        %2491 = vmatpush1.msra.mxu0 %v1248
        %2492 = vmatprep.subr.mxu0 %v1251
        %2493 = vmatpush1.msra.mxu0 %v1250
        %2494 = vmatprep.subr.mxu0 %v1253
        %2495 = vmatpush1.msra.mxu0 %v1252
        %2496 = vmatprep.subr.mxu0 %v1255
        %2497 = vmatpush1.msra.mxu0 %v1254
        %2498 = vmatprep.subr.mxu0 %v1257
        %2499 = vmatpush1.msra.mxu0 %v1256
        %2500 = vmatprep.subr.mxu0 %v1259
        %2501 = vmatpush1.msra.mxu0 %v1258
        %2502 = vmatprep.subr.mxu0 %v1261
        %2503 = vmatpush1.msra.mxu0 %v1260
        %2504 = vmatprep.subr.mxu0 %v1263
        %2505 = vmatpush1.msra.mxu0 %v1262
        %2506 = vmatprep.subr.mxu0 %v1265
        %2507 = vmatpush1.msra.mxu0 %v1264
        %2508 = vmatprep.subr.mxu0 %v1267
        %2509 = vmatpush1.msra.mxu0 %v1266
        %2510 = vmatprep.subr.mxu0 %v1269
        %2511 = vmatpush1.msra.mxu0 %v1268
        %2512 = vmatprep.subr.mxu0 %v1271
        %2513 = vmatpush1.msra.mxu0 %v1270
        %2514 = vmatprep.subr.mxu0 %v1273
        %2515 = vmatpush1.msra.mxu0 %v1272
        %2516 = vmatprep.subr.mxu0 %v1275
        %2517 = vmatpush1.msra.mxu0 %v1274
        %2518 = vmatprep.subr.mxu0 %v1277
        %2519 = vmatpush1.msra.mxu0 %v1276
        %2520 = vmatprep.subr.mxu0 %v1279
        %2521 = vmatpush1.msra.mxu0 %v1278
        %2522 = vmatprep.subr.mxu0 %v1281
        %2523 = vmatpush1.msra.mxu0 %v1280
        %2524 = vmatprep.subr.mxu0 %v1283
        %2525 = vmatpush1.msra.mxu0 %v1282
        %2526 = vmatprep.subr.mxu0 %v1285
        %2527 = vmatpush1.msra.mxu0 %v1284
        %2528 = vmatprep.subr.mxu0 %v1287
        %2529 = vmatpush1.msra.mxu0 %v1286
        %2530 = vmatprep.subr.mxu0 %v1289
        %2531 = vmatpush1.msra.mxu0 %v1288
        %2532 = vmatprep.subr.mxu0 %v1291
        %2533 = vmatpush1.msra.mxu0 %v1290
        %2534 = vmatprep.subr.mxu0 %v1293
        %2535 = vmatpush1.msra.mxu0 %v1292
        %2536 = vmatprep.subr.mxu0 %v1295
        %2537 = vmatpush1.msra.mxu0 %v1294
        %2538 = vmatprep.subr.mxu0 %v1297
        %2539 = vmatpush1.msra.mxu0 %v1296
        %2540 = vmatprep.subr.mxu0 %v1299
        %2541 = vmatpush1.msra.mxu0 %v1298
        %2542 = vmatprep.subr.mxu0 %v1301
        %2543 = vmatpush1.msra.mxu0 %v1300
        %2544 = vmatprep.subr.mxu0 %v1303
        %2545 = vmatpush1.msra.mxu0 %v1302
        %2546 = vmatprep.subr.mxu0 %v1305
        %2547 = vmatpush1.msra.mxu0 %v1304
        %2548 = vmatprep.mubr.f32.mxu0 %v1956
        %2549 = vmatmul.mubr.f32.gmra.mrb[0].mxu0 %v1948
        %v2550 = vpop.f32.mrb[0].mxu0
        %v2551 = vadd.f32 %v2480, %v2550
        %v2552 = vpop.f32.mrb[0].mxu0
        %v2553 = vadd.f32 %v2482, %v2552
        %2554 = vdwg.mxu0
        %2555 = vmatprep.subr.mxu0 %v1307
        %2556 = vmatpush1.msra.mxu0 %v1306
        %2557 = vmatprep.subr.mxu0 %v1309
        %2558 = vmatpush1.msra.mxu0 %v1308
        %2559 = vmatprep.subr.mxu0 %v1311
        %2560 = vmatpush1.msra.mxu0 %v1310
        %2561 = vmatprep.subr.mxu0 %v1313
        %2562 = vmatpush1.msra.mxu0 %v1312
        %2563 = vmatprep.subr.mxu0 %v1315
        %2564 = vmatpush1.msra.mxu0 %v1314
        %2565 = vmatprep.subr.mxu0 %v1317
        %2566 = vmatpush1.msra.mxu0 %v1316
        %2567 = vmatprep.subr.mxu0 %v1319
        %2568 = vmatpush1.msra.mxu0 %v1318
        %2569 = vmatprep.subr.mxu0 %v1321
        %2570 = vmatpush1.msra.mxu0 %v1320
        %2571 = vmatprep.subr.mxu0 %v1323
        %2572 = vmatpush1.msra.mxu0 %v1322
        %2573 = vmatprep.subr.mxu0 %v1325
        %2574 = vmatpush1.msra.mxu0 %v1324
        %2575 = vmatprep.subr.mxu0 %v1327
        %2576 = vmatpush1.msra.mxu0 %v1326
        %2577 = vmatprep.subr.mxu0 %v1329
        %2578 = vmatpush1.msra.mxu0 %v1328
        %2579 = vmatprep.subr.mxu0 %v1331
        %2580 = vmatpush1.msra.mxu0 %v1330
        %2581 = vmatprep.subr.mxu0 %v1333
        %2582 = vmatpush1.msra.mxu0 %v1332
        %2583 = vmatprep.subr.mxu0 %v1335
        %2584 = vmatpush1.msra.mxu0 %v1334
        %2585 = vmatprep.subr.mxu0 %v1337
        %2586 = vmatpush1.msra.mxu0 %v1336
        %2587 = vmatprep.subr.mxu0 %v1339
        %2588 = vmatpush1.msra.mxu0 %v1338
        %2589 = vmatprep.subr.mxu0 %v1341
        %2590 = vmatpush1.msra.mxu0 %v1340
        %2591 = vmatprep.subr.mxu0 %v1343
        %2592 = vmatpush1.msra.mxu0 %v1342
        %2593 = vmatprep.subr.mxu0 %v1345
        %2594 = vmatpush1.msra.mxu0 %v1344
        %2595 = vmatprep.subr.mxu0 %v1347
        %2596 = vmatpush1.msra.mxu0 %v1346
        %2597 = vmatprep.subr.mxu0 %v1349
        %2598 = vmatpush1.msra.mxu0 %v1348
        %2599 = vmatprep.subr.mxu0 %v1351
        %2600 = vmatpush1.msra.mxu0 %v1350
        %2601 = vmatprep.subr.mxu0 %v1353
        %2602 = vmatpush1.msra.mxu0 %v1352
        %2603 = vmatprep.subr.mxu0 %v1355
        %2604 = vmatpush1.msra.mxu0 %v1354
        %2605 = vmatprep.subr.mxu0 %v1357
        %2606 = vmatpush1.msra.mxu0 %v1356
        %2607 = vmatprep.subr.mxu0 %v1359
        %2608 = vmatpush1.msra.mxu0 %v1358
        %2609 = vmatprep.subr.mxu0 %v1361
        %2610 = vmatpush1.msra.mxu0 %v1360
        %2611 = vmatprep.subr.mxu0 %v1363
        %2612 = vmatpush1.msra.mxu0 %v1362
        %2613 = vmatprep.subr.mxu0 %v1365
        %2614 = vmatpush1.msra.mxu0 %v1364
        %2615 = vmatprep.subr.mxu0 %v1367
        %2616 = vmatpush1.msra.mxu0 %v1366
        %2617 = vmatprep.subr.mxu0 %v1369
        %2618 = vmatpush1.msra.mxu0 %v1368
        %2619 = vmatprep.mubr.f32.mxu0 %v1957
        %2620 = vmatmul.mubr.f32.gmra.mrb[0].mxu0 %v1955
        %v2621 = vpop.f32.mrb[0].mxu0
        %v2622 = vadd.f32 %v2551, %v2621
        %v2623 = vpop.f32.mrb[0].mxu0
        %v2624 = vadd.f32 %v2553, %v2623
        %2625 = vdwg.mxu0
        %2626 = vmatprep.subr.mxu0 %v1371
        %2627 = vmatpush1.msra.mxu0 %v1370
        %2628 = vmatprep.subr.mxu0 %v1373
        %2629 = vmatpush1.msra.mxu0 %v1372
        %2630 = vmatprep.subr.mxu0 %v1375
        %2631 = vmatpush1.msra.mxu0 %v1374
        %2632 = vmatprep.subr.mxu0 %v1377
        %2633 = vmatpush1.msra.mxu0 %v1376
        %2634 = vmatprep.subr.mxu0 %v1379
        %2635 = vmatpush1.msra.mxu0 %v1378
        %2636 = vmatprep.subr.mxu0 %v1381
        %2637 = vmatpush1.msra.mxu0 %v1380
        %2638 = vmatprep.subr.mxu0 %v1383
        %2639 = vmatpush1.msra.mxu0 %v1382
        %2640 = vmatprep.subr.mxu0 %v1385
        %2641 = vmatpush1.msra.mxu0 %v1384
        %2642 = vmatprep.subr.mxu0 %v1387
        %2643 = vmatpush1.msra.mxu0 %v1386
        %2644 = vmatprep.subr.mxu0 %v1389
        %2645 = vmatpush1.msra.mxu0 %v1388
        %2646 = vmatprep.subr.mxu0 %v1391
        %2647 = vmatpush1.msra.mxu0 %v1390
        %2648 = vmatprep.subr.mxu0 %v1393
        %2649 = vmatpush1.msra.mxu0 %v1392
        %2650 = vmatprep.subr.mxu0 %v1395
        %2651 = vmatpush1.msra.mxu0 %v1394
        %2652 = vmatprep.subr.mxu0 %v1397
        %2653 = vmatpush1.msra.mxu0 %v1396
        %2654 = vmatprep.subr.mxu0 %v1399
        %2655 = vmatpush1.msra.mxu0 %v1398
        %2656 = vmatprep.subr.mxu0 %v1401
        %2657 = vmatpush1.msra.mxu0 %v1400
        %2658 = vmatprep.subr.mxu0 %v1403
        %2659 = vmatpush1.msra.mxu0 %v1402
        %2660 = vmatprep.subr.mxu0 %v1405
        %2661 = vmatpush1.msra.mxu0 %v1404
        %2662 = vmatprep.subr.mxu0 %v1407
        %2663 = vmatpush1.msra.mxu0 %v1406
        %2664 = vmatprep.subr.mxu0 %v1409
        %2665 = vmatpush1.msra.mxu0 %v1408
        %2666 = vmatprep.subr.mxu0 %v1411
        %2667 = vmatpush1.msra.mxu0 %v1410
        %2668 = vmatprep.subr.mxu0 %v1413
        %2669 = vmatpush1.msra.mxu0 %v1412
        %2670 = vmatprep.subr.mxu0 %v1415
        %2671 = vmatpush1.msra.mxu0 %v1414
        %2672 = vmatprep.subr.mxu0 %v1417
        %2673 = vmatpush1.msra.mxu0 %v1416
        %2674 = vmatprep.subr.mxu0 %v1419
        %2675 = vmatpush1.msra.mxu0 %v1418
        %2676 = vmatprep.subr.mxu0 %v1421
        %2677 = vmatpush1.msra.mxu0 %v1420
        %2678 = vmatprep.subr.mxu0 %v1423
        %2679 = vmatpush1.msra.mxu0 %v1422
        %2680 = vmatprep.subr.mxu0 %v1425
        %2681 = vmatpush1.msra.mxu0 %v1424
        %2682 = vmatprep.subr.mxu0 %v1427
        %2683 = vmatpush1.msra.mxu0 %v1426
        %2684 = vmatprep.subr.mxu0 %v1429
        %2685 = vmatpush1.msra.mxu0 %v1428
        %2686 = vmatprep.subr.mxu0 %v1431
        %2687 = vmatpush1.msra.mxu0 %v1430
        %2688 = vmatprep.subr.mxu0 %v1433
        %2689 = vmatpush1.msra.mxu0 %v1432
        %2690 = vmatprep.mubr.f32.mxu0 %v1973
        %2691 = vmatmul.mubr.f32.gmra.mrb[0].mxu0 %v1965
        %v2692 = vpop.f32.mrb[0].mxu0
        %v2693 = vadd.f32 %v2622, %v2692
        %v2694 = vpop.f32.mrb[0].mxu0
        %v2695 = vadd.f32 %v2624, %v2694
        %2696 = vdwg.mxu0
        %2697 = vmatprep.subr.mxu0 %v1435
        %2698 = vmatpush1.msra.mxu0 %v1434
        %2699 = vmatprep.subr.mxu0 %v1437
        %2700 = vmatpush1.msra.mxu0 %v1436
        %2701 = vmatprep.subr.mxu0 %v1439
        %2702 = vmatpush1.msra.mxu0 %v1438
        %2703 = vmatprep.subr.mxu0 %v1441
        %2704 = vmatpush1.msra.mxu0 %v1440
        %2705 = vmatprep.subr.mxu0 %v1443
        %2706 = vmatpush1.msra.mxu0 %v1442
        %2707 = vmatprep.subr.mxu0 %v1445
        %2708 = vmatpush1.msra.mxu0 %v1444
        %2709 = vmatprep.subr.mxu0 %v1447
        %2710 = vmatpush1.msra.mxu0 %v1446
        %2711 = vmatprep.subr.mxu0 %v1449
        %2712 = vmatpush1.msra.mxu0 %v1448
        %2713 = vmatprep.subr.mxu0 %v1451
        %2714 = vmatpush1.msra.mxu0 %v1450
        %2715 = vmatprep.subr.mxu0 %v1453
        %2716 = vmatpush1.msra.mxu0 %v1452
        %2717 = vmatprep.subr.mxu0 %v1455
        %2718 = vmatpush1.msra.mxu0 %v1454
        %2719 = vmatprep.subr.mxu0 %v1457
        %2720 = vmatpush1.msra.mxu0 %v1456
        %2721 = vmatprep.subr.mxu0 %v1459
        %2722 = vmatpush1.msra.mxu0 %v1458
        %2723 = vmatprep.subr.mxu0 %v1461
        %2724 = vmatpush1.msra.mxu0 %v1460
        %2725 = vmatprep.subr.mxu0 %v1463
        %2726 = vmatpush1.msra.mxu0 %v1462
        %2727 = vmatprep.subr.mxu0 %v1465
        %2728 = vmatpush1.msra.mxu0 %v1464
        %2729 = vmatprep.subr.mxu0 %v1467
        %2730 = vmatpush1.msra.mxu0 %v1466
        %2731 = vmatprep.subr.mxu0 %v1469
        %2732 = vmatpush1.msra.mxu0 %v1468
        %2733 = vmatprep.subr.mxu0 %v1471
        %2734 = vmatpush1.msra.mxu0 %v1470
        %2735 = vmatprep.subr.mxu0 %v1473
        %2736 = vmatpush1.msra.mxu0 %v1472
        %2737 = vmatprep.subr.mxu0 %v1475
        %2738 = vmatpush1.msra.mxu0 %v1474
        %2739 = vmatprep.subr.mxu0 %v1477
        %2740 = vmatpush1.msra.mxu0 %v1476
        %2741 = vmatprep.subr.mxu0 %v1479
        %2742 = vmatpush1.msra.mxu0 %v1478
        %2743 = vmatprep.subr.mxu0 %v1481
        %2744 = vmatpush1.msra.mxu0 %v1480
        %2745 = vmatprep.subr.mxu0 %v1483
        %2746 = vmatpush1.msra.mxu0 %v1482
        %2747 = vmatprep.subr.mxu0 %v1485
        %2748 = vmatpush1.msra.mxu0 %v1484
        %2749 = vmatprep.subr.mxu0 %v1487
        %2750 = vmatpush1.msra.mxu0 %v1486
        %2751 = vmatprep.subr.mxu0 %v1489
        %2752 = vmatpush1.msra.mxu0 %v1488
        %2753 = vmatprep.subr.mxu0 %v1491
        %2754 = vmatpush1.msra.mxu0 %v1490
        %2755 = vmatprep.subr.mxu0 %v1493
        %2756 = vmatpush1.msra.mxu0 %v1492
        %2757 = vmatprep.subr.mxu0 %v1495
        %2758 = vmatpush1.msra.mxu0 %v1494
        %2759 = vmatprep.subr.mxu0 %v1497
        %2760 = vmatpush1.msra.mxu0 %v1496
        %2761 = vmatprep.mubr.f32.mxu0 %v1974
        %2762 = vmatmul.mubr.f32.gmra.mrb[0].mxu0 %v1972
        %v2763 = vpop.f32.mrb[0].mxu0
        %v2764 = vadd.f32 %v2693, %v2763
        %v2765 = vpop.f32.mrb[0].mxu0
        %v2766 = vadd.f32 %v2695, %v2765
        %2767 = vdwg.mxu0
        %2768 = vmatprep.subr.mxu0 %v1499
        %2769 = vmatpush1.msra.mxu0 %v1498
        %2770 = vmatprep.subr.mxu0 %v1501
        %2771 = vmatpush1.msra.mxu0 %v1500
        %2772 = vmatprep.subr.mxu0 %v1503
        %2773 = vmatpush1.msra.mxu0 %v1502
        %2774 = vmatprep.subr.mxu0 %v1505
        %2775 = vmatpush1.msra.mxu0 %v1504
        %2776 = vmatprep.subr.mxu0 %v1507
        %2777 = vmatpush1.msra.mxu0 %v1506
        %2778 = vmatprep.subr.mxu0 %v1509
        %2779 = vmatpush1.msra.mxu0 %v1508
        %2780 = vmatprep.subr.mxu0 %v1511
        %2781 = vmatpush1.msra.mxu0 %v1510
        %2782 = vmatprep.subr.mxu0 %v1513
        %2783 = vmatpush1.msra.mxu0 %v1512
        %2784 = vmatprep.subr.mxu0 %v1515
        %2785 = vmatpush1.msra.mxu0 %v1514
        %2786 = vmatprep.subr.mxu0 %v1517
        %2787 = vmatpush1.msra.mxu0 %v1516
        %2788 = vmatprep.subr.mxu0 %v1519
        %2789 = vmatpush1.msra.mxu0 %v1518
        %2790 = vmatprep.subr.mxu0 %v1521
        %2791 = vmatpush1.msra.mxu0 %v1520
        %2792 = vmatprep.subr.mxu0 %v1523
        %2793 = vmatpush1.msra.mxu0 %v1522
        %2794 = vmatprep.subr.mxu0 %v1525
        %2795 = vmatpush1.msra.mxu0 %v1524
        %2796 = vmatprep.subr.mxu0 %v1527
        %2797 = vmatpush1.msra.mxu0 %v1526
        %2798 = vmatprep.subr.mxu0 %v1529
        %2799 = vmatpush1.msra.mxu0 %v1528
        %2800 = vmatprep.subr.mxu0 %v1531
        %2801 = vmatpush1.msra.mxu0 %v1530
        %2802 = vmatprep.subr.mxu0 %v1533
        %2803 = vmatpush1.msra.mxu0 %v1532
        %2804 = vmatprep.subr.mxu0 %v1535
        %2805 = vmatpush1.msra.mxu0 %v1534
        %2806 = vmatprep.subr.mxu0 %v1537
        %2807 = vmatpush1.msra.mxu0 %v1536
        %2808 = vmatprep.subr.mxu0 %v1539
        %2809 = vmatpush1.msra.mxu0 %v1538
        %2810 = vmatprep.subr.mxu0 %v1541
        %2811 = vmatpush1.msra.mxu0 %v1540
        %2812 = vmatprep.subr.mxu0 %v1543
        %2813 = vmatpush1.msra.mxu0 %v1542
        %2814 = vmatprep.subr.mxu0 %v1545
        %2815 = vmatpush1.msra.mxu0 %v1544
        %2816 = vmatprep.subr.mxu0 %v1547
        %2817 = vmatpush1.msra.mxu0 %v1546
        %2818 = vmatprep.subr.mxu0 %v1549
        %2819 = vmatpush1.msra.mxu0 %v1548
        %2820 = vmatprep.subr.mxu0 %v1551
        %2821 = vmatpush1.msra.mxu0 %v1550
        %2822 = vmatprep.subr.mxu0 %v1553
        %2823 = vmatpush1.msra.mxu0 %v1552
        %2824 = vmatprep.subr.mxu0 %v1555
        %2825 = vmatpush1.msra.mxu0 %v1554
        %2826 = vmatprep.subr.mxu0 %v1557
        %2827 = vmatpush1.msra.mxu0 %v1556
        %2828 = vmatprep.subr.mxu0 %v1559
        %2829 = vmatpush1.msra.mxu0 %v1558
        %2830 = vmatprep.subr.mxu0 %v1561
        %2831 = vmatpush1.msra.mxu0 %v1560
        %2832 = vmatprep.mubr.f32.mxu0 %v1990
        %2833 = vmatmul.mubr.f32.gmra.mrb[0].mxu0 %v1982
        %v2834 = vpop.f32.mrb[0].mxu0
        %v2835 = vadd.f32 %v2764, %v2834
        %v2836 = vpop.f32.mrb[0].mxu0
        %v2837 = vadd.f32 %v2766, %v2836
        %2838 = vdwg.mxu0
        %2839 = vmatprep.subr.mxu0 %v1563
        %2840 = vmatpush1.msra.mxu0 %v1562
        %2841 = vmatprep.subr.mxu0 %v1565
        %2842 = vmatpush1.msra.mxu0 %v1564
        %2843 = vmatprep.subr.mxu0 %v1567
        %2844 = vmatpush1.msra.mxu0 %v1566
        %2845 = vmatprep.subr.mxu0 %v1569
        %2846 = vmatpush1.msra.mxu0 %v1568
        %2847 = vmatprep.subr.mxu0 %v1571
        %2848 = vmatpush1.msra.mxu0 %v1570
        %2849 = vmatprep.subr.mxu0 %v1573
        %2850 = vmatpush1.msra.mxu0 %v1572
        %2851 = vmatprep.subr.mxu0 %v1575
        %2852 = vmatpush1.msra.mxu0 %v1574
        %2853 = vmatprep.subr.mxu0 %v1577
        %2854 = vmatpush1.msra.mxu0 %v1576
        %2855 = vmatprep.subr.mxu0 %v1579
        %2856 = vmatpush1.msra.mxu0 %v1578
        %2857 = vmatprep.subr.mxu0 %v1581
        %2858 = vmatpush1.msra.mxu0 %v1580
        %2859 = vmatprep.subr.mxu0 %v1583
        %2860 = vmatpush1.msra.mxu0 %v1582
        %2861 = vmatprep.subr.mxu0 %v1585
        %2862 = vmatpush1.msra.mxu0 %v1584
        %2863 = vmatprep.subr.mxu0 %v1587
        %2864 = vmatpush1.msra.mxu0 %v1586
        %2865 = vmatprep.subr.mxu0 %v1589
        %2866 = vmatpush1.msra.mxu0 %v1588
        %2867 = vmatprep.subr.mxu0 %v1591
        %2868 = vmatpush1.msra.mxu0 %v1590
        %2869 = vmatprep.subr.mxu0 %v1593
        %2870 = vmatpush1.msra.mxu0 %v1592
        %2871 = vmatprep.subr.mxu0 %v1595
        %2872 = vmatpush1.msra.mxu0 %v1594
        %2873 = vmatprep.subr.mxu0 %v1597
        %2874 = vmatpush1.msra.mxu0 %v1596
        %2875 = vmatprep.subr.mxu0 %v1599
        %2876 = vmatpush1.msra.mxu0 %v1598
        %2877 = vmatprep.subr.mxu0 %v1601
        %2878 = vmatpush1.msra.mxu0 %v1600
        %2879 = vmatprep.subr.mxu0 %v1603
        %2880 = vmatpush1.msra.mxu0 %v1602
        %2881 = vmatprep.subr.mxu0 %v1605
        %2882 = vmatpush1.msra.mxu0 %v1604
        %2883 = vmatprep.subr.mxu0 %v1607
        %2884 = vmatpush1.msra.mxu0 %v1606
        %2885 = vmatprep.subr.mxu0 %v1609
        %2886 = vmatpush1.msra.mxu0 %v1608
        %2887 = vmatprep.subr.mxu0 %v1611
        %2888 = vmatpush1.msra.mxu0 %v1610
        %2889 = vmatprep.subr.mxu0 %v1613
        %2890 = vmatpush1.msra.mxu0 %v1612
        %2891 = vmatprep.subr.mxu0 %v1615
        %2892 = vmatpush1.msra.mxu0 %v1614
        %2893 = vmatprep.subr.mxu0 %v1617
        %2894 = vmatpush1.msra.mxu0 %v1616
        %2895 = vmatprep.subr.mxu0 %v1619
        %2896 = vmatpush1.msra.mxu0 %v1618
        %2897 = vmatprep.subr.mxu0 %v1621
        %2898 = vmatpush1.msra.mxu0 %v1620
        %2899 = vmatprep.subr.mxu0 %v1623
        %2900 = vmatpush1.msra.mxu0 %v1622
        %2901 = vmatprep.subr.mxu0 %v1625
        %2902 = vmatpush1.msra.mxu0 %v1624
        %2903 = vmatprep.mubr.f32.mxu0 %v1991
        %2904 = vmatmul.mubr.f32.gmra.mrb[0].mxu0 %v1989
        %v2905 = vpop.f32.mrb[0].mxu0
        %v2906 = vadd.f32 %v2835, %v2905
        %v2907 = vpop.f32.mrb[0].mxu0
        %v2908 = vadd.f32 %v2837, %v2907
        %2909 = vdwg.mxu0
        %2910 = vmatprep.subr.mxu0 %v1627
        %2911 = vmatpush1.msra.mxu0 %v1626
        %2912 = vmatprep.subr.mxu0 %v1629
        %2913 = vmatpush1.msra.mxu0 %v1628
        %2914 = vmatprep.subr.mxu0 %v1631
        %2915 = vmatpush1.msra.mxu0 %v1630
        %2916 = vmatprep.subr.mxu0 %v1633
        %2917 = vmatpush1.msra.mxu0 %v1632
        %2918 = vmatprep.subr.mxu0 %v1635
        %2919 = vmatpush1.msra.mxu0 %v1634
        %2920 = vmatprep.subr.mxu0 %v1637
        %2921 = vmatpush1.msra.mxu0 %v1636
        %2922 = vmatprep.subr.mxu0 %v1639
        %2923 = vmatpush1.msra.mxu0 %v1638
        %2924 = vmatprep.subr.mxu0 %v1641
        %2925 = vmatpush1.msra.mxu0 %v1640
        %2926 = vmatprep.subr.mxu0 %v1643
        %2927 = vmatpush1.msra.mxu0 %v1642
        %2928 = vmatprep.subr.mxu0 %v1645
        %2929 = vmatpush1.msra.mxu0 %v1644
        %2930 = vmatprep.subr.mxu0 %v1647
        %2931 = vmatpush1.msra.mxu0 %v1646
        %2932 = vmatprep.subr.mxu0 %v1649
        %2933 = vmatpush1.msra.mxu0 %v1648
        %2934 = vmatprep.subr.mxu0 %v1651
        %2935 = vmatpush1.msra.mxu0 %v1650
        %2936 = vmatprep.subr.mxu0 %v1653
        %2937 = vmatpush1.msra.mxu0 %v1652
        %2938 = vmatprep.subr.mxu0 %v1655
        %2939 = vmatpush1.msra.mxu0 %v1654
        %2940 = vmatprep.subr.mxu0 %v1657
        %2941 = vmatpush1.msra.mxu0 %v1656
        %2942 = vmatprep.subr.mxu0 %v1659
        %2943 = vmatpush1.msra.mxu0 %v1658
        %2944 = vmatprep.subr.mxu0 %v1661
        %2945 = vmatpush1.msra.mxu0 %v1660
        %2946 = vmatprep.subr.mxu0 %v1663
        %2947 = vmatpush1.msra.mxu0 %v1662
        %2948 = vmatprep.subr.mxu0 %v1665
        %2949 = vmatpush1.msra.mxu0 %v1664
        %2950 = vmatprep.subr.mxu0 %v1667
        %2951 = vmatpush1.msra.mxu0 %v1666
        %2952 = vmatprep.subr.mxu0 %v1669
        %2953 = vmatpush1.msra.mxu0 %v1668
        %2954 = vmatprep.subr.mxu0 %v1671
        %2955 = vmatpush1.msra.mxu0 %v1670
        %2956 = vmatprep.subr.mxu0 %v1673
        %2957 = vmatpush1.msra.mxu0 %v1672
        %2958 = vmatprep.subr.mxu0 %v1675
        %2959 = vmatpush1.msra.mxu0 %v1674
        %2960 = vmatprep.subr.mxu0 %v1677
        %2961 = vmatpush1.msra.mxu0 %v1676
        %2962 = vmatprep.subr.mxu0 %v1679
        %2963 = vmatpush1.msra.mxu0 %v1678
        %2964 = vmatprep.subr.mxu0 %v1681
        %2965 = vmatpush1.msra.mxu0 %v1680
        %2966 = vmatprep.subr.mxu0 %v1683
        %2967 = vmatpush1.msra.mxu0 %v1682
        %2968 = vmatprep.subr.mxu0 %v1685
        %2969 = vmatpush1.msra.mxu0 %v1684
        %2970 = vmatprep.subr.mxu0 %v1687
        %2971 = vmatpush1.msra.mxu0 %v1686
        %2972 = vmatprep.subr.mxu0 %v1689
        %2973 = vmatpush1.msra.mxu0 %v1688
        %2974 = vmatprep.mubr.f32.mxu0 %v2007
        %2975 = vmatmul.mubr.f32.gmra.mrb[0].mxu0 %v1999
        %v2976 = vpop.f32.mrb[0].mxu0
        %v2977 = vadd.f32 %v2906, %v2976
        %v2978 = vpop.f32.mrb[0].mxu0
        %v2979 = vadd.f32 %v2908, %v2978
        %2980 = vdwg.mxu0
        %2981 = vmatprep.subr.mxu0 %v1691
        %2982 = vmatpush1.msra.mxu0 %v1690
        %2983 = vmatprep.subr.mxu0 %v1693
        %2984 = vmatpush1.msra.mxu0 %v1692
        %2985 = vmatprep.subr.mxu0 %v1695
        %2986 = vmatpush1.msra.mxu0 %v1694
        %2987 = vmatprep.subr.mxu0 %v1697
        %2988 = vmatpush1.msra.mxu0 %v1696
        %2989 = vmatprep.subr.mxu0 %v1699
        %2990 = vmatpush1.msra.mxu0 %v1698
        %2991 = vmatprep.subr.mxu0 %v1701
        %2992 = vmatpush1.msra.mxu0 %v1700
        %2993 = vmatprep.subr.mxu0 %v1703
        %2994 = vmatpush1.msra.mxu0 %v1702
        %2995 = vmatprep.subr.mxu0 %v1705
        %2996 = vmatpush1.msra.mxu0 %v1704
        %2997 = vmatprep.subr.mxu0 %v1707
        %2998 = vmatpush1.msra.mxu0 %v1706
        %2999 = vmatprep.subr.mxu0 %v1709
        %3000 = vmatpush1.msra.mxu0 %v1708
        %3001 = vmatprep.subr.mxu0 %v1711
        %3002 = vmatpush1.msra.mxu0 %v1710
        %3003 = vmatprep.subr.mxu0 %v1713
        %3004 = vmatpush1.msra.mxu0 %v1712
        %3005 = vmatprep.subr.mxu0 %v1715
        %3006 = vmatpush1.msra.mxu0 %v1714
        %3007 = vmatprep.subr.mxu0 %v1717
        %3008 = vmatpush1.msra.mxu0 %v1716
        %3009 = vmatprep.subr.mxu0 %v1719
        %3010 = vmatpush1.msra.mxu0 %v1718
        %3011 = vmatprep.subr.mxu0 %v1721
        %3012 = vmatpush1.msra.mxu0 %v1720
        %3013 = vmatprep.subr.mxu0 %v1723
        %3014 = vmatpush1.msra.mxu0 %v1722
        %3015 = vmatprep.subr.mxu0 %v1725
        %3016 = vmatpush1.msra.mxu0 %v1724
        %3017 = vmatprep.subr.mxu0 %v1727
        %3018 = vmatpush1.msra.mxu0 %v1726
        %3019 = vmatprep.subr.mxu0 %v1729
        %3020 = vmatpush1.msra.mxu0 %v1728
        %3021 = vmatprep.subr.mxu0 %v1731
        %3022 = vmatpush1.msra.mxu0 %v1730
        %3023 = vmatprep.subr.mxu0 %v1733
        %3024 = vmatpush1.msra.mxu0 %v1732
        %3025 = vmatprep.subr.mxu0 %v1735
        %3026 = vmatpush1.msra.mxu0 %v1734
        %3027 = vmatprep.subr.mxu0 %v1737
        %3028 = vmatpush1.msra.mxu0 %v1736
        %3029 = vmatprep.subr.mxu0 %v1739
        %3030 = vmatpush1.msra.mxu0 %v1738
        %3031 = vmatprep.subr.mxu0 %v1741
        %3032 = vmatpush1.msra.mxu0 %v1740
        %3033 = vmatprep.subr.mxu0 %v1743
        %3034 = vmatpush1.msra.mxu0 %v1742
        %3035 = vmatprep.subr.mxu0 %v1745
        %3036 = vmatpush1.msra.mxu0 %v1744
        %3037 = vmatprep.subr.mxu0 %v1747
        %3038 = vmatpush1.msra.mxu0 %v1746
        %3039 = vmatprep.subr.mxu0 %v1749
        %3040 = vmatpush1.msra.mxu0 %v1748
        %3041 = vmatprep.subr.mxu0 %v1751
        %3042 = vmatpush1.msra.mxu0 %v1750
        %3043 = vmatprep.subr.mxu0 %v1753
        %3044 = vmatpush1.msra.mxu0 %v1752
        %3045 = vmatprep.mubr.f32.mxu0 %v2008
        %3046 = vmatmul.mubr.f32.gmra.mrb[0].mxu0 %v2006
        %v3047 = vpop.f32.mrb[0].mxu0
        %v3048 = vadd.f32 %v2977, %v3047
        %v3049 = vpop.f32.mrb[0].mxu0
        %v3050 = vadd.f32 %v2979, %v3049
        %3051 = vdwg.mxu0
        %3052 = vmatprep.subr.mxu0 %v1755
        %3053 = vmatpush1.msra.mxu0 %v1754
        %3054 = vmatprep.subr.mxu0 %v1757
        %3055 = vmatpush1.msra.mxu0 %v1756
        %3056 = vmatprep.subr.mxu0 %v1759
        %3057 = vmatpush1.msra.mxu0 %v1758
        %3058 = vmatprep.subr.mxu0 %v1761
        %3059 = vmatpush1.msra.mxu0 %v1760
        %3060 = vmatprep.subr.mxu0 %v1763
        %3061 = vmatpush1.msra.mxu0 %v1762
        %3062 = vmatprep.subr.mxu0 %v1765
        %3063 = vmatpush1.msra.mxu0 %v1764
        %3064 = vmatprep.subr.mxu0 %v1767
        %3065 = vmatpush1.msra.mxu0 %v1766
        %3066 = vmatprep.subr.mxu0 %v1769
        %3067 = vmatpush1.msra.mxu0 %v1768
        %3068 = vmatprep.subr.mxu0 %v1771
        %3069 = vmatpush1.msra.mxu0 %v1770
        %3070 = vmatprep.subr.mxu0 %v1773
        %3071 = vmatpush1.msra.mxu0 %v1772
        %3072 = vmatprep.subr.mxu0 %v1775
        %3073 = vmatpush1.msra.mxu0 %v1774
        %3074 = vmatprep.subr.mxu0 %v1777
        %3075 = vmatpush1.msra.mxu0 %v1776
        %3076 = vmatprep.subr.mxu0 %v1779
        %3077 = vmatpush1.msra.mxu0 %v1778
        %3078 = vmatprep.subr.mxu0 %v1781
        %3079 = vmatpush1.msra.mxu0 %v1780
        %3080 = vmatprep.subr.mxu0 %v1783
        %3081 = vmatpush1.msra.mxu0 %v1782
        %3082 = vmatprep.subr.mxu0 %v1785
        %3083 = vmatpush1.msra.mxu0 %v1784
        %3084 = vmatprep.subr.mxu0 %v1787
        %3085 = vmatpush1.msra.mxu0 %v1786
        %3086 = vmatprep.subr.mxu0 %v1789
        %3087 = vmatpush1.msra.mxu0 %v1788
        %3088 = vmatprep.subr.mxu0 %v1791
        %3089 = vmatpush1.msra.mxu0 %v1790
        %3090 = vmatprep.subr.mxu0 %v1793
        %3091 = vmatpush1.msra.mxu0 %v1792
        %3092 = vmatprep.subr.mxu0 %v1795
        %3093 = vmatpush1.msra.mxu0 %v1794
        %3094 = vmatprep.subr.mxu0 %v1797
        %3095 = vmatpush1.msra.mxu0 %v1796
        %3096 = vmatprep.subr.mxu0 %v1799
        %3097 = vmatpush1.msra.mxu0 %v1798
        %3098 = vmatprep.subr.mxu0 %v1801
        %3099 = vmatpush1.msra.mxu0 %v1800
        %3100 = vmatprep.subr.mxu0 %v1803
        %3101 = vmatpush1.msra.mxu0 %v1802
        %3102 = vmatprep.subr.mxu0 %v1805
        %3103 = vmatpush1.msra.mxu0 %v1804
        %3104 = vmatprep.subr.mxu0 %v1807
        %3105 = vmatpush1.msra.mxu0 %v1806
        %3106 = vmatprep.subr.mxu0 %v1809
        %3107 = vmatpush1.msra.mxu0 %v1808
        %3108 = vmatprep.subr.mxu0 %v1811
        %3109 = vmatpush1.msra.mxu0 %v1810
        %3110 = vmatprep.subr.mxu0 %v1813
        %3111 = vmatpush1.msra.mxu0 %v1812
        %3112 = vmatprep.subr.mxu0 %v1815
        %3113 = vmatpush1.msra.mxu0 %v1814
        %3114 = vmatprep.subr.mxu0 %v1817
        %3115 = vmatpush1.msra.mxu0 %v1816
        %3116 = vmatprep.mubr.f32.mxu0 %v2024
        %3117 = vmatmul.mubr.f32.gmra.mrb[0].mxu0 %v2016
        %v3118 = vpop.f32.mrb[0].mxu0
        %v3119 = vadd.f32 %v3048, %v3118
        %v3120 = vpop.f32.mrb[0].mxu0
        %v3121 = vadd.f32 %v3050, %v3120
        %3122 = vdwg.mxu0
        %3123 = vmatprep.subr.mxu0 %v1819
        %3124 = vmatpush1.msra.mxu0 %v1818
        %3125 = vmatprep.subr.mxu0 %v1821
        %3126 = vmatpush1.msra.mxu0 %v1820
        %3127 = vmatprep.subr.mxu0 %v1823
        %3128 = vmatpush1.msra.mxu0 %v1822
        %3129 = vmatprep.subr.mxu0 %v1825
        %3130 = vmatpush1.msra.mxu0 %v1824
        %3131 = vmatprep.subr.mxu0 %v1827
        %3132 = vmatpush1.msra.mxu0 %v1826
        %3133 = vmatprep.subr.mxu0 %v1829
        %3134 = vmatpush1.msra.mxu0 %v1828
        %3135 = vmatprep.subr.mxu0 %v1831
        %3136 = vmatpush1.msra.mxu0 %v1830
        %3137 = vmatprep.subr.mxu0 %v1833
        %3138 = vmatpush1.msra.mxu0 %v1832
        %3139 = vmatprep.subr.mxu0 %v1835
        %3140 = vmatpush1.msra.mxu0 %v1834
        %3141 = vmatprep.subr.mxu0 %v1837
        %3142 = vmatpush1.msra.mxu0 %v1836
        %3143 = vmatprep.subr.mxu0 %v1839
        %3144 = vmatpush1.msra.mxu0 %v1838
        %3145 = vmatprep.subr.mxu0 %v1841
        %3146 = vmatpush1.msra.mxu0 %v1840
        %3147 = vmatprep.subr.mxu0 %v1843
        %3148 = vmatpush1.msra.mxu0 %v1842
        %3149 = vmatprep.subr.mxu0 %v1845
        %3150 = vmatpush1.msra.mxu0 %v1844
        %3151 = vmatprep.subr.mxu0 %v1847
        %3152 = vmatpush1.msra.mxu0 %v1846
        %3153 = vmatprep.subr.mxu0 %v1849
        %3154 = vmatpush1.msra.mxu0 %v1848
        %3155 = vmatprep.subr.mxu0 %v1851
        %3156 = vmatpush1.msra.mxu0 %v1850
        %3157 = vmatprep.subr.mxu0 %v1853
        %3158 = vmatpush1.msra.mxu0 %v1852
        %3159 = vmatprep.subr.mxu0 %v1855
        %3160 = vmatpush1.msra.mxu0 %v1854
        %3161 = vmatprep.subr.mxu0 %v1857
        %3162 = vmatpush1.msra.mxu0 %v1856
        %3163 = vmatprep.subr.mxu0 %v1859
        %3164 = vmatpush1.msra.mxu0 %v1858
        %3165 = vmatprep.subr.mxu0 %v1861
        %3166 = vmatpush1.msra.mxu0 %v1860
        %3167 = vmatprep.subr.mxu0 %v1863
        %3168 = vmatpush1.msra.mxu0 %v1862
        %3169 = vmatprep.subr.mxu0 %v1865
        %3170 = vmatpush1.msra.mxu0 %v1864
        %3171 = vmatprep.subr.mxu0 %v1867
        %3172 = vmatpush1.msra.mxu0 %v1866
        %3173 = vmatprep.subr.mxu0 %v1869
        %3174 = vmatpush1.msra.mxu0 %v1868
        %3175 = vmatprep.subr.mxu0 %v1871
        %3176 = vmatpush1.msra.mxu0 %v1870
        %3177 = vmatprep.subr.mxu0 %v1873
        %3178 = vmatpush1.msra.mxu0 %v1872
        %3179 = vmatprep.subr.mxu0 %v1875
        %3180 = vmatpush1.msra.mxu0 %v1874
        %3181 = vmatprep.subr.mxu0 %v1877
        %3182 = vmatpush1.msra.mxu0 %v1876
        %3183 = vmatprep.subr.mxu0 %v1879
        %3184 = vmatpush1.msra.mxu0 %v1878
        %3185 = vmatprep.subr.mxu0 %v1881
        %3186 = vmatpush1.msra.mxu0 %v1880
        %3187 = vmatprep.mubr.f32.mxu0 %v2025
        %3188 = vmatmul.mubr.f32.gmra.mrb[0].mxu0 %v2023
        %v3189 = vpop.f32.mrb[0].mxu0
        %v3190 = vadd.f32 %v3119, %v3189
        %v3191 = vpop.f32.mrb[0].mxu0
        %v3192 = vadd.f32 %v3121, %v3191
        %3193 = vdwg.mxu0
        %v3196 = vcombine.low %v3190, %v3192
        %v3198 = vunpack.c.l.s4 1983009808
        %v3199 = vunpack.c.0.s8 %v3198
        %v3200 = vlaneseq
        %v3201 = vshrl.u32 %v3200, 7
        %v3202 = vsub.s32 %v3199, %v3201
        %v3203 = vrot.slane %v3196, %v3202
        %v3205 = vadd.f32 %v337, %v3203
        %3206 = vst [vmem:[#allocation2] sm:$0xf] %v3205
        %p3207 = scmp.eq.s32.totalorder %s29, 1
        // Predicated region
        $region53: #{tpu_custom_call.1} parent=35 // pred_check
          %p3208 = pneg %p3207
        $region54: #{tpu_custom_call.1} parent=35 // pred_check_branch
          %3210 = sbr.rel (%p3208) target = $region56
        $region55: #{tpu_custom_call.1} parent=35 // pred_region
          %v3211 = vld [vmem:[#allocation2] sm:$0xf]
          %v3212 = vld [vmem:[%s282] sm:$0x3]
          %v3214 = vlaneseq
          %v3215 = vshrl.u32 %v3214, 7
          %v3216 = vsub.s32 0, %v3215
          %v3217 = vrot.slane %v3212, %v3216
          %v3218 = vlaneseq
          %v3219 = vshrl.u32 %v3218, 7
          %v3220 = vsub.s32 1, %v3219
          %v3221 = vrot.slane %v3212, %v3220
          %v3222 = vcombine.low %v3217, %v3221
          %v3224 = vunpack.c.l.s4 1983009808
          %v3225 = vunpack.c.0.s8 %v3224
          %v3226 = vlaneseq
          %v3227 = vshrl.u32 %v3226, 7
          %v3228 = vsub.s32 %v3225, %v3227
          %v3229 = vrot.slane %v3222, %v3228
          %v3231 = vadd.f32 %v3211, %v3229
          %v3232 = vmax.f32 %v3231, 0.0
          %v3233 = vld [vmem:[%s330] sm:$0xf]
          %v3234 = vld [vmem:[%s330 + $0x4] sm:$0xf]
          %v3235 = vld [vmem:[%s330 + $0x8] sm:$0xf]
          %v3236 = vld [vmem:[%s330 + $0xc] sm:$0xf]
          %v3237 = vld [vmem:[%s330 + $0x10] sm:$0xf]
          %v3238 = vld [vmem:[%s330 + $0x14] sm:$0xf]
          %v3239 = vld [vmem:[%s330 + $0x18] sm:$0xf]
          %v3240 = vld [vmem:[%s330 + $0x1c] sm:$0xf]
          %v3241 = vld [vmem:[%s330 + $0x20] sm:$0xf]
          %v3242 = vld [vmem:[%s330 + $0x24] sm:$0xf]
          %v3243 = vld [vmem:[%s330 + $0x28] sm:$0xf]
          %v3244 = vld [vmem:[%s330 + $0x2c] sm:$0xf]
          %v3245 = vld [vmem:[%s330 + $0x30] sm:$0xf]
          %v3246 = vld [vmem:[%s330 + $0x34] sm:$0xf]
          %v3247 = vld [vmem:[%s330 + $0x38] sm:$0xf]
          %v3248 = vld [vmem:[%s330 + $0x3c] sm:$0xf]
          %v3249 = vld [vmem:[%s330 + $0x40] sm:$0xf]
          %v3250 = vld [vmem:[%s330 + $0x44] sm:$0xf]
          %v3251 = vld [vmem:[%s330 + $0x48] sm:$0xf]
          %v3252 = vld [vmem:[%s330 + $0x4c] sm:$0xf]
          %v3253 = vld [vmem:[%s330 + $0x50] sm:$0xf]
          %v3254 = vld [vmem:[%s330 + $0x54] sm:$0xf]
          %v3255 = vld [vmem:[%s330 + $0x58] sm:$0xf]
          %v3256 = vld [vmem:[%s330 + $0x5c] sm:$0xf]
          %v3257 = vld [vmem:[%s330 + $0x60] sm:$0xf]
          %v3258 = vld [vmem:[%s330 + $0x64] sm:$0xf]
          %v3259 = vld [vmem:[%s330 + $0x68] sm:$0xf]
          %v3260 = vld [vmem:[%s330 + $0x6c] sm:$0xf]
          %v3261 = vld [vmem:[%s330 + $0x70] sm:$0xf]
          %v3262 = vld [vmem:[%s330 + $0x74] sm:$0xf]
          %v3263 = vld [vmem:[%s330 + $0x78] sm:$0xf]
          %v3264 = vld [vmem:[%s330 + $0x7c] sm:$0xf]
          %v3265 = vunpack.c.l.bf16 %v3233
          %v3266 = vunpack.c.l.bf16 %v3234
          %v3267 = vunpack.c.l.bf16 %v3235
          %v3268 = vunpack.c.l.bf16 %v3236
          %v3269 = vunpack.c.l.bf16 %v3237
          %v3270 = vunpack.c.l.bf16 %v3238
          %v3271 = vunpack.c.l.bf16 %v3239
          %v3272 = vunpack.c.l.bf16 %v3240
          %v3273 = vunpack.c.l.bf16 %v3241
          %v3274 = vunpack.c.l.bf16 %v3242
          %v3275 = vunpack.c.l.bf16 %v3243
          %v3276 = vunpack.c.l.bf16 %v3244
          %v3277 = vunpack.c.l.bf16 %v3245
          %v3278 = vunpack.c.l.bf16 %v3246
          %v3279 = vunpack.c.l.bf16 %v3247
          %v3280 = vunpack.c.l.bf16 %v3248
          %v3281 = vunpack.c.l.bf16 %v3249
          %v3282 = vunpack.c.l.bf16 %v3250
          %v3283 = vunpack.c.l.bf16 %v3251
          %v3284 = vunpack.c.l.bf16 %v3252
          %v3285 = vunpack.c.l.bf16 %v3253
          %v3286 = vunpack.c.l.bf16 %v3254
          %v3287 = vunpack.c.l.bf16 %v3255
          %v3288 = vunpack.c.l.bf16 %v3256
          %v3289 = vunpack.c.l.bf16 %v3257
          %v3290 = vunpack.c.l.bf16 %v3258
          %v3291 = vunpack.c.l.bf16 %v3259
          %v3292 = vunpack.c.l.bf16 %v3260
          %v3293 = vunpack.c.l.bf16 %v3261
          %v3294 = vunpack.c.l.bf16 %v3262
          %v3295 = vunpack.c.l.bf16 %v3263
          %v3296 = vunpack.c.l.bf16 %v3264
          %v3299 = vunpack.c.l.s4 1983009808
          %v3300 = vunpack.c.0.s8 %v3299
          %v3301 = vlaneseq
          %v3302 = vshrl.u32 %v3301, 7
          %v3303 = vsub.s32 %v3300, %v3302
          %v3304 = vrot.slane %v3232, %v3303
          %v3305 = vcombine.high %v3304, %v3304
          %3308 = vmatprep.subr.mxu0 0.0
          %3309 = vmatpush1.msra.mxu0 %v3265
          %3310 = vmatprep.subr.mxu0 0.0
          %3311 = vmatpush1.msra.mxu0 %v3266
          %3312 = vmatprep.subr.mxu0 0.0
          %3313 = vmatpush1.msra.mxu0 %v3267
          %3314 = vmatprep.subr.mxu0 0.0
          %3315 = vmatpush1.msra.mxu0 %v3268
          %3316 = vmatprep.subr.mxu0 0.0
          %3317 = vmatpush1.msra.mxu0 %v3269
          %3318 = vmatprep.subr.mxu0 0.0
          %3319 = vmatpush1.msra.mxu0 %v3270
          %3320 = vmatprep.subr.mxu0 0.0
          %3321 = vmatpush1.msra.mxu0 %v3271
          %3322 = vmatprep.subr.mxu0 0.0
          %3323 = vmatpush1.msra.mxu0 %v3272
          %3324 = vmatprep.subr.mxu0 0.0
          %3325 = vmatpush1.msra.mxu0 %v3273
          %3326 = vmatprep.subr.mxu0 0.0
          %3327 = vmatpush1.msra.mxu0 %v3274
          %3328 = vmatprep.subr.mxu0 0.0
          %3329 = vmatpush1.msra.mxu0 %v3275
          %3330 = vmatprep.subr.mxu0 0.0
          %3331 = vmatpush1.msra.mxu0 %v3276
          %3332 = vmatprep.subr.mxu0 0.0
          %3333 = vmatpush1.msra.mxu0 %v3277
          %3334 = vmatprep.subr.mxu0 0.0
          %3335 = vmatpush1.msra.mxu0 %v3278
          %3336 = vmatprep.subr.mxu0 0.0
          %3337 = vmatpush1.msra.mxu0 %v3279
          %3338 = vmatprep.subr.mxu0 0.0
          %3339 = vmatpush1.msra.mxu0 %v3280
          %3340 = vmatprep.subr.mxu0 0.0
          %3341 = vmatpush1.msra.mxu0 %v3281
          %3342 = vmatprep.subr.mxu0 0.0
          %3343 = vmatpush1.msra.mxu0 %v3282
          %3344 = vmatprep.subr.mxu0 0.0
          %3345 = vmatpush1.msra.mxu0 %v3283
          %3346 = vmatprep.subr.mxu0 0.0
          %3347 = vmatpush1.msra.mxu0 %v3284
          %3348 = vmatprep.subr.mxu0 0.0
          %3349 = vmatpush1.msra.mxu0 %v3285
          %3350 = vmatprep.subr.mxu0 0.0
          %3351 = vmatpush1.msra.mxu0 %v3286
          %3352 = vmatprep.subr.mxu0 0.0
          %3353 = vmatpush1.msra.mxu0 %v3287
          %3354 = vmatprep.subr.mxu0 0.0
          %3355 = vmatpush1.msra.mxu0 %v3288
          %3356 = vmatprep.subr.mxu0 0.0
          %3357 = vmatpush1.msra.mxu0 %v3289
          %3358 = vmatprep.subr.mxu0 0.0
          %3359 = vmatpush1.msra.mxu0 %v3290
          %3360 = vmatprep.subr.mxu0 0.0
          %3361 = vmatpush1.msra.mxu0 %v3291
          %3362 = vmatprep.subr.mxu0 0.0
          %3363 = vmatpush1.msra.mxu0 %v3292
          %3364 = vmatprep.subr.mxu0 0.0
          %3365 = vmatpush1.msra.mxu0 %v3293
          %3366 = vmatprep.subr.mxu0 0.0
          %3367 = vmatpush1.msra.mxu0 %v3294
          %3368 = vmatprep.subr.mxu0 0.0
          %3369 = vmatpush1.msra.mxu0 %v3295
          %3370 = vmatprep.subr.mxu0 0.0
          %3371 = vmatpush1.msra.mxu0 %v3296
          %3372 = vmatprep.mubr.f32.mxu0 %v3305
          %3373 = vmatmul.mubr.f32.gmra.mrb[0].mxu0 %v3304
          %v3374 = vpop.f32.mrb[0].mxu0
          %v3375 = vadd.f32 0.0, %v3374
          %v3376 = vpop.f32.mrb[0].mxu0
          %3377 = vdwg.mxu0
          %vm3378 = vcmask 9216
          %3379 = vst.msk [vmem:[%s321] sm:$0x3] %vm3378, %v3375
        $region56: #{tpu_custom_call.1} parent=35 // pred_fallthru
          _
        %s3380 = sand.u32 %s150, 1
        %s3381 = scalar_lea.sflag [#allocation5], %s3380
        %s3382 = sand.u32 %s150, 1
        %s3383 = smul.addr %s3382, 2
        %s3384 = scalar_lea.vmem [#allocation9], %s3383
        // Predicated region
        $region57: #{tpu_custom_call.1} parent=35 // pred_check
          %p3385 = pneg %p160
        $region58: #{tpu_custom_call.1} parent=35 // pred_check_branch
          %3387 = sbr.rel (%p3385) target = $region60
        $region59: #{tpu_custom_call.1} parent=35 // pred_region
          %s3389 = ssub.s32 32, 32
          %3390 = vsyncadd %s3381, %s3389
          %s3391 = smul.addr %s28, 32
          %s3392 = scalar_lea.hbm %s4, %s3391
          %s3394 = sshll.u32 %s3384, 4
          %s3395 = int_to_ptr.vmem [resolvable:$true] %s3394
          %3397 = dma.vmem_to_hbm [thread:$0]  %s3395, 32, %s3392, %s3381
        $region60: #{tpu_custom_call.1} parent=35 // pred_fallthru
          _
      $region36: #{tpu_custom_call.1} parent=5 // pred_fallthru
        _
      %p3398 = scmp.le.s32.totalorder 2, %s19
      // Predicated region
      $region61: #{tpu_custom_call.1} parent=5 // pred_check
        %p3399 = pneg %p3398
      $region62: #{tpu_custom_call.1} parent=5 // pred_check_branch
        %3401 = sbr.rel (%p3399) target = $region64
      $region63: #{tpu_custom_call.1} parent=5 // pred_region
        %s3402 = ssub.s32 %s19, 2
        // Predicated region
        $region65: #{tpu_custom_call.1} parent=63 // pred_check
          %p3403 = pneg %p166
        $region66: #{tpu_custom_call.1} parent=63 // pred_check_branch
          %3405 = sbr.rel (%p3403) target = $region68
        $region67: #{tpu_custom_call.1} parent=63 // pred_region
          %s3406 = sand.u32 %s151, 1
          %s3407 = scalar_lea.sflag [#allocation5], %s3406
          %s3408 = sand.u32 %s151, 1
          %s3409 = smul.addr %s3408, 2
          %s3410 = scalar_lea.vmem [#allocation9], %s3409
          %3411 = dma.done %s3407, 32
        $region68: #{tpu_custom_call.1} parent=63 // pred_fallthru
          _
      $region64: #{tpu_custom_call.1} parent=5 // pred_fallthru
        _
    $region6: #{tpu_custom_call.1} parent=1 // loop_footer
      %s23 = sadd.s32 1, %s19
    $region7: #{tpu_custom_call.1} parent=1 // loop_footer_branch
      %18 = sbr.rel target = $region3
    $region8: #{tpu_custom_call.1} parent=1 // loop_exit
      _
    %3412 = vsyncpa [#allocation4], 1
    %s3413 = scalar_lea.sflag [#allocation4], 1
    %3414 = vsyncpa %s3413, 1
    %3415 = vsyncpa [#allocation7], 1
    %s3416 = scalar_lea.sflag [#allocation7], 1
    %3417 = vsyncpa %s3416, 1
    %3418 = vsyncpa [#allocation5], 1
    %s3419 = scalar_lea.sflag [#allocation5], 1
    %3420 = vsyncpa %s3419, 1

</llo_original>
